<compile_context>
chip_gen: v7x
topology: tpu7x:2x2x1
jax: 0.10.0
libtpu: 0.0.40
codegen_flags: <defaults>
</compile_context>

<pallas_src>
import functools

import jax
import jax.numpy as jnp
from jax import lax
from jax.experimental import pallas as pl
from jax.experimental.pallas import tpu as pltpu

EPS = 1e-5


# ------------------------------ fused kernel ------------------------------

def _bottleneck_kernel(x_ref, w1_ref, b1_ref, w2_ref, b2_ref, w3_ref, b3_ref,
                       o_ref, a1_ref, *, row_tile):
    """Fused Bottleneck for one (batch n, output-row tile t) grid step.

    x_ref : (1, H, W, Cin)        full image, resident across the t axis
    w1_ref: (Cin, P)   b1_ref: (1, P)     BN1 scale folded into w1
    w2_ref: (9, P, P)  b2_ref: (1, P)     tap-major 3x3 weights, BN2 folded
    w3_ref: (P, Cout)  b3_ref: (1, Cout)  BN3 folded
    o_ref : (1, row_tile, W, Cout)
    a1_ref: (H+2, W+2, P) f32 VMEM scratch -- zero-padded conv1 activation,
            computed once per image (t == 0) and reused by every row tile.
    """
    _, H, W, Cin = x_ref.shape
    P = w1_ref.shape[1]
    Cout = w3_ref.shape[1]
    cdt = x_ref.dtype                      # MXU compute dtype (f32 or bf16)
    t = pl.program_id(1)

    # ---- stage 1: 1x1 conv + BN1 + ReLU, once per image -------------------
    @pl.when(t == 0)
    def _():
        a1_ref[...] = jnp.zeros_like(a1_ref)            # zero halo borders
        xi = x_ref[0].reshape(H * W, Cin)                # big MXU M dimension
        y1 = jnp.dot(xi, w1_ref[...], preferred_element_type=jnp.float32)
        y1 = jnp.maximum(y1 + b1_ref[...], 0.0)
        a1_ref[1:H + 1, 1:W + 1, :] = y1.reshape(H, W, P).astype(a1_ref.dtype)

    # ---- stage 2: 3x3 conv (pad=1, stride=1) + BN2 + ReLU on one row tile ---
    r0 = pl.multiple_of(t * row_tile, row_tile)
    acc = jnp.zeros((row_tile * W, P), jnp.float32)
    for dy in range(3):                                  # 9 shifted matmuls
        for dx in range(3):
            patch = a1_ref[pl.ds(r0 + dy, row_tile), pl.ds(dx, W), :]
            acc += jnp.dot(patch.reshape(row_tile * W, P).astype(cdt),
                           w2_ref[dy * 3 + dx],
                           preferred_element_type=jnp.float32)
    y2 = jnp.maximum(acc + b2_ref[...], 0.0)

    # ---- stage 3: 1x1 conv + BN3 + residual + ReLU --------------------------
    y3 = jnp.dot(y2.astype(cdt), w3_ref[...], preferred_element_type=jnp.float32)
    y3 = y3 + b3_ref[...]
    ident = x_ref[0, pl.ds(r0, row_tile), :, :].reshape(row_tile * W, Cout)
    y3 = jnp.maximum(y3 + ident.astype(jnp.float32), 0.0)
    o_ref[0] = y3.reshape(row_tile, W, Cout).astype(o_ref.dtype)


# ------------------------------ wrapper -----------------------------------

def _pick_row_tile(h, target):
    t = min(target, h)
    while h % t:
        t -= 1
    return t


def fold_bn(q):
    scale = q["gamma"] / jnp.sqrt(q["var"] + EPS)
    bias = q["beta"] - q["mean"] * scale
    return scale[None, :].astype(jnp.float32), bias[None, :].astype(jnp.float32)


def bottleneck_forward(x_nchw, params, *, stride=1, compute_dtype=jnp.float32,
                       row_tile_target=8):
    N, Cin, H, W = x_nchw.shape
    P = params["w1"].shape[0]
    Cout = params["w3"].shape[0]
    if stride != 1 or Cin != Cout:
        raise NotImplementedError(
            "downsample=None path requires stride == 1 and inplanes == 4*planes")

    x = jnp.transpose(x_nchw, (0, 2, 3, 1)).astype(compute_dtype)   # NCHW -> NHWC

    s1, b1 = fold_bn(params["bn1"])
    s2, b2 = fold_bn(params["bn2"])
    s3, b3 = fold_bn(params["bn3"])

    # Fold BN scale into conv weights (per output channel); bias stays in-kernel.
    w1 = (params["w1"][:, :, 0, 0].T * s1).astype(compute_dtype)              # (Cin, P)
    w2 = (jnp.transpose(params["w2"], (2, 3, 1, 0)).reshape(9, P, P)
          * s2).astype(compute_dtype)                                         # (9, P, P)
    w3 = (params["w3"][:, :, 0, 0].T * s3).astype(compute_dtype)              # (P, Cout)

    row_tile = _pick_row_tile(H, row_tile_target)
    n_tiles = H // row_tile

    # VMEM budget: double-buffered x/out blocks + weights + f32 conv1 scratch.
    itemsize = jnp.dtype(compute_dtype).itemsize
    est = (2 * H * W * Cin * itemsize
           + 2 * row_tile * W * Cout * itemsize
           + 2 * (Cin * P + 9 * P * P + P * Cout + 2 * P + Cout) * itemsize
           + (H + 2) * (W + 2) * P * 4)
    vmem_limit = int(min(max(2 * est, 16 * 2**20), 64 * 2**20))

    kernel = functools.partial(_bottleneck_kernel, row_tile=row_tile)
    out = pl.pallas_call(
        kernel,
        out_shape=jax.ShapeDtypeStruct((N, H, W, Cout), compute_dtype),
        grid_spec=pltpu.PrefetchScalarGridSpec(
            num_scalar_prefetch=0,
            grid=(N, n_tiles),                       # t innermost
            in_specs=[
                pl.BlockSpec((1, H, W, Cin), lambda n, t: (n, 0, 0, 0)),
                pl.BlockSpec((Cin, P), lambda n, t: (0, 0)),
                pl.BlockSpec((1, P), lambda n, t: (0, 0)),
                pl.BlockSpec((9, P, P), lambda n, t: (0, 0, 0)),
                pl.BlockSpec((1, P), lambda n, t: (0, 0)),
                pl.BlockSpec((P, Cout), lambda n, t: (0, 0)),
                pl.BlockSpec((1, Cout), lambda n, t: (0, 0)),
            ],
            out_specs=pl.BlockSpec((1, row_tile, W, Cout),
                                   lambda n, t: (n, t, 0, 0)),
            scratch_shapes=[pltpu.VMEM((H + 2, W + 2, P), jnp.float32)],
        ),
        compiler_params=pltpu.CompilerParams(
            # n: independent -> megacore parallel; t: sequential (reuses the
            # conv1 scratch written at t == 0) -> arbitrary.
            dimension_semantics=("parallel", "arbitrary"),
            vmem_limit_bytes=vmem_limit,
        ),
    )(x, w1, b1, w2, b2, w3, b3)

    return jnp.transpose(out, (0, 3, 1, 2))                       # NHWC -> NCHW


# -------------------------- parameters & reference -------------------------

def init_params(key, inplanes, planes, expansion=4):
    ks = jax.random.split(key, 15)
    p = {
        # PyTorch OIHW conv weights (bias=False)
        "w1": 0.1 * jax.random.normal(ks[0], (planes, inplanes, 1, 1), jnp.float32),
        "w2": 0.1 * jax.random.normal(ks[1], (planes, planes, 3, 3), jnp.float32),
        "w3": 0.1 * jax.random.normal(ks[2], (planes * expansion, planes, 1, 1),
                                      jnp.float32),
    }

    def bn(kg, kb, km, kv, c):
        return dict(
            gamma=1.0 + 0.1 * jax.random.normal(kg, (c,), jnp.float32),
            beta=0.1 * jax.random.normal(kb, (c,), jnp.float32),
            mean=0.1 * jax.random.normal(km, (c,), jnp.float32),
            var=0.5 + 0.1 * jnp.abs(jax.random.normal(kv, (c,), jnp.float32)),
        )

    p["bn1"] = bn(ks[3], ks[4], ks[5], ks[6], planes)
    p["bn2"] = bn(ks[7], ks[8], ks[9], ks[10], planes)
    p["bn3"] = bn(ks[11], ks[12], ks[13], ks[14], planes * expansion)
    return p


def reference_forward(x, p, *, stride=1):
    dn = ("NCHW", "OIHW", "NCHW")
    prec = lax.Precision.HIGHEST

    def bn(y, q):
        scale = q["gamma"] / jnp.sqrt(q["var"] + EPS)
        bias = q["beta"] - q["mean"] * scale
        return y * scale[None, :, None, None] + bias[None, :, None, None]

    out = lax.conv_general_dilated(x, p["w1"], (1, 1), "VALID",
                                   dimension_numbers=dn, precision=prec)
    out = jax.nn.relu(bn(out, p["bn1"]))
    out = lax.conv_general_dilated(out, p["w2"], (stride, stride),
                                   ((1, 1), (1, 1)), dimension_numbers=dn,
                                   precision=prec)
    out = jax.nn.relu(bn(out, p["bn2"]))
    out = lax.conv_general_dilated(out, p["w3"], (1, 1), "VALID",
                                   dimension_numbers=dn, precision=prec)
    out = bn(out, p["bn3"])
    out = out + x
    return jax.nn.relu(out)


if __name__ == "__main__":
    key = jax.random.PRNGKey(0)
    kx, kp = jax.random.split(key)

    # Bottleneck(inplanes=128, planes=32, stride=1, downsample=None):
    # inplanes == planes * expansion so the identity residual is shape-consistent,
    # and the input/output channel dim (128) is lane-dense.
    N, inplanes, planes, H, W = 2, 128, 32, 16, 16
    x = jax.random.normal(kx, (N, inplanes, H, W), jnp.float32)
    params = init_params(kp, inplanes, planes)

    ref = reference_forward(x, params, stride=1)

    # f32 path: strict check against the XLA reference.
    out_f32 = jax.block_until_ready(
        bottleneck_forward(x, params, stride=1, compute_dtype=jnp.float32))
    assert out_f32.shape == ref.shape == (N, inplanes, H, W)
    err_f32 = float(jnp.max(jnp.abs(out_f32 - ref)))
    assert jnp.allclose(out_f32, ref, rtol=1e-3, atol=1e-3), f"f32 max err {err_f32}"

    # bf16 MXU path (v6e/v7x optimization): loose check (f32 accumulation inside).
    out_bf16 = jax.block_until_ready(
        bottleneck_forward(x, params, stride=1, compute_dtype=jnp.bfloat16))
    err_bf16 = float(jnp.max(jnp.abs(out_bf16.astype(jnp.float32) - ref)))
    assert jnp.allclose(out_bf16.astype(jnp.float32), ref, rtol=5e-2, atol=5e-2), \
        f"bf16 max err {err_bf16}"

    print("KERNEL_OK")
</pallas_src>

<mosaic_0001>
module attributes {stable_mosaic.version = 11 : i64} {
  func.func @_bottleneck_kernel(%arg0: i32, %arg1: i32, %arg2: memref<1x16x16x128xf32, #tpu.memory_space<vmem>>, %arg3: memref<128x32xf32, #tpu.memory_space<vmem>>, %arg4: memref<1x32xf32, #tpu.memory_space<vmem>>, %arg5: memref<9x32x32xf32, #tpu.memory_space<vmem>>, %arg6: memref<1x32xf32, #tpu.memory_space<vmem>>, %arg7: memref<32x128xf32, #tpu.memory_space<vmem>>, %arg8: memref<1x128xf32, #tpu.memory_space<vmem>>, %arg9: memref<1x8x16x128xf32, #tpu.memory_space<vmem>>, %arg10: memref<18x18x32xf32, #tpu.memory_space<vmem>>) attributes {dimension_semantics = [#tpu.dimension_semantics<parallel>, #tpu.dimension_semantics<arbitrary>], iteration_bounds = array<i64: 2, 2>, scalar_prefetch = 0 : i64, scratch_operands = 1 : i64, tpu.core_type = #tpu.core_type<tc>, window_params = [{transform_indices = @transform_0, window_bounds = array<i64: 1, 16, 16, 128>}, {pipeline_mode = #tpu.pipeline_mode<synchronous>, transform_indices = @transform_1, window_bounds = array<i64: 128, 32>}, {pipeline_mode = #tpu.pipeline_mode<synchronous>, transform_indices = @transform_2, window_bounds = array<i64: 1, 32>}, {pipeline_mode = #tpu.pipeline_mode<synchronous>, transform_indices = @transform_3, window_bounds = array<i64: 9, 32, 32>}, {pipeline_mode = #tpu.pipeline_mode<synchronous>, transform_indices = @transform_4, window_bounds = array<i64: 1, 32>}, {pipeline_mode = #tpu.pipeline_mode<synchronous>, transform_indices = @transform_5, window_bounds = array<i64: 32, 128>}, {pipeline_mode = #tpu.pipeline_mode<synchronous>, transform_indices = @transform_6, window_bounds = array<i64: 1, 128>}, {transform_indices = @transform_7, window_bounds = array<i64: 1, 8, 16, 128>}]} {
    %c0_i32 = arith.constant 0 : i32
    %0 = arith.cmpi eq, %arg1, %c0_i32 : i32
    %1 = arith.extui %0 : i1 to i32
    %c0_i32_0 = arith.constant 0 : i32
    %2 = arith.cmpi ne, %1, %c0_i32_0 : i32
    scf.if %2 {
      %cst_69 = arith.constant 0.000000e+00 : f32
      %99 = vector.broadcast %cst_69 : f32 to vector<18x18x32xf32>
      %c0_70 = arith.constant 0 : index
      %c0_71 = arith.constant 0 : index
      %c0_72 = arith.constant 0 : index
      %100 = vector.load %arg10[%c0_70, %c0_71, %c0_72] : memref<18x18x32xf32, #tpu.memory_space<vmem>>, vector<18x18x32xf32>
      tpu.vector_store %arg10[%c0_70, %c0_71, %c0_72], %99 {strides = array<i32>} : memref<18x18x32xf32, #tpu.memory_space<vmem>>, vector<18x18x32xf32>,
      %c0_73 = arith.constant 0 : index
      %c0_74 = arith.constant 0 : index
      %c0_75 = arith.constant 0 : index
      %c0_76 = arith.constant 0 : index
      %101 = vector.load %arg2[%c0_73, %c0_74, %c0_75, %c0_76] : memref<1x16x16x128xf32, #tpu.memory_space<vmem>>, vector<1x16x16x128xf32>
      %102 = vector.shape_cast %101 : vector<1x16x16x128xf32> to vector<16x16x128xf32>
      %103 = vector.shape_cast %102 : vector<16x16x128xf32> to vector<256x128xf32>
      %c0_77 = arith.constant 0 : index
      %c0_78 = arith.constant 0 : index
      %104 = vector.load %arg3[%c0_77, %c0_78] : memref<128x32xf32, #tpu.memory_space<vmem>>, vector<128x32xf32>
      %cst_79 = arith.constant dense<0.000000e+00> : vector<256x32xf32>
      %105 = tpu.matmul %103, %104, %cst_79 {dimension_numbers = #tpu.dot_dimension_numbers<[1], [0], [0], [1], [0, 0, 1, 1], [], []>} : vector<256x128xf32>, vector<128x32xf32>, vector<256x32xf32> -> vector<256x32xf32>
      %c0_80 = arith.constant 0 : index
      %c0_81 = arith.constant 0 : index
      %106 = vector.load %arg4[%c0_80, %c0_81] : memref<1x32xf32, #tpu.memory_space<vmem>>, vector<1x32xf32>
      %107 = vector.broadcast %106 : vector<1x32xf32> to vector<256x32xf32>
      %108 = arith.addf %105, %107 : vector<256x32xf32>
      %cst_82 = arith.constant 0.000000e+00 : f32
      %109 = vector.broadcast %cst_82 : f32 to vector<256x32xf32>
      %110 = arith.maximumf %108, %109 : vector<256x32xf32>
      %111 = vector.shape_cast %110 : vector<256x32xf32> to vector<16x16x32xf32>
      %c1_83 = arith.constant 1 : index
      %c1_84 = arith.constant 1 : index
      %c0_85 = arith.constant 0 : index
      %112 = vector.load %arg10[%c1_83, %c1_84, %c0_85] : memref<18x18x32xf32, #tpu.memory_space<vmem>>, vector<16x16x32xf32>
      tpu.vector_store %arg10[%c1_83, %c1_84, %c0_85], %111 {strides = array<i32>} : memref<18x18x32xf32, #tpu.memory_space<vmem>>, vector<16x16x32xf32>,
    } else {
    }
    %c8_i32 = arith.constant 8 : i32
    %3 = arith.muli %arg1, %c8_i32 : i32
    %4 = tpu.assume_multiple %3, 8 : i32
    %cst = arith.constant 0.000000e+00 : f32
    %5 = vector.broadcast %cst : f32 to vector<128x32xf32>
    %c0_i32_1 = arith.constant 0 : i32
    %6 = arith.addi %4, %c0_i32_1 : i32
    %7 = arith.index_cast %6 : i32 to index
    %c0 = arith.constant 0 : index
    %c0_2 = arith.constant 0 : index
    %8 = vector.load %arg10[%7, %c0, %c0_2] : memref<18x18x32xf32, #tpu.memory_space<vmem>>, vector<8x16x32xf32>
    %9 = vector.shape_cast %8 : vector<8x16x32xf32> to vector<128x32xf32>
    %c0_3 = arith.constant 0 : index
    %c0_4 = arith.constant 0 : index
    %c0_5 = arith.constant 0 : index
    %10 = vector.load %arg5[%c0_3, %c0_4, %c0_5] : memref<9x32x32xf32, #tpu.memory_space<vmem>>, vector<1x32x32xf32>
    %11 = vector.shape_cast %10 : vector<1x32x32xf32> to vector<32x32xf32>
    %cst_6 = arith.constant dense<0.000000e+00> : vector<128x32xf32>
    %12 = tpu.matmul %9, %11, %cst_6 {dimension_numbers = #tpu.dot_dimension_numbers<[1], [0], [0], [1], [0, 0, 1, 1], [], []>} : vector<128x32xf32>, vector<32x32xf32>, vector<128x32xf32> -> vector<128x32xf32>
    %13 = arith.addf %5, %12 : vector<128x32xf32>
    %c0_i32_7 = arith.constant 0 : i32
    %14 = arith.addi %4, %c0_i32_7 : i32
    %15 = arith.index_cast %14 : i32 to index
    %c1 = arith.constant 1 : index
    %c0_8 = arith.constant 0 : index
    %16 = vector.load %arg10[%15, %c1, %c0_8] : memref<18x18x32xf32, #tpu.memory_space<vmem>>, vector<8x16x32xf32>
    %17 = vector.shape_cast %16 : vector<8x16x32xf32> to vector<128x32xf32>
    %c1_9 = arith.constant 1 : index
    %c0_10 = arith.constant 0 : index
    %c0_11 = arith.constant 0 : index
    %18 = vector.load %arg5[%c1_9, %c0_10, %c0_11] : memref<9x32x32xf32, #tpu.memory_space<vmem>>, vector<1x32x32xf32>
    %19 = vector.shape_cast %18 : vector<1x32x32xf32> to vector<32x32xf32>
    %cst_12 = arith.constant dense<0.000000e+00> : vector<128x32xf32>
    %20 = tpu.matmul %17, %19, %cst_12 {dimension_numbers = #tpu.dot_dimension_numbers<[1], [0], [0], [1], [0, 0, 1, 1], [], []>} : vector<128x32xf32>, vector<32x32xf32>, vector<128x32xf32> -> vector<128x32xf32>
    %21 = arith.addf %13, %20 : vector<128x32xf32>
    %c0_i32_13 = arith.constant 0 : i32
    %22 = arith.addi %4, %c0_i32_13 : i32
    %23 = arith.index_cast %22 : i32 to index
    %c2 = arith.constant 2 : index
    %c0_14 = arith.constant 0 : index
    %24 = vector.load %arg10[%23, %c2, %c0_14] : memref<18x18x32xf32, #tpu.memory_space<vmem>>, vector<8x16x32xf32>
    %25 = vector.shape_cast %24 : vector<8x16x32xf32> to vector<128x32xf32>
    %c2_15 = arith.constant 2 : index
    %c0_16 = arith.constant 0 : index
    %c0_17 = arith.constant 0 : index
    %26 = vector.load %arg5[%c2_15, %c0_16, %c0_17] : memref<9x32x32xf32, #tpu.memory_space<vmem>>, vector<1x32x32xf32>
    %27 = vector.shape_cast %26 : vector<1x32x32xf32> to vector<32x32xf32>
    %cst_18 = arith.constant dense<0.000000e+00> : vector<128x32xf32>
    %28 = tpu.matmul %25, %27, %cst_18 {dimension_numbers = #tpu.dot_dimension_numbers<[1], [0], [0], [1], [0, 0, 1, 1], [], []>} : vector<128x32xf32>, vector<32x32xf32>, vector<128x32xf32> -> vector<128x32xf32>
    %29 = arith.addf %21, %28 : vector<128x32xf32>
    %c1_i32 = arith.constant 1 : i32
    %30 = arith.addi %4, %c1_i32 : i32
    %31 = arith.index_cast %30 : i32 to index
    %c0_19 = arith.constant 0 : index
    %c0_20 = arith.constant 0 : index
    %32 = vector.load %arg10[%31, %c0_19, %c0_20] : memref<18x18x32xf32, #tpu.memory_space<vmem>>, vector<8x16x32xf32>
    %33 = vector.shape_cast %32 : vector<8x16x32xf32> to vector<128x32xf32>
    %c3 = arith.constant 3 : index
    %c0_21 = arith.constant 0 : index
    %c0_22 = arith.constant 0 : index
    %34 = vector.load %arg5[%c3, %c0_21, %c0_22] : memref<9x32x32xf32, #tpu.memory_space<vmem>>, vector<1x32x32xf32>
    %35 = vector.shape_cast %34 : vector<1x32x32xf32> to vector<32x32xf32>
    %cst_23 = arith.constant dense<0.000000e+00> : vector<128x32xf32>
    %36 = tpu.matmul %33, %35, %cst_23 {dimension_numbers = #tpu.dot_dimension_numbers<[1], [0], [0], [1], [0, 0, 1, 1], [], []>} : vector<128x32xf32>, vector<32x32xf32>, vector<128x32xf32> -> vector<128x32xf32>
    %37 = arith.addf %29, %36 : vector<128x32xf32>
    %c1_i32_24 = arith.constant 1 : i32
    %38 = arith.addi %4, %c1_i32_24 : i32
    %39 = arith.index_cast %38 : i32 to index
    %c1_25 = arith.constant 1 : index
    %c0_26 = arith.constant 0 : index
    %40 = vector.load %arg10[%39, %c1_25, %c0_26] : memref<18x18x32xf32, #tpu.memory_space<vmem>>, vector<8x16x32xf32>
    %41 = vector.shape_cast %40 : vector<8x16x32xf32> to vector<128x32xf32>
    %c4 = arith.constant 4 : index
    %c0_27 = arith.constant 0 : index
    %c0_28 = arith.constant 0 : index
    %42 = vector.load %arg5[%c4, %c0_27, %c0_28] : memref<9x32x32xf32, #tpu.memory_space<vmem>>, vector<1x32x32xf32>
    %43 = vector.shape_cast %42 : vector<1x32x32xf32> to vector<32x32xf32>
    %cst_29 = arith.constant dense<0.000000e+00> : vector<128x32xf32>
    %44 = tpu.matmul %41, %43, %cst_29 {dimension_numbers = #tpu.dot_dimension_numbers<[1], [0], [0], [1], [0, 0, 1, 1], [], []>} : vector<128x32xf32>, vector<32x32xf32>, vector<128x32xf32> -> vector<128x32xf32>
    %45 = arith.addf %37, %44 : vector<128x32xf32>
    %c1_i32_30 = arith.constant 1 : i32
    %46 = arith.addi %4, %c1_i32_30 : i32
    %47 = arith.index_cast %46 : i32 to index
    %c2_31 = arith.constant 2 : index
    %c0_32 = arith.constant 0 : index
    %48 = vector.load %arg10[%47, %c2_31, %c0_32] : memref<18x18x32xf32, #tpu.memory_space<vmem>>, vector<8x16x32xf32>
    %49 = vector.shape_cast %48 : vector<8x16x32xf32> to vector<128x32xf32>
    %c5 = arith.constant 5 : index
    %c0_33 = arith.constant 0 : index
    %c0_34 = arith.constant 0 : index
    %50 = vector.load %arg5[%c5, %c0_33, %c0_34] : memref<9x32x32xf32, #tpu.memory_space<vmem>>, vector<1x32x32xf32>
    %51 = vector.shape_cast %50 : vector<1x32x32xf32> to vector<32x32xf32>
    %cst_35 = arith.constant dense<0.000000e+00> : vector<128x32xf32>
    %52 = tpu.matmul %49, %51, %cst_35 {dimension_numbers = #tpu.dot_dimension_numbers<[1], [0], [0], [1], [0, 0, 1, 1], [], []>} : vector<128x32xf32>, vector<32x32xf32>, vector<128x32xf32> -> vector<128x32xf32>
    %53 = arith.addf %45, %52 : vector<128x32xf32>
    %c2_i32 = arith.constant 2 : i32
    %54 = arith.addi %4, %c2_i32 : i32
    %55 = arith.index_cast %54 : i32 to index
    %c0_36 = arith.constant 0 : index
    %c0_37 = arith.constant 0 : index
    %56 = vector.load %arg10[%55, %c0_36, %c0_37] : memref<18x18x32xf32, #tpu.memory_space<vmem>>, vector<8x16x32xf32>
    %57 = vector.shape_cast %56 : vector<8x16x32xf32> to vector<128x32xf32>
    %c6 = arith.constant 6 : index
    %c0_38 = arith.constant 0 : index
    %c0_39 = arith.constant 0 : index
    %58 = vector.load %arg5[%c6, %c0_38, %c0_39] : memref<9x32x32xf32, #tpu.memory_space<vmem>>, vector<1x32x32xf32>
    %59 = vector.shape_cast %58 : vector<1x32x32xf32> to vector<32x32xf32>
    %cst_40 = arith.constant dense<0.000000e+00> : vector<128x32xf32>
    %60 = tpu.matmul %57, %59, %cst_40 {dimension_numbers = #tpu.dot_dimension_numbers<[1], [0], [0], [1], [0, 0, 1, 1], [], []>} : vector<128x32xf32>, vector<32x32xf32>, vector<128x32xf32> -> vector<128x32xf32>
    %61 = arith.addf %53, %60 : vector<128x32xf32>
    %c2_i32_41 = arith.constant 2 : i32
    %62 = arith.addi %4, %c2_i32_41 : i32
    %63 = arith.index_cast %62 : i32 to index
    %c1_42 = arith.constant 1 : index
    %c0_43 = arith.constant 0 : index
    %64 = vector.load %arg10[%63, %c1_42, %c0_43] : memref<18x18x32xf32, #tpu.memory_space<vmem>>, vector<8x16x32xf32>
    %65 = vector.shape_cast %64 : vector<8x16x32xf32> to vector<128x32xf32>
    %c7 = arith.constant 7 : index
    %c0_44 = arith.constant 0 : index
    %c0_45 = arith.constant 0 : index
    %66 = vector.load %arg5[%c7, %c0_44, %c0_45] : memref<9x32x32xf32, #tpu.memory_space<vmem>>, vector<1x32x32xf32>
    %67 = vector.shape_cast %66 : vector<1x32x32xf32> to vector<32x32xf32>
    %cst_46 = arith.constant dense<0.000000e+00> : vector<128x32xf32>
    %68 = tpu.matmul %65, %67, %cst_46 {dimension_numbers = #tpu.dot_dimension_numbers<[1], [0], [0], [1], [0, 0, 1, 1], [], []>} : vector<128x32xf32>, vector<32x32xf32>, vector<128x32xf32> -> vector<128x32xf32>
    %69 = arith.addf %61, %68 : vector<128x32xf32>
    %c2_i32_47 = arith.constant 2 : i32
    %70 = arith.addi %4, %c2_i32_47 : i32
    %71 = arith.index_cast %70 : i32 to index
    %c2_48 = arith.constant 2 : index
    %c0_49 = arith.constant 0 : index
    %72 = vector.load %arg10[%71, %c2_48, %c0_49] : memref<18x18x32xf32, #tpu.memory_space<vmem>>, vector<8x16x32xf32>
    %73 = vector.shape_cast %72 : vector<8x16x32xf32> to vector<128x32xf32>
    %c8 = arith.constant 8 : index
    %c0_50 = arith.constant 0 : index
    %c0_51 = arith.constant 0 : index
    %74 = vector.load %arg5[%c8, %c0_50, %c0_51] : memref<9x32x32xf32, #tpu.memory_space<vmem>>, vector<1x32x32xf32>
    %75 = vector.shape_cast %74 : vector<1x32x32xf32> to vector<32x32xf32>
    %cst_52 = arith.constant dense<0.000000e+00> : vector<128x32xf32>
    %76 = tpu.matmul %73, %75, %cst_52 {dimension_numbers = #tpu.dot_dimension_numbers<[1], [0], [0], [1], [0, 0, 1, 1], [], []>} : vector<128x32xf32>, vector<32x32xf32>, vector<128x32xf32> -> vector<128x32xf32>
    %77 = arith.addf %69, %76 : vector<128x32xf32>
    %c0_53 = arith.constant 0 : index
    %c0_54 = arith.constant 0 : index
    %78 = vector.load %arg6[%c0_53, %c0_54] : memref<1x32xf32, #tpu.memory_space<vmem>>, vector<1x32xf32>
    %79 = vector.broadcast %78 : vector<1x32xf32> to vector<128x32xf32>
    %80 = arith.addf %77, %79 : vector<128x32xf32>
    %cst_55 = arith.constant 0.000000e+00 : f32
    %81 = vector.broadcast %cst_55 : f32 to vector<128x32xf32>
    %82 = arith.maximumf %80, %81 : vector<128x32xf32>
    %c0_56 = arith.constant 0 : index
    %c0_57 = arith.constant 0 : index
    %83 = vector.load %arg7[%c0_56, %c0_57] : memref<32x128xf32, #tpu.memory_space<vmem>>, vector<32x128xf32>
    %cst_58 = arith.constant dense<0.000000e+00> : vector<128x128xf32>
    %84 = tpu.matmul %82, %83, %cst_58 {dimension_numbers = #tpu.dot_dimension_numbers<[1], [0], [0], [1], [0, 0, 1, 1], [], []>} : vector<128x32xf32>, vector<32x128xf32>, vector<128x128xf32> -> vector<128x128xf32>
    %c0_59 = arith.constant 0 : index
    %c0_60 = arith.constant 0 : index
    %85 = vector.load %arg8[%c0_59, %c0_60] : memref<1x128xf32, #tpu.memory_space<vmem>>, vector<1x128xf32>
    %86 = vector.broadcast %85 : vector<1x128xf32> to vector<128x128xf32>
    %87 = arith.addf %84, %86 : vector<128x128xf32>
    %c0_61 = arith.constant 0 : index
    %88 = arith.index_cast %4 : i32 to index
    %c0_62 = arith.constant 0 : index
    %c0_63 = arith.constant 0 : index
    %89 = vector.load %arg2[%c0_61, %88, %c0_62, %c0_63] : memref<1x16x16x128xf32, #tpu.memory_space<vmem>>, vector<1x8x16x128xf32>
    %90 = vector.shape_cast %89 : vector<1x8x16x128xf32> to vector<8x16x128xf32>
    %91 = vector.shape_cast %90 : vector<8x16x128xf32> to vector<128x128xf32>
    %92 = arith.addf %87, %91 : vector<128x128xf32>
    %cst_64 = arith.constant 0.000000e+00 : f32
    %93 = vector.broadcast %cst_64 : f32 to vector<128x128xf32>
    %94 = arith.maximumf %92, %93 : vector<128x128xf32>
    %95 = vector.shape_cast %94 : vector<128x128xf32> to vector<8x16x128xf32>
    %c0_65 = arith.constant 0 : index
    %c0_66 = arith.constant 0 : index
    %c0_67 = arith.constant 0 : index
    %c0_68 = arith.constant 0 : index
    %96 = vector.load %arg9[%c0_65, %c0_66, %c0_67, %c0_68] : memref<1x8x16x128xf32, #tpu.memory_space<vmem>>, vector<1x8x16x128xf32>
    %97 = vector.shape_cast %96 : vector<1x8x16x128xf32> to vector<8x16x128xf32>
    %98 = vector.shape_cast %95 : vector<8x16x128xf32> to vector<1x8x16x128xf32>
    tpu.vector_store %arg9[%c0_65, %c0_66, %c0_67, %c0_68], %98 {strides = array<i32>} : memref<1x8x16x128xf32, #tpu.memory_space<vmem>>, vector<1x8x16x128xf32>,
    return
  }
  func.func @transform_0(%arg0: i32, %arg1: i32) -> (i32, i32, i32, i32) {
    %c0_i32 = arith.constant 0 : i32
    %c0_i32_0 = arith.constant 0 : i32
    %c0_i32_1 = arith.constant 0 : i32
    %c0_i32_2 = arith.constant 0 : i32
    return %arg0, %c0_i32, %c0_i32_0, %c0_i32_1 : i32, i32, i32, i32
  }
  func.func @transform_1(%arg0: i32, %arg1: i32) -> (i32, i32) {
    %c0_i32 = arith.constant 0 : i32
    %c0_i32_0 = arith.constant 0 : i32
    %c0_i32_1 = arith.constant 0 : i32
    return %c0_i32, %c0_i32_0 : i32, i32
  }
  func.func @transform_2(%arg0: i32, %arg1: i32) -> (i32, i32) {
    %c0_i32 = arith.constant 0 : i32
    %c0_i32_0 = arith.constant 0 : i32
    %c0_i32_1 = arith.constant 0 : i32
    return %c0_i32, %c0_i32_0 : i32, i32
  }
  func.func @transform_3(%arg0: i32, %arg1: i32) -> (i32, i32, i32) {
    %c0_i32 = arith.constant 0 : i32
    %c0_i32_0 = arith.constant 0 : i32
    %c0_i32_1 = arith.constant 0 : i32
    %c0_i32_2 = arith.constant 0 : i32
    return %c0_i32, %c0_i32_0, %c0_i32_1 : i32, i32, i32
  }
  func.func @transform_4(%arg0: i32, %arg1: i32) -> (i32, i32) {
    %c0_i32 = arith.constant 0 : i32
    %c0_i32_0 = arith.constant 0 : i32
    %c0_i32_1 = arith.constant 0 : i32
    return %c0_i32, %c0_i32_0 : i32, i32
  }
  func.func @transform_5(%arg0: i32, %arg1: i32) -> (i32, i32) {
    %c0_i32 = arith.constant 0 : i32
    %c0_i32_0 = arith.constant 0 : i32
    %c0_i32_1 = arith.constant 0 : i32
    return %c0_i32, %c0_i32_0 : i32, i32
  }
  func.func @transform_6(%arg0: i32, %arg1: i32) -> (i32, i32) {
    %c0_i32 = arith.constant 0 : i32
    %c0_i32_0 = arith.constant 0 : i32
    %c0_i32_1 = arith.constant 0 : i32
    return %c0_i32, %c0_i32_0 : i32, i32
  }
  func.func @transform_7(%arg0: i32, %arg1: i32) -> (i32, i32, i32, i32) {
    %c0_i32 = arith.constant 0 : i32
    %c0_i32_0 = arith.constant 0 : i32
    %c0_i32_1 = arith.constant 0 : i32
    return %arg0, %arg1, %c0_i32, %c0_i32_0 : i32, i32, i32, i32
  }
}

</mosaic_0001>

<llo_original>
// kernel: tpu_custom_call.1
$region0: #{tpu_custom_call.1}
  #allocation0 [shape = 'u32[]', space=smem, size = 0x4, offset = 0x4, fixed_abs, tag = 'smem constant byte address 0x4 - core index']
  #allocation1 [shape = 'u32[144,128]{1,0:T(1,128)}', space=vmem, size = 0x12000, scoped, tag = 'internal scratch']
  #allocation2 [shape = 'f32[18,18,32]{2,1,0:T(8,128)}', space=vmem, size = 0x36000, scoped, tag = 'scratch operand']
  %s0 = inlined_call_operand.hbm [shape: f32[2,16,16,128], index: 0, kind: input, shape index: {}]
  %s1 = inlined_call_operand.vmem [shape: f32[128,32], index: 1, kind: input, shape index: {}]
  %s2 = inlined_call_operand.vmem [shape: f32[1,32], index: 2, kind: input, shape index: {}]
  %s3 = inlined_call_operand.hbm [shape: f32[9,32,32], index: 3, kind: input, shape index: {}]
  %s4 = inlined_call_operand.vmem [shape: f32[1,32], index: 4, kind: input, shape index: {}]
  %s5 = inlined_call_operand.vmem [shape: f32[32,128], index: 5, kind: input, shape index: {}]
  %s6 = inlined_call_operand.vmem [shape: f32[1,128], index: 6, kind: input, shape index: {}]
  %s7 = inlined_call_operand.hbm [shape: f32[2,16,16,128], index: 7, kind: output, shape index: {}]
  %s8 = sld [smem:[#allocation0]]
  $region73: #{tpu_custom_call.1} parent=0
    _
  %s10 = ssub.s32 1, %s8
  %s11 = scalar_select 0, %s10, %s8
  $region1: #{tpu_custom_call.1} parent=0
    #allocation3 [shape = 'u8[262144]{0}', space=vmem, size = 0x40000, scoped, tag = 'input window, operand 0']
    #allocation4 [shape = 's32[2]{0}', space=sflag, size = 0x8, scoped, tag = 'scoped memory for tpu_custom_call.1']
    #allocation5 [shape = 's32[2]{0}', space=sflag, size = 0x8, scoped, tag = 'scoped memory for tpu_custom_call.1']
    #allocation6 [shape = 'u8[147456]{0}', space=vmem, size = 0x24000, scoped, tag = 'input window, operand 3, single buffered']
    #allocation7 [shape = 's32[1]{0}', space=sflag, size = 0x4, scoped, tag = 'scoped memory for tpu_custom_call.1']
    #allocation8 [shape = 'u8[131072]{0}', space=vmem, size = 0x20000, scoped, tag = 'output window, operand 0']
    %12 = vsyncpa [#allocation4], 0
    %s13 = scalar_lea.sflag [#allocation4], 1
    %14 = vsyncpa %s13, 0
    %15 = vsyncpa [#allocation7], 0
    %16 = vsyncpa [#allocation5], 0
    %s17 = scalar_lea.sflag [#allocation5], 1
    %18 = vsyncpa %s17, 0
    loop: start=0, step=1, limit=6
    $region2: #{tpu_custom_call.1} parent=1 // loop_pre_header
      _
    $region3: #{tpu_custom_call.1} parent=1 // loop_header
      %s20 = sphi 0, %s24
      %p21 = scmp.ge.s32.totalorder %s20, 6
      %s27 = sphi 0, %s39
      %s28 = sphi 0, %s35
      %s29 = sphi 0, %s27
      %s30 = sphi 0, %s28
      %s31 = sphi 0, %s29
      %s32 = sphi 0, %s30
      %s42 = sphi 0, %s44
      %s45 = sphi 0, %s42
      %s46 = sphi 0, %s45
      %s62 = sphi 0, %s46
      %s66 = sphi 0, %s66
      %s68 = sphi 0, %s66
      %s69 = sphi 0, %s68
      %s83 = sphi 0, %s69
      %s87 = sphi 0, %s87
      %s89 = sphi 0, %s87
      %s90 = sphi 0, %s89
      %s104 = sphi 0, %s90
      %s108 = sphi 0, %s108
      %s110 = sphi 0, %s108
      %s111 = sphi 0, %s110
      %s125 = sphi 0, %s111
      %s129 = sphi 0, %s129
      %s131 = sphi 0, %s129
      %s132 = sphi 0, %s131
      %s146 = sphi 0, %s132
      %s150 = sphi 0, %s150
      %s152 = sphi 0, %s150
      %s153 = sphi 0, %s152
      %s167 = sphi 0, %s153
      %s171 = sphi 0, %s171
      %s173 = sphi 0, %s171
      %s174 = sphi 0, %s173
      %s188 = sphi 0, %s174
      %s196 = sphi 0, %s198
      %s199 = sphi 0, %s196
      %s200 = sphi 0, %s199
      %s216 = sphi 0, %s200
    $region4: #{tpu_custom_call.1} parent=1 // loop_header_branch
      %23 = sbr.rel (%p21) target = $region8
    $region5: #{tpu_custom_call.1} parent=1 // loop_body
      %s25 = ssub.s32 %s20, 1
      %s26 = ssub.s32 %s20, 2
      %s33 = sadd.s32 1, %s28
      %p34 = scmp.ge.s32.totalorder %s33, 2
      %s35 = scalar_select %p34, 0, %s33
      %s36 = sadd.s32 1, %s27
      %s37 = scalar_select %p34, %s36, %s27
      %p38 = scmp.ge.s32.totalorder %s37, 2
      %s39 = scalar_select %p38, 0, %s37
      %s40 = ssub.s32 %s27, %s39
      %p41 = scmp.eq.s32.totalorder %s40, 0
      %s43 = sadd.s32 %s42, 1
      %s44 = scalar_select %p41, %s42, %s43
      %p47 = pneg %p41
      %p48 = scmp.eq.s32.totalorder %s20, 3
      %p49 = por %p47, %p48
      %p50 = scmp.ne.s32.totalorder %s42, %s45
      %p51 = scmp.eq.s32.totalorder %s20, 0
      %p52 = por %p50, %p51
      %p53 = scmp.ne.s32.totalorder %s42, %s45
      %p54 = scmp.eq.s32.totalorder %s25, 3
      %p55 = por %p53, %p54
      %p56 = scmp.ne.s32.totalorder %s45, %s46
      %p57 = scmp.eq.s32.totalorder %s25, 0
      %p58 = por %p56, %p57
      %p59 = scmp.ne.s32.totalorder %s45, %s46
      %p60 = scmp.eq.s32.totalorder %s26, 3
      %p61 = por %p59, %p60
      %p63 = scmp.ne.s32.totalorder %s46, %s62
      %p64 = scmp.eq.s32.totalorder %s26, 0
      %p65 = por %p63, %p64
      %s67 = sadd.s32 %s66, 1
      %p70 = scmp.eq.s32.totalorder %s20, 3
      %p71 = scmp.ne.s32.totalorder %s66, %s68
      %p72 = scmp.eq.s32.totalorder %s20, 0
      %p73 = por %p71, %p72
      %p74 = scmp.ne.s32.totalorder %s66, %s68
      %p75 = scmp.eq.s32.totalorder %s25, 3
      %p76 = por %p74, %p75
      %p77 = scmp.ne.s32.totalorder %s68, %s69
      %p78 = scmp.eq.s32.totalorder %s25, 0
      %p79 = por %p77, %p78
      %p80 = scmp.ne.s32.totalorder %s68, %s69
      %p81 = scmp.eq.s32.totalorder %s26, 3
      %p82 = por %p80, %p81
      %p84 = scmp.ne.s32.totalorder %s69, %s83
      %p85 = scmp.eq.s32.totalorder %s26, 0
      %p86 = por %p84, %p85
      %s88 = sadd.s32 %s87, 1
      %p91 = scmp.eq.s32.totalorder %s20, 3
      %p92 = scmp.ne.s32.totalorder %s87, %s89
      %p93 = scmp.eq.s32.totalorder %s20, 0
      %p94 = por %p92, %p93
      %p95 = scmp.ne.s32.totalorder %s87, %s89
      %p96 = scmp.eq.s32.totalorder %s25, 3
      %p97 = por %p95, %p96
      %p98 = scmp.ne.s32.totalorder %s89, %s90
      %p99 = scmp.eq.s32.totalorder %s25, 0
      %p100 = por %p98, %p99
      %p101 = scmp.ne.s32.totalorder %s89, %s90
      %p102 = scmp.eq.s32.totalorder %s26, 3
      %p103 = por %p101, %p102
      %p105 = scmp.ne.s32.totalorder %s90, %s104
      %p106 = scmp.eq.s32.totalorder %s26, 0
      %p107 = por %p105, %p106
      %s109 = sadd.s32 %s108, 1
      %p112 = scmp.eq.s32.totalorder %s20, 3
      %p113 = scmp.ne.s32.totalorder %s108, %s110
      %p114 = scmp.eq.s32.totalorder %s20, 0
      %p115 = por %p113, %p114
      %p116 = scmp.ne.s32.totalorder %s108, %s110
      %p117 = scmp.eq.s32.totalorder %s25, 3
      %p118 = por %p116, %p117
      %p119 = scmp.ne.s32.totalorder %s110, %s111
      %p120 = scmp.eq.s32.totalorder %s25, 0
      %p121 = por %p119, %p120
      %p122 = scmp.ne.s32.totalorder %s110, %s111
      %p123 = scmp.eq.s32.totalorder %s26, 3
      %p124 = por %p122, %p123
      %p126 = scmp.ne.s32.totalorder %s111, %s125
      %p127 = scmp.eq.s32.totalorder %s26, 0
      %p128 = por %p126, %p127
      %s130 = sadd.s32 %s129, 1
      %p133 = scmp.eq.s32.totalorder %s20, 3
      %p134 = scmp.ne.s32.totalorder %s129, %s131
      %p135 = scmp.eq.s32.totalorder %s20, 0
      %p136 = por %p134, %p135
      %p137 = scmp.ne.s32.totalorder %s129, %s131
      %p138 = scmp.eq.s32.totalorder %s25, 3
      %p139 = por %p137, %p138
      %p140 = scmp.ne.s32.totalorder %s131, %s132
      %p141 = scmp.eq.s32.totalorder %s25, 0
      %p142 = por %p140, %p141
      %p143 = scmp.ne.s32.totalorder %s131, %s132
      %p144 = scmp.eq.s32.totalorder %s26, 3
      %p145 = por %p143, %p144
      %p147 = scmp.ne.s32.totalorder %s132, %s146
      %p148 = scmp.eq.s32.totalorder %s26, 0
      %p149 = por %p147, %p148
      %s151 = sadd.s32 %s150, 1
      %p154 = scmp.eq.s32.totalorder %s20, 3
      %p155 = scmp.ne.s32.totalorder %s150, %s152
      %p156 = scmp.eq.s32.totalorder %s20, 0
      %p157 = por %p155, %p156
      %p158 = scmp.ne.s32.totalorder %s150, %s152
      %p159 = scmp.eq.s32.totalorder %s25, 3
      %p160 = por %p158, %p159
      %p161 = scmp.ne.s32.totalorder %s152, %s153
      %p162 = scmp.eq.s32.totalorder %s25, 0
      %p163 = por %p161, %p162
      %p164 = scmp.ne.s32.totalorder %s152, %s153
      %p165 = scmp.eq.s32.totalorder %s26, 3
      %p166 = por %p164, %p165
      %p168 = scmp.ne.s32.totalorder %s153, %s167
      %p169 = scmp.eq.s32.totalorder %s26, 0
      %p170 = por %p168, %p169
      %s172 = sadd.s32 %s171, 1
      %p175 = scmp.eq.s32.totalorder %s20, 3
      %p176 = scmp.ne.s32.totalorder %s171, %s173
      %p177 = scmp.eq.s32.totalorder %s20, 0
      %p178 = por %p176, %p177
      %p179 = scmp.ne.s32.totalorder %s171, %s173
      %p180 = scmp.eq.s32.totalorder %s25, 3
      %p181 = por %p179, %p180
      %p182 = scmp.ne.s32.totalorder %s173, %s174
      %p183 = scmp.eq.s32.totalorder %s25, 0
      %p184 = por %p182, %p183
      %p185 = scmp.ne.s32.totalorder %s173, %s174
      %p186 = scmp.eq.s32.totalorder %s26, 3
      %p187 = por %p185, %p186
      %p189 = scmp.ne.s32.totalorder %s174, %s188
      %p190 = scmp.eq.s32.totalorder %s26, 0
      %p191 = por %p189, %p190
      %s192 = ssub.s32 %s27, %s39
      %s193 = ssub.s32 %s28, %s35
      %s194 = sor.u32 %s192, %s193
      %p195 = scmp.eq.s32.totalorder %s194, 0
      %s197 = sadd.s32 %s196, 1
      %s198 = scalar_select %p195, %s196, %s197
      %p201 = pneg %p195
      %p202 = scmp.eq.s32.totalorder %s20, 3
      %p203 = por %p201, %p202
      %p204 = scmp.ne.s32.totalorder %s196, %s199
      %p205 = scmp.eq.s32.totalorder %s20, 0
      %p206 = por %p204, %p205
      %p207 = scmp.ne.s32.totalorder %s196, %s199
      %p208 = scmp.eq.s32.totalorder %s25, 3
      %p209 = por %p207, %p208
      %p210 = scmp.ne.s32.totalorder %s199, %s200
      %p211 = scmp.eq.s32.totalorder %s25, 0
      %p212 = por %p210, %p211
      %p213 = scmp.ne.s32.totalorder %s199, %s200
      %p214 = scmp.eq.s32.totalorder %s26, 3
      %p215 = por %p213, %p214
      %p217 = scmp.ne.s32.totalorder %s200, %s216
      %p218 = scmp.eq.s32.totalorder %s26, 0
      %p219 = por %p217, %p218
      %p220 = scmp.le.s32.totalorder 1, %s20
      %p221 = scmp.lt.s32.totalorder %s20, 5
      %p222 = pnand %p220, %p221
      %p223 = pneg %p222
      // Predicated region
      $region9: #{tpu_custom_call.1} parent=5 // pred_check
        _
      $region10: #{tpu_custom_call.1} parent=5 // pred_check_branch
        %225 = sbr.rel (%p222) target = $region12
      $region11: #{tpu_custom_call.1} parent=5 // pred_region
        %s226 = ssub.s32 %s20, 1
        // Predicated region
        $region13: #{tpu_custom_call.1} parent=11 // pred_check
          %p227 = pneg %p79
        $region14: #{tpu_custom_call.1} parent=11 // pred_check_branch
          %229 = sbr.rel (%p227) target = $region16
        $region15: #{tpu_custom_call.1} parent=11 // pred_region
          _
        $region16: #{tpu_custom_call.1} parent=11 // pred_fallthru
          _
        // Predicated region
        $region17: #{tpu_custom_call.1} parent=11 // pred_check
          %p230 = pneg %p100
        $region18: #{tpu_custom_call.1} parent=11 // pred_check_branch
          %232 = sbr.rel (%p230) target = $region20
        $region19: #{tpu_custom_call.1} parent=11 // pred_region
          _
        $region20: #{tpu_custom_call.1} parent=11 // pred_fallthru
          _
        // Predicated region
        $region21: #{tpu_custom_call.1} parent=11 // pred_check
          %p233 = pneg %p121
        $region22: #{tpu_custom_call.1} parent=11 // pred_check_branch
          %235 = sbr.rel (%p233) target = $region24
        $region23: #{tpu_custom_call.1} parent=11 // pred_region
          %s237 = ssub.s32 4608, 4608
          %238 = vsyncadd [#allocation7], %s237
          %s239 = sshll.u32 [#allocation6], 4
          %s240 = int_to_ptr.vmem [resolvable:$true] %s239
          %245 = dma.hbm_to_vmem [thread:$0]  %s3, 4608, %s240, [#allocation7], 128, 128, 8
        $region24: #{tpu_custom_call.1} parent=11 // pred_fallthru
          _
        // Predicated region
        $region25: #{tpu_custom_call.1} parent=11 // pred_check
          %p246 = pneg %p142
        $region26: #{tpu_custom_call.1} parent=11 // pred_check_branch
          %248 = sbr.rel (%p246) target = $region28
        $region27: #{tpu_custom_call.1} parent=11 // pred_region
          _
        $region28: #{tpu_custom_call.1} parent=11 // pred_fallthru
          _
        // Predicated region
        $region29: #{tpu_custom_call.1} parent=11 // pred_check
          %p249 = pneg %p163
        $region30: #{tpu_custom_call.1} parent=11 // pred_check_branch
          %251 = sbr.rel (%p249) target = $region32
        $region31: #{tpu_custom_call.1} parent=11 // pred_region
          _
        $region32: #{tpu_custom_call.1} parent=11 // pred_fallthru
          _
        // Predicated region
        $region33: #{tpu_custom_call.1} parent=11 // pred_check
          %p252 = pneg %p184
        $region34: #{tpu_custom_call.1} parent=11 // pred_check_branch
          %254 = sbr.rel (%p252) target = $region36
        $region35: #{tpu_custom_call.1} parent=11 // pred_region
          _
        $region36: #{tpu_custom_call.1} parent=11 // pred_fallthru
          _
      $region12: #{tpu_custom_call.1} parent=5 // pred_fallthru
        _
      %p255 = scmp.lt.s32.totalorder %s20, 4
      // Predicated region
      $region37: #{tpu_custom_call.1} parent=5 // pred_check
        %p256 = pneg %p255
      $region38: #{tpu_custom_call.1} parent=5 // pred_check_branch
        %258 = sbr.rel (%p256) target = $region40
      $region39: #{tpu_custom_call.1} parent=5 // pred_region
        // Predicated region
        $region41: #{tpu_custom_call.1} parent=39 // pred_check
          %p259 = pneg %p52
        $region42: #{tpu_custom_call.1} parent=39 // pred_check_branch
          %261 = sbr.rel (%p259) target = $region44
        $region43: #{tpu_custom_call.1} parent=39 // pred_region
          %s262 = sand.u32 %s42, 1
          %s263 = scalar_lea.sflag [#allocation4], %s262
          %s264 = sand.u32 %s42, 1
          %s265 = smul.addr %s264, 256
          %s266 = scalar_lea.vmem [#allocation3], %s265
          %s268 = ssub.s32 4096, 4096
          %269 = vsyncadd %s263, %s268
          %s270 = smul.addr %s27, 32
          %s271 = smul.addr %s270, 128
          %s272 = scalar_lea.hbm %s0, %s271
          %s273 = sshll.u32 %s266, 4
          %s274 = int_to_ptr.vmem [resolvable:$true] %s273
          %279 = dma.hbm_to_vmem [thread:$0]  %s272, 4096, %s274, %s263, 128, 128, 8
        $region44: #{tpu_custom_call.1} parent=39 // pred_fallthru
          _
      $region40: #{tpu_custom_call.1} parent=5 // pred_fallthru
        _
      %p280 = scmp.le.s32.totalorder 1, %s20
      %p281 = scmp.lt.s32.totalorder %s20, 5
      %p282 = pnand %p280, %p281
      %p283 = pneg %p282
      // Predicated region
      $region45: #{tpu_custom_call.1} parent=5 // pred_check
        _
      $region46: #{tpu_custom_call.1} parent=5 // pred_check_branch
        %285 = sbr.rel (%p282) target = $region48
      $region47: #{tpu_custom_call.1} parent=5 // pred_region
        %s286 = ssub.s32 %s20, 1
        %s287 = sand.u32 %s45, 1
        %s288 = scalar_lea.sflag [#allocation4], %s287
        %s289 = sand.u32 %s45, 1
        %s290 = smul.addr %s289, 256
        %s291 = scalar_lea.vmem [#allocation3], %s290
        // Predicated region
        $region49: #{tpu_custom_call.1} parent=47 // pred_check
          %p292 = pneg %p58
        $region50: #{tpu_custom_call.1} parent=47 // pred_check_branch
          %294 = sbr.rel (%p292) target = $region52
        $region51: #{tpu_custom_call.1} parent=47 // pred_region
          %295 = dma.done %s288, 4096
        $region52: #{tpu_custom_call.1} parent=47 // pred_fallthru
          _
        // Predicated region
        $region53: #{tpu_custom_call.1} parent=47 // pred_check
          %p296 = pneg %p121
        $region54: #{tpu_custom_call.1} parent=47 // pred_check_branch
          %298 = sbr.rel (%p296) target = $region56
        $region55: #{tpu_custom_call.1} parent=47 // pred_region
          %299 = dma.done [#allocation7], 4608
        $region56: #{tpu_custom_call.1} parent=47 // pred_fallthru
          _
        %s300 = sand.u32 %s45, 1
        %s301 = scalar_lea.sflag [#allocation4], %s300
        %s302 = sand.u32 %s45, 1
        %s303 = smul.addr %s302, 256
        %s304 = scalar_lea.vmem [#allocation3], %s303
        %p305 = pneg %p58
        %p306 = pneg %p55
        %p307 = pneg %p79
        %p308 = pneg %p76
        %p309 = pneg %p100
        %p310 = pneg %p97
        %p311 = pneg %p121
        %p312 = pneg %p118
        %p313 = pneg %p142
        %p314 = pneg %p139
        %p315 = pneg %p163
        %p316 = pneg %p160
        %p317 = pneg %p184
        %p318 = pneg %p181
        %p319 = pneg %p212
        %p320 = pneg %p209
        %s321 = sand.u32 %s199, 1
        %s322 = scalar_lea.sflag [#allocation5], %s321
        %s323 = sand.u32 %s199, 1
        %s324 = smul.addr %s323, 128
        %s325 = scalar_lea.vmem [#allocation8], %s324
        %s326 = smul.u32 8, %s30
        %p327 = scmp.eq.s32.totalorder %s30, 0
        // Predicated region
        $region57: #{tpu_custom_call.1} parent=47 // pred_check
          %p328 = pneg %p327
        $region58: #{tpu_custom_call.1} parent=47 // pred_check_branch
          %330 = sbr.rel (%p328) target = $region60
        $region59: #{tpu_custom_call.1} parent=47 // pred_region
          %vm331 = vcmask 261120
          %332 = vst.msk [vmem:[#allocation2] sm:$0xff] %vm331, 0.0
          %333 = vst.msk [vmem:[#allocation2 + $0x8] sm:$0xff] %vm331, 0.0
          %vm334 = vcmask 254976
          %335 = vst.msk [vmem:[#allocation2 + $0x10] sm:$0x3] %vm334, 0.0
          %336 = vst.msk [vmem:[#allocation2 + $0x18] sm:$0xff] %vm331, 0.0
          %337 = vst.msk [vmem:[#allocation2 + $0x20] sm:$0xff] %vm331, 0.0
          %338 = vst.msk [vmem:[#allocation2 + $0x28] sm:$0x3] %vm334, 0.0
          %339 = vst.msk [vmem:[#allocation2 + $0x30] sm:$0xff] %vm331, 0.0
          %340 = vst.msk [vmem:[#allocation2 + $0x38] sm:$0xff] %vm331, 0.0
          %341 = vst.msk [vmem:[#allocation2 + $0x40] sm:$0x3] %vm334, 0.0
          %342 = vst.msk [vmem:[#allocation2 + $0x48] sm:$0xff] %vm331, 0.0
          %343 = vst.msk [vmem:[#allocation2 + $0x50] sm:$0xff] %vm331, 0.0
          %344 = vst.msk [vmem:[#allocation2 + $0x58] sm:$0x3] %vm334, 0.0
          %345 = vst.msk [vmem:[#allocation2 + $0x60] sm:$0xff] %vm331, 0.0
          %346 = vst.msk [vmem:[#allocation2 + $0x68] sm:$0xff] %vm331, 0.0
          %347 = vst.msk [vmem:[#allocation2 + $0x70] sm:$0x3] %vm334, 0.0
          %348 = vst.msk [vmem:[#allocation2 + $0x78] sm:$0xff] %vm331, 0.0
          %349 = vst.msk [vmem:[#allocation2 + $0x80] sm:$0xff] %vm331, 0.0
          %350 = vst.msk [vmem:[#allocation2 + $0x88] sm:$0x3] %vm334, 0.0
          %351 = vst.msk [vmem:[#allocation2 + $0x90] sm:$0xff] %vm331, 0.0
          %352 = vst.msk [vmem:[#allocation2 + $0x98] sm:$0xff] %vm331, 0.0
          %353 = vst.msk [vmem:[#allocation2 + $0xa0] sm:$0x3] %vm334, 0.0
          %354 = vst.msk [vmem:[#allocation2 + $0xa8] sm:$0xff] %vm331, 0.0
          %355 = vst.msk [vmem:[#allocation2 + $0xb0] sm:$0xff] %vm331, 0.0
          %356 = vst.msk [vmem:[#allocation2 + $0xb8] sm:$0x3] %vm334, 0.0
          %357 = vst.msk [vmem:[#allocation2 + $0xc0] sm:$0xff] %vm331, 0.0
          %358 = vst.msk [vmem:[#allocation2 + $0xc8] sm:$0xff] %vm331, 0.0
          %359 = vst.msk [vmem:[#allocation2 + $0xd0] sm:$0x3] %vm334, 0.0
          %360 = vst.msk [vmem:[#allocation2 + $0xd8] sm:$0xff] %vm331, 0.0
          %361 = vst.msk [vmem:[#allocation2 + $0xe0] sm:$0xff] %vm331, 0.0
          %362 = vst.msk [vmem:[#allocation2 + $0xe8] sm:$0x3] %vm334, 0.0
          %363 = vst.msk [vmem:[#allocation2 + $0xf0] sm:$0xff] %vm331, 0.0
          %364 = vst.msk [vmem:[#allocation2 + $0xf8] sm:$0xff] %vm331, 0.0
          %365 = vst.msk [vmem:[#allocation2 + $0x100] sm:$0x3] %vm334, 0.0
          %366 = vst.msk [vmem:[#allocation2 + $0x108] sm:$0xff] %vm331, 0.0
          %367 = vst.msk [vmem:[#allocation2 + $0x110] sm:$0xff] %vm331, 0.0
          %368 = vst.msk [vmem:[#allocation2 + $0x118] sm:$0x3] %vm334, 0.0
          %369 = vst.msk [vmem:[#allocation2 + $0x120] sm:$0xff] %vm331, 0.0
          %370 = vst.msk [vmem:[#allocation2 + $0x128] sm:$0xff] %vm331, 0.0
          %371 = vst.msk [vmem:[#allocation2 + $0x130] sm:$0x3] %vm334, 0.0
          %372 = vst.msk [vmem:[#allocation2 + $0x138] sm:$0xff] %vm331, 0.0
          %373 = vst.msk [vmem:[#allocation2 + $0x140] sm:$0xff] %vm331, 0.0
          %374 = vst.msk [vmem:[#allocation2 + $0x148] sm:$0x3] %vm334, 0.0
          %375 = vst.msk [vmem:[#allocation2 + $0x150] sm:$0xff] %vm331, 0.0
          %376 = vst.msk [vmem:[#allocation2 + $0x158] sm:$0xff] %vm331, 0.0
          %377 = vst.msk [vmem:[#allocation2 + $0x160] sm:$0x3] %vm334, 0.0
          %378 = vst.msk [vmem:[#allocation2 + $0x168] sm:$0xff] %vm331, 0.0
          %379 = vst.msk [vmem:[#allocation2 + $0x170] sm:$0xff] %vm331, 0.0
          %380 = vst.msk [vmem:[#allocation2 + $0x178] sm:$0x3] %vm334, 0.0
          %381 = vst.msk [vmem:[#allocation2 + $0x180] sm:$0xff] %vm331, 0.0
          %382 = vst.msk [vmem:[#allocation2 + $0x188] sm:$0xff] %vm331, 0.0
          %383 = vst.msk [vmem:[#allocation2 + $0x190] sm:$0x3] %vm334, 0.0
          %384 = vst.msk [vmem:[#allocation2 + $0x198] sm:$0xff] %vm331, 0.0
          %385 = vst.msk [vmem:[#allocation2 + $0x1a0] sm:$0xff] %vm331, 0.0
          %386 = vst.msk [vmem:[#allocation2 + $0x1a8] sm:$0x3] %vm334, 0.0
          %v387 = vld [vmem:[%s291] sm:$0xff]
          %v388 = vld [vmem:[%s291 + $0x8] sm:$0xff]
          %v389 = vld [vmem:[%s291 + $0x10] sm:$0xff]
          %v390 = vld [vmem:[%s291 + $0x18] sm:$0xff]
          %v391 = vld [vmem:[%s291 + $0x20] sm:$0xff]
          %v392 = vld [vmem:[%s291 + $0x28] sm:$0xff]
          %v393 = vld [vmem:[%s291 + $0x30] sm:$0xff]
          %v394 = vld [vmem:[%s291 + $0x38] sm:$0xff]
          %v395 = vld [vmem:[%s291 + $0x40] sm:$0xff]
          %v396 = vld [vmem:[%s291 + $0x48] sm:$0xff]
          %v397 = vld [vmem:[%s291 + $0x50] sm:$0xff]
          %v398 = vld [vmem:[%s291 + $0x58] sm:$0xff]
          %v399 = vld [vmem:[%s291 + $0x60] sm:$0xff]
          %v400 = vld [vmem:[%s291 + $0x68] sm:$0xff]
          %v401 = vld [vmem:[%s291 + $0x70] sm:$0xff]
          %v402 = vld [vmem:[%s291 + $0x78] sm:$0xff]
          %v403 = vld [vmem:[%s291 + $0x80] sm:$0xff]
          %v404 = vld [vmem:[%s291 + $0x88] sm:$0xff]
          %v405 = vld [vmem:[%s291 + $0x90] sm:$0xff]
          %v406 = vld [vmem:[%s291 + $0x98] sm:$0xff]
          %v407 = vld [vmem:[%s291 + $0xa0] sm:$0xff]
          %v408 = vld [vmem:[%s291 + $0xa8] sm:$0xff]
          %v409 = vld [vmem:[%s291 + $0xb0] sm:$0xff]
          %v410 = vld [vmem:[%s291 + $0xb8] sm:$0xff]
          %v411 = vld [vmem:[%s291 + $0xc0] sm:$0xff]
          %v412 = vld [vmem:[%s291 + $0xc8] sm:$0xff]
          %v413 = vld [vmem:[%s291 + $0xd0] sm:$0xff]
          %v414 = vld [vmem:[%s291 + $0xd8] sm:$0xff]
          %v415 = vld [vmem:[%s291 + $0xe0] sm:$0xff]
          %v416 = vld [vmem:[%s291 + $0xe8] sm:$0xff]
          %v417 = vld [vmem:[%s291 + $0xf0] sm:$0xff]
          %v418 = vld [vmem:[%s291 + $0xf8] sm:$0xff]
          %v419 = vld [vmem:[%s1] sm:$0xff]
          %v420 = vld [vmem:[%s1 + $0x8] sm:$0xff]
          %v421 = vld [vmem:[%s1 + $0x10] sm:$0xff]
          %v422 = vld [vmem:[%s1 + $0x18] sm:$0xff]
          %v423 = vld [vmem:[%s1 + $0x20] sm:$0xff]
          %v424 = vld [vmem:[%s1 + $0x28] sm:$0xff]
          %v425 = vld [vmem:[%s1 + $0x30] sm:$0xff]
          %v426 = vld [vmem:[%s1 + $0x38] sm:$0xff]
          %v427 = vld [vmem:[%s1 + $0x40] sm:$0xff]
          %v428 = vld [vmem:[%s1 + $0x48] sm:$0xff]
          %v429 = vld [vmem:[%s1 + $0x50] sm:$0xff]
          %v430 = vld [vmem:[%s1 + $0x58] sm:$0xff]
          %v431 = vld [vmem:[%s1 + $0x60] sm:$0xff]
          %v432 = vld [vmem:[%s1 + $0x68] sm:$0xff]
          %v433 = vld [vmem:[%s1 + $0x70] sm:$0xff]
          %v434 = vld [vmem:[%s1 + $0x78] sm:$0xff]
          %v435 = vld [vmem:[%s2] sm:$0x1]
          %v437 = vlaneseq
          %v438 = vshrl.u32 %v437, 7
          %v439 = vsub.s32 0, %v438
          %v440 = vrot.slane %v435, %v439
          %442 = vmatprep.subr.mxu0 0.0
          %443 = vmatpush1.msra.mxu0 %v419
          %444 = vmatprep.subr.mxu0 0.0
          %445 = vmatpush1.msra.mxu0 %v420
          %446 = vmatprep.subr.mxu0 0.0
          %447 = vmatpush1.msra.mxu0 %v421
          %448 = vmatprep.subr.mxu0 0.0
          %449 = vmatpush1.msra.mxu0 %v422
          %450 = vmatprep.subr.mxu0 0.0
          %451 = vmatpush1.msra.mxu0 %v423
          %452 = vmatprep.subr.mxu0 0.0
          %453 = vmatpush1.msra.mxu0 %v424
          %454 = vmatprep.subr.mxu0 0.0
          %455 = vmatpush1.msra.mxu0 %v425
          %456 = vmatprep.subr.mxu0 0.0
          %457 = vmatpush1.msra.mxu0 %v426
          %458 = vmatprep.subr.mxu0 0.0
          %459 = vmatpush1.msra.mxu0 %v427
          %460 = vmatprep.subr.mxu0 0.0
          %461 = vmatpush1.msra.mxu0 %v428
          %462 = vmatprep.subr.mxu0 0.0
          %463 = vmatpush1.msra.mxu0 %v429
          %464 = vmatprep.subr.mxu0 0.0
          %465 = vmatpush1.msra.mxu0 %v430
          %466 = vmatprep.subr.mxu0 0.0
          %467 = vmatpush1.msra.mxu0 %v431
          %468 = vmatprep.subr.mxu0 0.0
          %469 = vmatpush1.msra.mxu0 %v432
          %470 = vmatprep.subr.mxu0 0.0
          %471 = vmatpush1.msra.mxu0 %v433
          %472 = vmatprep.subr.mxu0 0.0
          %473 = vmatpush1.msra.mxu0 %v434
          %474 = vmatprep.subr.mxu0 0.0
          %475 = vmatpush1.msra.mxu0 0.0
          %476 = vmatprep.subr.mxu0 0.0
          %477 = vmatpush1.msra.mxu0 0.0
          %478 = vmatprep.subr.mxu0 0.0
          %479 = vmatpush1.msra.mxu0 0.0
          %480 = vmatprep.subr.mxu0 0.0
          %481 = vmatpush1.msra.mxu0 0.0
          %482 = vmatprep.subr.mxu0 0.0
          %483 = vmatpush1.msra.mxu0 0.0
          %484 = vmatprep.subr.mxu0 0.0
          %485 = vmatpush1.msra.mxu0 0.0
          %486 = vmatprep.subr.mxu0 0.0
          %487 = vmatpush1.msra.mxu0 0.0
          %488 = vmatprep.subr.mxu0 0.0
          %489 = vmatpush1.msra.mxu0 0.0
          %490 = vmatprep.subr.mxu0 0.0
          %491 = vmatpush1.msra.mxu0 0.0
          %492 = vmatprep.subr.mxu0 0.0
          %493 = vmatpush1.msra.mxu0 0.0
          %494 = vmatprep.subr.mxu0 0.0
          %495 = vmatpush1.msra.mxu0 0.0
          %496 = vmatprep.subr.mxu0 0.0
          %497 = vmatpush1.msra.mxu0 0.0
          %498 = vmatprep.subr.mxu0 0.0
          %499 = vmatpush1.msra.mxu0 0.0
          %500 = vmatprep.subr.mxu0 0.0
          %501 = vmatpush1.msra.mxu0 0.0
          %502 = vmatprep.subr.mxu0 0.0
          %503 = vmatpush1.msra.mxu0 0.0
          %504 = vmatprep.subr.mxu0 0.0
          %505 = vmatpush1.msra.mxu0 0.0
          %506 = vmatprep.mubr.f32.mxu0 0.0
          %507 = vmatmul.mubr.f32.gmra.mrb[0].mxu0 %v387
          %v508 = vpop.f32.mrb[0].mxu0
          %v509 = vadd.f32 %v440, %v508
          %v510 = vpop.f32.mrb[0].mxu0
          %511 = vmatprep.mubr.f32.mxu0 0.0
          %512 = vmatmul.mubr.f32.gmra.mrb[0].mxu0 %v388
          %v513 = vpop.f32.mrb[0].mxu0
          %v514 = vadd.f32 %v440, %v513
          %v515 = vpop.f32.mrb[0].mxu0
          %516 = vmatprep.mubr.f32.mxu0 0.0
          %517 = vmatmul.mubr.f32.gmra.mrb[0].mxu0 %v389
          %v518 = vpop.f32.mrb[0].mxu0
          %v519 = vadd.f32 %v440, %v518
          %v520 = vpop.f32.mrb[0].mxu0
          %521 = vmatprep.mubr.f32.mxu0 0.0
          %522 = vmatmul.mubr.f32.gmra.mrb[0].mxu0 %v390
          %v523 = vpop.f32.mrb[0].mxu0
          %v524 = vadd.f32 %v440, %v523
          %v525 = vpop.f32.mrb[0].mxu0
          %526 = vmatprep.mubr.f32.mxu0 0.0
          %527 = vmatmul.mubr.f32.gmra.mrb[0].mxu0 %v391
          %v528 = vpop.f32.mrb[0].mxu0
          %v529 = vadd.f32 %v440, %v528
          %v530 = vpop.f32.mrb[0].mxu0
          %531 = vmatprep.mubr.f32.mxu0 0.0
          %532 = vmatmul.mubr.f32.gmra.mrb[0].mxu0 %v392
          %v533 = vpop.f32.mrb[0].mxu0
          %v534 = vadd.f32 %v440, %v533
          %v535 = vpop.f32.mrb[0].mxu0
          %536 = vmatprep.mubr.f32.mxu0 0.0
          %537 = vmatmul.mubr.f32.gmra.mrb[0].mxu0 %v393
          %v538 = vpop.f32.mrb[0].mxu0
          %v539 = vadd.f32 %v440, %v538
          %v540 = vpop.f32.mrb[0].mxu0
          %541 = vmatprep.mubr.f32.mxu0 0.0
          %542 = vmatmul.mubr.f32.gmra.mrb[0].mxu0 %v394
          %v543 = vpop.f32.mrb[0].mxu0
          %v544 = vadd.f32 %v440, %v543
          %v545 = vpop.f32.mrb[0].mxu0
          %546 = vmatprep.mubr.f32.mxu0 0.0
          %547 = vmatmul.mubr.f32.gmra.mrb[0].mxu0 %v395
          %v548 = vpop.f32.mrb[0].mxu0
          %v549 = vadd.f32 %v440, %v548
          %v550 = vpop.f32.mrb[0].mxu0
          %551 = vmatprep.mubr.f32.mxu0 0.0
          %552 = vmatmul.mubr.f32.gmra.mrb[0].mxu0 %v396
          %v553 = vpop.f32.mrb[0].mxu0
          %v554 = vadd.f32 %v440, %v553
          %v555 = vpop.f32.mrb[0].mxu0
          %556 = vmatprep.mubr.f32.mxu0 0.0
          %557 = vmatmul.mubr.f32.gmra.mrb[0].mxu0 %v397
          %v558 = vpop.f32.mrb[0].mxu0
          %v559 = vadd.f32 %v440, %v558
          %v560 = vpop.f32.mrb[0].mxu0
          %561 = vmatprep.mubr.f32.mxu0 0.0
          %562 = vmatmul.mubr.f32.gmra.mrb[0].mxu0 %v398
          %v563 = vpop.f32.mrb[0].mxu0
          %v564 = vadd.f32 %v440, %v563
          %v565 = vpop.f32.mrb[0].mxu0
          %566 = vmatprep.mubr.f32.mxu0 0.0
          %567 = vmatmul.mubr.f32.gmra.mrb[0].mxu0 %v399
          %v568 = vpop.f32.mrb[0].mxu0
          %v569 = vadd.f32 %v440, %v568
          %v570 = vpop.f32.mrb[0].mxu0
          %571 = vmatprep.mubr.f32.mxu0 0.0
          %572 = vmatmul.mubr.f32.gmra.mrb[0].mxu0 %v400
          %v573 = vpop.f32.mrb[0].mxu0
          %v574 = vadd.f32 %v440, %v573
          %v575 = vpop.f32.mrb[0].mxu0
          %576 = vmatprep.mubr.f32.mxu0 0.0
          %577 = vmatmul.mubr.f32.gmra.mrb[0].mxu0 %v401
          %v578 = vpop.f32.mrb[0].mxu0
          %v579 = vadd.f32 %v440, %v578
          %v580 = vpop.f32.mrb[0].mxu0
          %581 = vmatprep.mubr.f32.mxu0 0.0
          %582 = vmatmul.mubr.f32.gmra.mrb[0].mxu0 %v402
          %v583 = vpop.f32.mrb[0].mxu0
          %v584 = vadd.f32 %v440, %v583
          %v585 = vpop.f32.mrb[0].mxu0
          %586 = vmatprep.mubr.f32.mxu0 0.0
          %587 = vmatmul.mubr.f32.gmra.mrb[0].mxu0 %v403
          %v588 = vpop.f32.mrb[0].mxu0
          %v589 = vadd.f32 %v440, %v588
          %v590 = vpop.f32.mrb[0].mxu0
          %591 = vmatprep.mubr.f32.mxu0 0.0
          %592 = vmatmul.mubr.f32.gmra.mrb[0].mxu0 %v404
          %v593 = vpop.f32.mrb[0].mxu0
          %v594 = vadd.f32 %v440, %v593
          %v595 = vpop.f32.mrb[0].mxu0
          %596 = vmatprep.mubr.f32.mxu0 0.0
          %597 = vmatmul.mubr.f32.gmra.mrb[0].mxu0 %v405
          %v598 = vpop.f32.mrb[0].mxu0
          %v599 = vadd.f32 %v440, %v598
          %v600 = vpop.f32.mrb[0].mxu0
          %601 = vmatprep.mubr.f32.mxu0 0.0
          %602 = vmatmul.mubr.f32.gmra.mrb[0].mxu0 %v406
          %v603 = vpop.f32.mrb[0].mxu0
          %v604 = vadd.f32 %v440, %v603
          %v605 = vpop.f32.mrb[0].mxu0
          %606 = vmatprep.mubr.f32.mxu0 0.0
          %607 = vmatmul.mubr.f32.gmra.mrb[0].mxu0 %v407
          %v608 = vpop.f32.mrb[0].mxu0
          %v609 = vadd.f32 %v440, %v608
          %v610 = vpop.f32.mrb[0].mxu0
          %611 = vmatprep.mubr.f32.mxu0 0.0
          %612 = vmatmul.mubr.f32.gmra.mrb[0].mxu0 %v408
          %v613 = vpop.f32.mrb[0].mxu0
          %v614 = vadd.f32 %v440, %v613
          %v615 = vpop.f32.mrb[0].mxu0
          %616 = vmatprep.mubr.f32.mxu0 0.0
          %617 = vmatmul.mubr.f32.gmra.mrb[0].mxu0 %v409
          %v618 = vpop.f32.mrb[0].mxu0
          %v619 = vadd.f32 %v440, %v618
          %v620 = vpop.f32.mrb[0].mxu0
          %621 = vmatprep.mubr.f32.mxu0 0.0
          %622 = vmatmul.mubr.f32.gmra.mrb[0].mxu0 %v410
          %v623 = vpop.f32.mrb[0].mxu0
          %v624 = vadd.f32 %v440, %v623
          %v625 = vpop.f32.mrb[0].mxu0
          %626 = vmatprep.mubr.f32.mxu0 0.0
          %627 = vmatmul.mubr.f32.gmra.mrb[0].mxu0 %v411
          %v628 = vpop.f32.mrb[0].mxu0
          %v629 = vadd.f32 %v440, %v628
          %v630 = vpop.f32.mrb[0].mxu0
          %631 = vmatprep.mubr.f32.mxu0 0.0
          %632 = vmatmul.mubr.f32.gmra.mrb[0].mxu0 %v412
          %v633 = vpop.f32.mrb[0].mxu0
          %v634 = vadd.f32 %v440, %v633
          %v635 = vpop.f32.mrb[0].mxu0
          %636 = vmatprep.mubr.f32.mxu0 0.0
          %637 = vmatmul.mubr.f32.gmra.mrb[0].mxu0 %v413
          %v638 = vpop.f32.mrb[0].mxu0
          %v639 = vadd.f32 %v440, %v638
          %v640 = vpop.f32.mrb[0].mxu0
          %641 = vmatprep.mubr.f32.mxu0 0.0
          %642 = vmatmul.mubr.f32.gmra.mrb[0].mxu0 %v414
          %v643 = vpop.f32.mrb[0].mxu0
          %v644 = vadd.f32 %v440, %v643
          %v645 = vpop.f32.mrb[0].mxu0
          %646 = vmatprep.mubr.f32.mxu0 0.0
          %647 = vmatmul.mubr.f32.gmra.mrb[0].mxu0 %v415
          %v648 = vpop.f32.mrb[0].mxu0
          %v649 = vadd.f32 %v440, %v648
          %v650 = vpop.f32.mrb[0].mxu0
          %651 = vmatprep.mubr.f32.mxu0 0.0
          %652 = vmatmul.mubr.f32.gmra.mrb[0].mxu0 %v416
          %v653 = vpop.f32.mrb[0].mxu0
          %v654 = vadd.f32 %v440, %v653
          %v655 = vpop.f32.mrb[0].mxu0
          %656 = vmatprep.mubr.f32.mxu0 0.0
          %657 = vmatmul.mubr.f32.gmra.mrb[0].mxu0 %v417
          %v658 = vpop.f32.mrb[0].mxu0
          %v659 = vadd.f32 %v440, %v658
          %v660 = vpop.f32.mrb[0].mxu0
          %661 = vmatprep.mubr.f32.mxu0 0.0
          %662 = vmatmul.mubr.f32.gmra.mrb[0].mxu0 %v418
          %v663 = vpop.f32.mrb[0].mxu0
          %v664 = vadd.f32 %v440, %v663
          %v665 = vpop.f32.mrb[0].mxu0
          %666 = vdwg.mxu0
          %v667 = vmax.f32 %v509, 0.0
          %v668 = vmax.f32 %v514, 0.0
          %v669 = vmax.f32 %v519, 0.0
          %v670 = vmax.f32 %v524, 0.0
          %v671 = vmax.f32 %v529, 0.0
          %v672 = vmax.f32 %v534, 0.0
          %v673 = vmax.f32 %v539, 0.0
          %v674 = vmax.f32 %v544, 0.0
          %v675 = vmax.f32 %v549, 0.0
          %v676 = vmax.f32 %v554, 0.0
          %v677 = vmax.f32 %v559, 0.0
          %v678 = vmax.f32 %v564, 0.0
          %v679 = vmax.f32 %v569, 0.0
          %v680 = vmax.f32 %v574, 0.0
          %v681 = vmax.f32 %v579, 0.0
          %v682 = vmax.f32 %v584, 0.0
          %v683 = vmax.f32 %v589, 0.0
          %v684 = vmax.f32 %v594, 0.0
          %v685 = vmax.f32 %v599, 0.0
          %v686 = vmax.f32 %v604, 0.0
          %v687 = vmax.f32 %v609, 0.0
          %v688 = vmax.f32 %v614, 0.0
          %v689 = vmax.f32 %v619, 0.0
          %v690 = vmax.f32 %v624, 0.0
          %v691 = vmax.f32 %v629, 0.0
          %v692 = vmax.f32 %v634, 0.0
          %v693 = vmax.f32 %v639, 0.0
          %v694 = vmax.f32 %v644, 0.0
          %v695 = vmax.f32 %v649, 0.0
          %v696 = vmax.f32 %v654, 0.0
          %v697 = vmax.f32 %v659, 0.0
          %v698 = vmax.f32 %v664, 0.0
          %s699 = scalar_lea.vmem [#allocation2], 24
          %700 = vst.msk [vmem:[%s699 + $0x1] sm:$0xff] %vm331, %v667
          %701 = vst.msk [vmem:[%s699 + $0x9] sm:$0xff] %vm331, %v668
          %702 = vst.msk [vmem:[%s699 + $0x19] sm:$0xff] %vm331, %v669
          %703 = vst.msk [vmem:[%s699 + $0x21] sm:$0xff] %vm331, %v670
          %704 = vst.msk [vmem:[%s699 + $0x31] sm:$0xff] %vm331, %v671
          %705 = vst.msk [vmem:[%s699 + $0x39] sm:$0xff] %vm331, %v672
          %706 = vst.msk [vmem:[%s699 + $0x49] sm:$0xff] %vm331, %v673
          %707 = vst.msk [vmem:[%s699 + $0x51] sm:$0xff] %vm331, %v674
          %708 = vst.msk [vmem:[%s699 + $0x61] sm:$0xff] %vm331, %v675
          %709 = vst.msk [vmem:[%s699 + $0x69] sm:$0xff] %vm331, %v676
          %710 = vst.msk [vmem:[%s699 + $0x79] sm:$0xff] %vm331, %v677
          %711 = vst.msk [vmem:[%s699 + $0x81] sm:$0xff] %vm331, %v678
          %712 = vst.msk [vmem:[%s699 + $0x91] sm:$0xff] %vm331, %v679
          %713 = vst.msk [vmem:[%s699 + $0x99] sm:$0xff] %vm331, %v680
          %714 = vst.msk [vmem:[%s699 + $0xa9] sm:$0xff] %vm331, %v681
          %715 = vst.msk [vmem:[%s699 + $0xb1] sm:$0xff] %vm331, %v682
          %716 = vst.msk [vmem:[%s699 + $0xc1] sm:$0xff] %vm331, %v683
          %717 = vst.msk [vmem:[%s699 + $0xc9] sm:$0xff] %vm331, %v684
          %718 = vst.msk [vmem:[%s699 + $0xd9] sm:$0xff] %vm331, %v685
          %719 = vst.msk [vmem:[%s699 + $0xe1] sm:$0xff] %vm331, %v686
          %720 = vst.msk [vmem:[%s699 + $0xf1] sm:$0xff] %vm331, %v687
          %721 = vst.msk [vmem:[%s699 + $0xf9] sm:$0xff] %vm331, %v688
          %722 = vst.msk [vmem:[%s699 + $0x109] sm:$0xff] %vm331, %v689
          %723 = vst.msk [vmem:[%s699 + $0x111] sm:$0xff] %vm331, %v690
          %724 = vst.msk [vmem:[%s699 + $0x121] sm:$0xff] %vm331, %v691
          %725 = vst.msk [vmem:[%s699 + $0x129] sm:$0xff] %vm331, %v692
          %726 = vst.msk [vmem:[%s699 + $0x139] sm:$0xff] %vm331, %v693
          %727 = vst.msk [vmem:[%s699 + $0x141] sm:$0xff] %vm331, %v694
          %728 = vst.msk [vmem:[%s699 + $0x151] sm:$0xff] %vm331, %v695
          %729 = vst.msk [vmem:[%s699 + $0x159] sm:$0xff] %vm331, %v696
          %730 = vst.msk [vmem:[%s699 + $0x169] sm:$0xff] %vm331, %v697
          %731 = vst.msk [vmem:[%s699 + $0x171] sm:$0xff] %vm331, %v698
        $region60: #{tpu_custom_call.1} parent=47 // pred_fallthru
          _
        %s732 = smul.u32 %s30, 8
        %s733 = smul.u32 %s732, 24
        %s734 = scalar_lea.vmem [#allocation2], %s733
        %v735 = vld [vmem:[%s734] sm:$0xff]
        %v736 = vld [vmem:[%s734 + $0x8] sm:$0xff]
        %v737 = vld [vmem:[%s734 + $0x18] sm:$0xff]
        %v738 = vld [vmem:[%s734 + $0x20] sm:$0xff]
        %v739 = vld [vmem:[%s734 + $0x30] sm:$0xff]
        %v740 = vld [vmem:[%s734 + $0x38] sm:$0xff]
        %v741 = vld [vmem:[%s734 + $0x48] sm:$0xff]
        %v742 = vld [vmem:[%s734 + $0x50] sm:$0xff]
        %v743 = vld [vmem:[%s734 + $0x60] sm:$0xff]
        %v744 = vld [vmem:[%s734 + $0x68] sm:$0xff]
        %v745 = vld [vmem:[%s734 + $0x78] sm:$0xff]
        %v746 = vld [vmem:[%s734 + $0x80] sm:$0xff]
        %v747 = vld [vmem:[%s734 + $0x90] sm:$0xff]
        %v748 = vld [vmem:[%s734 + $0x98] sm:$0xff]
        %v749 = vld [vmem:[%s734 + $0xa8] sm:$0xff]
        %v750 = vld [vmem:[%s734 + $0xb0] sm:$0xff]
        %v751 = vld [vmem:[#allocation6] sm:$0xff]
        %v752 = vld [vmem:[#allocation6 + $0x8] sm:$0xff]
        %v753 = vld [vmem:[#allocation6 + $0x10] sm:$0xff]
        %v754 = vld [vmem:[#allocation6 + $0x18] sm:$0xff]
        %v755 = vld [vmem:[%s734 + $0x1] sm:$0xff]
        %v756 = vld [vmem:[%s734 + $0x9] sm:$0xff]
        %v757 = vld [vmem:[%s734 + $0x19] sm:$0xff]
        %v758 = vld [vmem:[%s734 + $0x21] sm:$0xff]
        %v759 = vld [vmem:[%s734 + $0x31] sm:$0xff]
        %v760 = vld [vmem:[%s734 + $0x39] sm:$0xff]
        %v761 = vld [vmem:[%s734 + $0x49] sm:$0xff]
        %v762 = vld [vmem:[%s734 + $0x51] sm:$0xff]
        %v763 = vld [vmem:[%s734 + $0x61] sm:$0xff]
        %v764 = vld [vmem:[%s734 + $0x69] sm:$0xff]
        %v765 = vld [vmem:[%s734 + $0x79] sm:$0xff]
        %v766 = vld [vmem:[%s734 + $0x81] sm:$0xff]
        %v767 = vld [vmem:[%s734 + $0x91] sm:$0xff]
        %v768 = vld [vmem:[%s734 + $0x99] sm:$0xff]
        %v769 = vld [vmem:[%s734 + $0xa9] sm:$0xff]
        %v770 = vld [vmem:[%s734 + $0xb1] sm:$0xff]
        %s771 = scalar_lea.vmem [#allocation6], 32
        %v772 = vld [vmem:[%s771] sm:$0xff]
        %v773 = vld [vmem:[%s771 + $0x8] sm:$0xff]
        %v774 = vld [vmem:[%s771 + $0x10] sm:$0xff]
        %v775 = vld [vmem:[%s771 + $0x18] sm:$0xff]
        %vm776 = vcmask 261120
        %v778 = vsel %vm776, %v755, 0
        %v781 = vsel %vm776, %v756, 0
        %v784 = vsel %vm776, %v757, 0
        %v787 = vsel %vm776, %v758, 0
        %v790 = vsel %vm776, %v759, 0
        %v793 = vsel %vm776, %v760, 0
        %v796 = vsel %vm776, %v761, 0
        %v799 = vsel %vm776, %v762, 0
        %v802 = vsel %vm776, %v763, 0
        %v805 = vsel %vm776, %v764, 0
        %v808 = vsel %vm776, %v765, 0
        %v811 = vsel %vm776, %v766, 0
        %v814 = vsel %vm776, %v767, 0
        %v817 = vsel %vm776, %v768, 0
        %v820 = vsel %vm776, %v769, 0
        %v823 = vsel %vm776, %v770, 0
        %825 = vmatprep.subr.mxu0 0.0
        %826 = vmatpush1.msra.mxu0 %v772
        %827 = vmatprep.subr.mxu0 0.0
        %828 = vmatpush1.msra.mxu0 %v773
        %829 = vmatprep.subr.mxu0 0.0
        %830 = vmatpush1.msra.mxu0 %v774
        %831 = vmatprep.subr.mxu0 0.0
        %832 = vmatpush1.msra.mxu0 %v775
        %833 = vmatprep.subr.mxu0 0.0
        %834 = vmatpush1.msra.mxu0 0.0
        %835 = vmatprep.subr.mxu0 0.0
        %836 = vmatpush1.msra.mxu0 0.0
        %837 = vmatprep.subr.mxu0 0.0
        %838 = vmatpush1.msra.mxu0 0.0
        %839 = vmatprep.subr.mxu0 0.0
        %840 = vmatpush1.msra.mxu0 0.0
        %841 = vmatprep.subr.mxu0 0.0
        %842 = vmatpush1.msra.mxu0 0.0
        %843 = vmatprep.subr.mxu0 0.0
        %844 = vmatpush1.msra.mxu0 0.0
        %845 = vmatprep.subr.mxu0 0.0
        %846 = vmatpush1.msra.mxu0 0.0
        %847 = vmatprep.subr.mxu0 0.0
        %848 = vmatpush1.msra.mxu0 0.0
        %849 = vmatprep.subr.mxu0 0.0
        %850 = vmatpush1.msra.mxu0 0.0
        %851 = vmatprep.subr.mxu0 0.0
        %852 = vmatpush1.msra.mxu0 0.0
        %853 = vmatprep.subr.mxu0 0.0
        %854 = vmatpush1.msra.mxu0 0.0
        %855 = vmatprep.subr.mxu0 0.0
        %856 = vmatpush1.msra.mxu0 0.0
        %857 = vmatprep.subr.mxu0 0.0
        %858 = vmatpush1.msra.mxu0 0.0
        %859 = vmatprep.subr.mxu0 0.0
        %860 = vmatpush1.msra.mxu0 0.0
        %861 = vmatprep.subr.mxu0 0.0
        %862 = vmatpush1.msra.mxu0 0.0
        %863 = vmatprep.subr.mxu0 0.0
        %864 = vmatpush1.msra.mxu0 0.0
        %865 = vmatprep.subr.mxu0 0.0
        %866 = vmatpush1.msra.mxu0 0.0
        %867 = vmatprep.subr.mxu0 0.0
        %868 = vmatpush1.msra.mxu0 0.0
        %869 = vmatprep.subr.mxu0 0.0
        %870 = vmatpush1.msra.mxu0 0.0
        %871 = vmatprep.subr.mxu0 0.0
        %872 = vmatpush1.msra.mxu0 0.0
        %873 = vmatprep.subr.mxu0 0.0
        %874 = vmatpush1.msra.mxu0 0.0
        %875 = vmatprep.subr.mxu0 0.0
        %876 = vmatpush1.msra.mxu0 0.0
        %877 = vmatprep.subr.mxu0 0.0
        %878 = vmatpush1.msra.mxu0 0.0
        %879 = vmatprep.subr.mxu0 0.0
        %880 = vmatpush1.msra.mxu0 0.0
        %881 = vmatprep.subr.mxu0 0.0
        %882 = vmatpush1.msra.mxu0 0.0
        %883 = vmatprep.subr.mxu0 0.0
        %884 = vmatpush1.msra.mxu0 0.0
        %885 = vmatprep.subr.mxu0 0.0
        %886 = vmatpush1.msra.mxu0 0.0
        %887 = vmatprep.subr.mxu0 0.0
        %888 = vmatpush1.msra.mxu0 0.0
        %889 = vmatprep.mubr.f32.mxu0 0.0
        %890 = vmatmul.mubr.f32.gmra.mrb[0].mxu0 %v778
        %v891 = vpop.f32.mrb[0].mxu0
        %v892 = vadd.f32 0.0, %v891
        %v893 = vpop.f32.mrb[0].mxu0
        %894 = vmatprep.mubr.f32.mxu0 0.0
        %895 = vmatmul.mubr.f32.gmra.mrb[0].mxu0 %v781
        %v896 = vpop.f32.mrb[0].mxu0
        %v897 = vadd.f32 0.0, %v896
        %v898 = vpop.f32.mrb[0].mxu0
        %899 = vmatprep.mubr.f32.mxu0 0.0
        %900 = vmatmul.mubr.f32.gmra.mrb[0].mxu0 %v784
        %v901 = vpop.f32.mrb[0].mxu0
        %v902 = vadd.f32 0.0, %v901
        %v903 = vpop.f32.mrb[0].mxu0
        %904 = vmatprep.mubr.f32.mxu0 0.0
        %905 = vmatmul.mubr.f32.gmra.mrb[0].mxu0 %v787
        %v906 = vpop.f32.mrb[0].mxu0
        %v907 = vadd.f32 0.0, %v906
        %v908 = vpop.f32.mrb[0].mxu0
        %909 = vmatprep.mubr.f32.mxu0 0.0
        %910 = vmatmul.mubr.f32.gmra.mrb[0].mxu0 %v790
        %v911 = vpop.f32.mrb[0].mxu0
        %v912 = vadd.f32 0.0, %v911
        %v913 = vpop.f32.mrb[0].mxu0
        %914 = vmatprep.mubr.f32.mxu0 0.0
        %915 = vmatmul.mubr.f32.gmra.mrb[0].mxu0 %v793
        %v916 = vpop.f32.mrb[0].mxu0
        %v917 = vadd.f32 0.0, %v916
        %v918 = vpop.f32.mrb[0].mxu0
        %919 = vmatprep.mubr.f32.mxu0 0.0
        %920 = vmatmul.mubr.f32.gmra.mrb[0].mxu0 %v796
        %v921 = vpop.f32.mrb[0].mxu0
        %v922 = vadd.f32 0.0, %v921
        %v923 = vpop.f32.mrb[0].mxu0
        %924 = vmatprep.mubr.f32.mxu0 0.0
        %925 = vmatmul.mubr.f32.gmra.mrb[0].mxu0 %v799
        %v926 = vpop.f32.mrb[0].mxu0
        %v927 = vadd.f32 0.0, %v926
        %v928 = vpop.f32.mrb[0].mxu0
        %929 = vmatprep.mubr.f32.mxu0 0.0
        %930 = vmatmul.mubr.f32.gmra.mrb[0].mxu0 %v802
        %v931 = vpop.f32.mrb[0].mxu0
        %v932 = vadd.f32 0.0, %v931
        %v933 = vpop.f32.mrb[0].mxu0
        %934 = vmatprep.mubr.f32.mxu0 0.0
        %935 = vmatmul.mubr.f32.gmra.mrb[0].mxu0 %v805
        %v936 = vpop.f32.mrb[0].mxu0
        %v937 = vadd.f32 0.0, %v936
        %v938 = vpop.f32.mrb[0].mxu0
        %939 = vmatprep.mubr.f32.mxu0 0.0
        %940 = vmatmul.mubr.f32.gmra.mrb[0].mxu0 %v808
        %v941 = vpop.f32.mrb[0].mxu0
        %v942 = vadd.f32 0.0, %v941
        %v943 = vpop.f32.mrb[0].mxu0
        %944 = vmatprep.mubr.f32.mxu0 0.0
        %945 = vmatmul.mubr.f32.gmra.mrb[0].mxu0 %v811
        %v946 = vpop.f32.mrb[0].mxu0
        %v947 = vadd.f32 0.0, %v946
        %v948 = vpop.f32.mrb[0].mxu0
        %949 = vmatprep.mubr.f32.mxu0 0.0
        %950 = vmatmul.mubr.f32.gmra.mrb[0].mxu0 %v814
        %v951 = vpop.f32.mrb[0].mxu0
        %v952 = vadd.f32 0.0, %v951
        %v953 = vpop.f32.mrb[0].mxu0
        %954 = vmatprep.mubr.f32.mxu0 0.0
        %955 = vmatmul.mubr.f32.gmra.mrb[0].mxu0 %v817
        %v956 = vpop.f32.mrb[0].mxu0
        %v957 = vadd.f32 0.0, %v956
        %v958 = vpop.f32.mrb[0].mxu0
        %959 = vmatprep.mubr.f32.mxu0 0.0
        %960 = vmatmul.mubr.f32.gmra.mrb[0].mxu0 %v820
        %v961 = vpop.f32.mrb[0].mxu0
        %v962 = vadd.f32 0.0, %v961
        %v963 = vpop.f32.mrb[0].mxu0
        %964 = vmatprep.mubr.f32.mxu0 0.0
        %965 = vmatmul.mubr.f32.gmra.mrb[0].mxu0 %v823
        %v966 = vpop.f32.mrb[0].mxu0
        %v967 = vadd.f32 0.0, %v966
        %v968 = vpop.f32.mrb[0].mxu0
        %969 = vdwg.mxu0
        %v971 = vsel %vm776, %v735, 0
        %v974 = vsel %vm776, %v736, 0
        %v977 = vsel %vm776, %v737, 0
        %v980 = vsel %vm776, %v738, 0
        %v983 = vsel %vm776, %v739, 0
        %v986 = vsel %vm776, %v740, 0
        %v989 = vsel %vm776, %v741, 0
        %v992 = vsel %vm776, %v742, 0
        %v995 = vsel %vm776, %v743, 0
        %v998 = vsel %vm776, %v744, 0
        %v1001 = vsel %vm776, %v745, 0
        %v1004 = vsel %vm776, %v746, 0
        %v1007 = vsel %vm776, %v747, 0
        %v1010 = vsel %vm776, %v748, 0
        %v1013 = vsel %vm776, %v749, 0
        %v1016 = vsel %vm776, %v750, 0
        %1018 = vmatprep.subr.mxu0 0.0
        %1019 = vmatpush1.msra.mxu0 %v751
        %1020 = vmatprep.subr.mxu0 0.0
        %1021 = vmatpush1.msra.mxu0 %v752
        %1022 = vmatprep.subr.mxu0 0.0
        %1023 = vmatpush1.msra.mxu0 %v753
        %1024 = vmatprep.subr.mxu0 0.0
        %1025 = vmatpush1.msra.mxu0 %v754
        %1026 = vmatprep.subr.mxu0 0.0
        %1027 = vmatpush1.msra.mxu0 0.0
        %1028 = vmatprep.subr.mxu0 0.0
        %1029 = vmatpush1.msra.mxu0 0.0
        %1030 = vmatprep.subr.mxu0 0.0
        %1031 = vmatpush1.msra.mxu0 0.0
        %1032 = vmatprep.subr.mxu0 0.0
        %1033 = vmatpush1.msra.mxu0 0.0
        %1034 = vmatprep.subr.mxu0 0.0
        %1035 = vmatpush1.msra.mxu0 0.0
        %1036 = vmatprep.subr.mxu0 0.0
        %1037 = vmatpush1.msra.mxu0 0.0
        %1038 = vmatprep.subr.mxu0 0.0
        %1039 = vmatpush1.msra.mxu0 0.0
        %1040 = vmatprep.subr.mxu0 0.0
        %1041 = vmatpush1.msra.mxu0 0.0
        %1042 = vmatprep.subr.mxu0 0.0
        %1043 = vmatpush1.msra.mxu0 0.0
        %1044 = vmatprep.subr.mxu0 0.0
        %1045 = vmatpush1.msra.mxu0 0.0
        %1046 = vmatprep.subr.mxu0 0.0
        %1047 = vmatpush1.msra.mxu0 0.0
        %1048 = vmatprep.subr.mxu0 0.0
        %1049 = vmatpush1.msra.mxu0 0.0
        %1050 = vmatprep.subr.mxu0 0.0
        %1051 = vmatpush1.msra.mxu0 0.0
        %1052 = vmatprep.subr.mxu0 0.0
        %1053 = vmatpush1.msra.mxu0 0.0
        %1054 = vmatprep.subr.mxu0 0.0
        %1055 = vmatpush1.msra.mxu0 0.0
        %1056 = vmatprep.subr.mxu0 0.0
        %1057 = vmatpush1.msra.mxu0 0.0
        %1058 = vmatprep.subr.mxu0 0.0
        %1059 = vmatpush1.msra.mxu0 0.0
        %1060 = vmatprep.subr.mxu0 0.0
        %1061 = vmatpush1.msra.mxu0 0.0
        %1062 = vmatprep.subr.mxu0 0.0
        %1063 = vmatpush1.msra.mxu0 0.0
        %1064 = vmatprep.subr.mxu0 0.0
        %1065 = vmatpush1.msra.mxu0 0.0
        %1066 = vmatprep.subr.mxu0 0.0
        %1067 = vmatpush1.msra.mxu0 0.0
        %1068 = vmatprep.subr.mxu0 0.0
        %1069 = vmatpush1.msra.mxu0 0.0
        %1070 = vmatprep.subr.mxu0 0.0
        %1071 = vmatpush1.msra.mxu0 0.0
        %1072 = vmatprep.subr.mxu0 0.0
        %1073 = vmatpush1.msra.mxu0 0.0
        %1074 = vmatprep.subr.mxu0 0.0
        %1075 = vmatpush1.msra.mxu0 0.0
        %1076 = vmatprep.subr.mxu0 0.0
        %1077 = vmatpush1.msra.mxu0 0.0
        %1078 = vmatprep.subr.mxu0 0.0
        %1079 = vmatpush1.msra.mxu0 0.0
        %1080 = vmatprep.subr.mxu0 0.0
        %1081 = vmatpush1.msra.mxu0 0.0
        %1082 = vmatprep.mubr.f32.mxu0 0.0
        %1083 = vmatmul.mubr.f32.gmra.mrb[0].mxu0 %v971
        %v1084 = vpop.f32.mrb[0].mxu0
        %v1085 = vadd.f32 %v892, %v1084
        %v1086 = vpop.f32.mrb[0].mxu0
        %1087 = vmatprep.mubr.f32.mxu0 0.0
        %1088 = vmatmul.mubr.f32.gmra.mrb[0].mxu0 %v974
        %v1089 = vpop.f32.mrb[0].mxu0
        %v1090 = vadd.f32 %v897, %v1089
        %v1091 = vpop.f32.mrb[0].mxu0
        %1092 = vmatprep.mubr.f32.mxu0 0.0
        %1093 = vmatmul.mubr.f32.gmra.mrb[0].mxu0 %v977
        %v1094 = vpop.f32.mrb[0].mxu0
        %v1095 = vadd.f32 %v902, %v1094
        %v1096 = vpop.f32.mrb[0].mxu0
        %1097 = vmatprep.mubr.f32.mxu0 0.0
        %1098 = vmatmul.mubr.f32.gmra.mrb[0].mxu0 %v980
        %v1099 = vpop.f32.mrb[0].mxu0
        %v1100 = vadd.f32 %v907, %v1099
        %v1101 = vpop.f32.mrb[0].mxu0
        %1102 = vmatprep.mubr.f32.mxu0 0.0
        %1103 = vmatmul.mubr.f32.gmra.mrb[0].mxu0 %v983
        %v1104 = vpop.f32.mrb[0].mxu0
        %v1105 = vadd.f32 %v912, %v1104
        %v1106 = vpop.f32.mrb[0].mxu0
        %1107 = vmatprep.mubr.f32.mxu0 0.0
        %1108 = vmatmul.mubr.f32.gmra.mrb[0].mxu0 %v986
        %v1109 = vpop.f32.mrb[0].mxu0
        %v1110 = vadd.f32 %v917, %v1109
        %v1111 = vpop.f32.mrb[0].mxu0
        %1112 = vmatprep.mubr.f32.mxu0 0.0
        %1113 = vmatmul.mubr.f32.gmra.mrb[0].mxu0 %v989
        %v1114 = vpop.f32.mrb[0].mxu0
        %v1115 = vadd.f32 %v922, %v1114
        %v1116 = vpop.f32.mrb[0].mxu0
        %1117 = vmatprep.mubr.f32.mxu0 0.0
        %1118 = vmatmul.mubr.f32.gmra.mrb[0].mxu0 %v992
        %v1119 = vpop.f32.mrb[0].mxu0
        %v1120 = vadd.f32 %v927, %v1119
        %v1121 = vpop.f32.mrb[0].mxu0
        %1122 = vmatprep.mubr.f32.mxu0 0.0
        %1123 = vmatmul.mubr.f32.gmra.mrb[0].mxu0 %v995
        %v1124 = vpop.f32.mrb[0].mxu0
        %v1125 = vadd.f32 %v932, %v1124
        %v1126 = vpop.f32.mrb[0].mxu0
        %1127 = vmatprep.mubr.f32.mxu0 0.0
        %1128 = vmatmul.mubr.f32.gmra.mrb[0].mxu0 %v998
        %v1129 = vpop.f32.mrb[0].mxu0
        %v1130 = vadd.f32 %v937, %v1129
        %v1131 = vpop.f32.mrb[0].mxu0
        %1132 = vmatprep.mubr.f32.mxu0 0.0
        %1133 = vmatmul.mubr.f32.gmra.mrb[0].mxu0 %v1001
        %v1134 = vpop.f32.mrb[0].mxu0
        %v1135 = vadd.f32 %v942, %v1134
        %v1136 = vpop.f32.mrb[0].mxu0
        %1137 = vmatprep.mubr.f32.mxu0 0.0
        %1138 = vmatmul.mubr.f32.gmra.mrb[0].mxu0 %v1004
        %v1139 = vpop.f32.mrb[0].mxu0
        %v1140 = vadd.f32 %v947, %v1139
        %v1141 = vpop.f32.mrb[0].mxu0
        %1142 = vmatprep.mubr.f32.mxu0 0.0
        %1143 = vmatmul.mubr.f32.gmra.mrb[0].mxu0 %v1007
        %v1144 = vpop.f32.mrb[0].mxu0
        %v1145 = vadd.f32 %v952, %v1144
        %v1146 = vpop.f32.mrb[0].mxu0
        %1147 = vmatprep.mubr.f32.mxu0 0.0
        %1148 = vmatmul.mubr.f32.gmra.mrb[0].mxu0 %v1010
        %v1149 = vpop.f32.mrb[0].mxu0
        %v1150 = vadd.f32 %v957, %v1149
        %v1151 = vpop.f32.mrb[0].mxu0
        %1152 = vmatprep.mubr.f32.mxu0 0.0
        %1153 = vmatmul.mubr.f32.gmra.mrb[0].mxu0 %v1013
        %v1154 = vpop.f32.mrb[0].mxu0
        %v1155 = vadd.f32 %v962, %v1154
        %v1156 = vpop.f32.mrb[0].mxu0
        %1157 = vmatprep.mubr.f32.mxu0 0.0
        %1158 = vmatmul.mubr.f32.gmra.mrb[0].mxu0 %v1016
        %v1159 = vpop.f32.mrb[0].mxu0
        %v1160 = vadd.f32 %v967, %v1159
        %v1161 = vpop.f32.mrb[0].mxu0
        %1162 = vdwg.mxu0
        %v1163 = vld [vmem:[%s734 + $0x2] sm:$0xff]
        %v1164 = vld [vmem:[%s734 + $0xa] sm:$0xff]
        %v1165 = vld [vmem:[%s734 + $0x1a] sm:$0xff]
        %v1166 = vld [vmem:[%s734 + $0x22] sm:$0xff]
        %v1167 = vld [vmem:[%s734 + $0x32] sm:$0xff]
        %v1168 = vld [vmem:[%s734 + $0x3a] sm:$0xff]
        %v1169 = vld [vmem:[%s734 + $0x4a] sm:$0xff]
        %v1170 = vld [vmem:[%s734 + $0x52] sm:$0xff]
        %v1171 = vld [vmem:[%s734 + $0x62] sm:$0xff]
        %v1172 = vld [vmem:[%s734 + $0x6a] sm:$0xff]
        %v1173 = vld [vmem:[%s734 + $0x7a] sm:$0xff]
        %v1174 = vld [vmem:[%s734 + $0x82] sm:$0xff]
        %v1175 = vld [vmem:[%s734 + $0x92] sm:$0xff]
        %v1176 = vld [vmem:[%s734 + $0x9a] sm:$0xff]
        %v1177 = vld [vmem:[%s734 + $0xaa] sm:$0xff]
        %v1178 = vld [vmem:[%s734 + $0xb2] sm:$0xff]
        %s1179 = scalar_lea.vmem [#allocation6], 64
        %v1180 = vld [vmem:[%s1179] sm:$0xff]
        %v1181 = vld [vmem:[%s1179 + $0x8] sm:$0xff]
        %v1182 = vld [vmem:[%s1179 + $0x10] sm:$0xff]
        %v1183 = vld [vmem:[%s1179 + $0x18] sm:$0xff]
        %v1185 = vsel %vm776, %v1163, 0
        %v1188 = vsel %vm776, %v1164, 0
        %v1191 = vsel %vm776, %v1165, 0
        %v1194 = vsel %vm776, %v1166, 0
        %v1197 = vsel %vm776, %v1167, 0
        %v1200 = vsel %vm776, %v1168, 0
        %v1203 = vsel %vm776, %v1169, 0
        %v1206 = vsel %vm776, %v1170, 0
        %v1209 = vsel %vm776, %v1171, 0
        %v1212 = vsel %vm776, %v1172, 0
        %v1215 = vsel %vm776, %v1173, 0
        %v1218 = vsel %vm776, %v1174, 0
        %v1221 = vsel %vm776, %v1175, 0
        %v1224 = vsel %vm776, %v1176, 0
        %v1227 = vsel %vm776, %v1177, 0
        %v1230 = vsel %vm776, %v1178, 0
        %1232 = vmatprep.subr.mxu0 0.0
        %1233 = vmatpush1.msra.mxu0 %v1180
        %1234 = vmatprep.subr.mxu0 0.0
        %1235 = vmatpush1.msra.mxu0 %v1181
        %1236 = vmatprep.subr.mxu0 0.0
        %1237 = vmatpush1.msra.mxu0 %v1182
        %1238 = vmatprep.subr.mxu0 0.0
        %1239 = vmatpush1.msra.mxu0 %v1183
        %1240 = vmatprep.subr.mxu0 0.0
        %1241 = vmatpush1.msra.mxu0 0.0
        %1242 = vmatprep.subr.mxu0 0.0
        %1243 = vmatpush1.msra.mxu0 0.0
        %1244 = vmatprep.subr.mxu0 0.0
        %1245 = vmatpush1.msra.mxu0 0.0
        %1246 = vmatprep.subr.mxu0 0.0
        %1247 = vmatpush1.msra.mxu0 0.0
        %1248 = vmatprep.subr.mxu0 0.0
        %1249 = vmatpush1.msra.mxu0 0.0
        %1250 = vmatprep.subr.mxu0 0.0
        %1251 = vmatpush1.msra.mxu0 0.0
        %1252 = vmatprep.subr.mxu0 0.0
        %1253 = vmatpush1.msra.mxu0 0.0
        %1254 = vmatprep.subr.mxu0 0.0
        %1255 = vmatpush1.msra.mxu0 0.0
        %1256 = vmatprep.subr.mxu0 0.0
        %1257 = vmatpush1.msra.mxu0 0.0
        %1258 = vmatprep.subr.mxu0 0.0
        %1259 = vmatpush1.msra.mxu0 0.0
        %1260 = vmatprep.subr.mxu0 0.0
        %1261 = vmatpush1.msra.mxu0 0.0
        %1262 = vmatprep.subr.mxu0 0.0
        %1263 = vmatpush1.msra.mxu0 0.0
        %1264 = vmatprep.subr.mxu0 0.0
        %1265 = vmatpush1.msra.mxu0 0.0
        %1266 = vmatprep.subr.mxu0 0.0
        %1267 = vmatpush1.msra.mxu0 0.0
        %1268 = vmatprep.subr.mxu0 0.0
        %1269 = vmatpush1.msra.mxu0 0.0
        %1270 = vmatprep.subr.mxu0 0.0
        %1271 = vmatpush1.msra.mxu0 0.0
        %1272 = vmatprep.subr.mxu0 0.0
        %1273 = vmatpush1.msra.mxu0 0.0
        %1274 = vmatprep.subr.mxu0 0.0
        %1275 = vmatpush1.msra.mxu0 0.0
        %1276 = vmatprep.subr.mxu0 0.0
        %1277 = vmatpush1.msra.mxu0 0.0
        %1278 = vmatprep.subr.mxu0 0.0
        %1279 = vmatpush1.msra.mxu0 0.0
        %1280 = vmatprep.subr.mxu0 0.0
        %1281 = vmatpush1.msra.mxu0 0.0
        %1282 = vmatprep.subr.mxu0 0.0
        %1283 = vmatpush1.msra.mxu0 0.0
        %1284 = vmatprep.subr.mxu0 0.0
        %1285 = vmatpush1.msra.mxu0 0.0
        %1286 = vmatprep.subr.mxu0 0.0
        %1287 = vmatpush1.msra.mxu0 0.0
        %1288 = vmatprep.subr.mxu0 0.0
        %1289 = vmatpush1.msra.mxu0 0.0
        %1290 = vmatprep.subr.mxu0 0.0
        %1291 = vmatpush1.msra.mxu0 0.0
        %1292 = vmatprep.subr.mxu0 0.0
        %1293 = vmatpush1.msra.mxu0 0.0
        %1294 = vmatprep.subr.mxu0 0.0
        %1295 = vmatpush1.msra.mxu0 0.0
        %1296 = vmatprep.mubr.f32.mxu0 0.0
        %1297 = vmatmul.mubr.f32.gmra.mrb[0].mxu0 %v1185
        %v1298 = vpop.f32.mrb[0].mxu0
        %v1299 = vadd.f32 0.0, %v1298
        %v1300 = vpop.f32.mrb[0].mxu0
        %1301 = vmatprep.mubr.f32.mxu0 0.0
        %1302 = vmatmul.mubr.f32.gmra.mrb[0].mxu0 %v1188
        %v1303 = vpop.f32.mrb[0].mxu0
        %v1304 = vadd.f32 0.0, %v1303
        %v1305 = vpop.f32.mrb[0].mxu0
        %1306 = vmatprep.mubr.f32.mxu0 0.0
        %1307 = vmatmul.mubr.f32.gmra.mrb[0].mxu0 %v1191
        %v1308 = vpop.f32.mrb[0].mxu0
        %v1309 = vadd.f32 0.0, %v1308
        %v1310 = vpop.f32.mrb[0].mxu0
        %1311 = vmatprep.mubr.f32.mxu0 0.0
        %1312 = vmatmul.mubr.f32.gmra.mrb[0].mxu0 %v1194
        %v1313 = vpop.f32.mrb[0].mxu0
        %v1314 = vadd.f32 0.0, %v1313
        %v1315 = vpop.f32.mrb[0].mxu0
        %1316 = vmatprep.mubr.f32.mxu0 0.0
        %1317 = vmatmul.mubr.f32.gmra.mrb[0].mxu0 %v1197
        %v1318 = vpop.f32.mrb[0].mxu0
        %v1319 = vadd.f32 0.0, %v1318
        %v1320 = vpop.f32.mrb[0].mxu0
        %1321 = vmatprep.mubr.f32.mxu0 0.0
        %1322 = vmatmul.mubr.f32.gmra.mrb[0].mxu0 %v1200
        %v1323 = vpop.f32.mrb[0].mxu0
        %v1324 = vadd.f32 0.0, %v1323
        %v1325 = vpop.f32.mrb[0].mxu0
        %1326 = vmatprep.mubr.f32.mxu0 0.0
        %1327 = vmatmul.mubr.f32.gmra.mrb[0].mxu0 %v1203
        %v1328 = vpop.f32.mrb[0].mxu0
        %v1329 = vadd.f32 0.0, %v1328
        %v1330 = vpop.f32.mrb[0].mxu0
        %1331 = vmatprep.mubr.f32.mxu0 0.0
        %1332 = vmatmul.mubr.f32.gmra.mrb[0].mxu0 %v1206
        %v1333 = vpop.f32.mrb[0].mxu0
        %v1334 = vadd.f32 0.0, %v1333
        %v1335 = vpop.f32.mrb[0].mxu0
        %1336 = vmatprep.mubr.f32.mxu0 0.0
        %1337 = vmatmul.mubr.f32.gmra.mrb[0].mxu0 %v1209
        %v1338 = vpop.f32.mrb[0].mxu0
        %v1339 = vadd.f32 0.0, %v1338
        %v1340 = vpop.f32.mrb[0].mxu0
        %1341 = vmatprep.mubr.f32.mxu0 0.0
        %1342 = vmatmul.mubr.f32.gmra.mrb[0].mxu0 %v1212
        %v1343 = vpop.f32.mrb[0].mxu0
        %v1344 = vadd.f32 0.0, %v1343
        %v1345 = vpop.f32.mrb[0].mxu0
        %1346 = vmatprep.mubr.f32.mxu0 0.0
        %1347 = vmatmul.mubr.f32.gmra.mrb[0].mxu0 %v1215
        %v1348 = vpop.f32.mrb[0].mxu0
        %v1349 = vadd.f32 0.0, %v1348
        %v1350 = vpop.f32.mrb[0].mxu0
        %1351 = vmatprep.mubr.f32.mxu0 0.0
        %1352 = vmatmul.mubr.f32.gmra.mrb[0].mxu0 %v1218
        %v1353 = vpop.f32.mrb[0].mxu0
        %v1354 = vadd.f32 0.0, %v1353
        %v1355 = vpop.f32.mrb[0].mxu0
        %1356 = vmatprep.mubr.f32.mxu0 0.0
        %1357 = vmatmul.mubr.f32.gmra.mrb[0].mxu0 %v1221
        %v1358 = vpop.f32.mrb[0].mxu0
        %v1359 = vadd.f32 0.0, %v1358
        %v1360 = vpop.f32.mrb[0].mxu0
        %1361 = vmatprep.mubr.f32.mxu0 0.0
        %1362 = vmatmul.mubr.f32.gmra.mrb[0].mxu0 %v1224
        %v1363 = vpop.f32.mrb[0].mxu0
        %v1364 = vadd.f32 0.0, %v1363
        %v1365 = vpop.f32.mrb[0].mxu0
        %1366 = vmatprep.mubr.f32.mxu0 0.0
        %1367 = vmatmul.mubr.f32.gmra.mrb[0].mxu0 %v1227
        %v1368 = vpop.f32.mrb[0].mxu0
        %v1369 = vadd.f32 0.0, %v1368
        %v1370 = vpop.f32.mrb[0].mxu0
        %1371 = vmatprep.mubr.f32.mxu0 0.0
        %1372 = vmatmul.mubr.f32.gmra.mrb[0].mxu0 %v1230
        %v1373 = vpop.f32.mrb[0].mxu0
        %v1374 = vadd.f32 0.0, %v1373
        %v1375 = vpop.f32.mrb[0].mxu0
        %1376 = vdwg.mxu0
        %v1377 = vadd.f32 %v1085, %v1299
        %v1378 = vadd.f32 %v1090, %v1304
        %v1379 = vadd.f32 %v1095, %v1309
        %v1380 = vadd.f32 %v1100, %v1314
        %v1381 = vadd.f32 %v1105, %v1319
        %v1382 = vadd.f32 %v1110, %v1324
        %v1383 = vadd.f32 %v1115, %v1329
        %v1384 = vadd.f32 %v1120, %v1334
        %v1385 = vadd.f32 %v1125, %v1339
        %v1386 = vadd.f32 %v1130, %v1344
        %v1387 = vadd.f32 %v1135, %v1349
        %v1388 = vadd.f32 %v1140, %v1354
        %v1389 = vadd.f32 %v1145, %v1359
        %v1390 = vadd.f32 %v1150, %v1364
        %v1391 = vadd.f32 %v1155, %v1369
        %v1392 = vadd.f32 %v1160, %v1374
        %s1393 = sadd.s32 %s732, 1
        %s1394 = smul.u32 %s1393, 24
        %s1395 = scalar_lea.vmem [#allocation2], %s1394
        %v1396 = vld [vmem:[%s1395] sm:$0xff]
        %v1397 = vld [vmem:[%s1395 + $0x8] sm:$0xff]
        %v1398 = vld [vmem:[%s1395 + $0x18] sm:$0xff]
        %v1399 = vld [vmem:[%s1395 + $0x20] sm:$0xff]
        %v1400 = vld [vmem:[%s1395 + $0x30] sm:$0xff]
        %v1401 = vld [vmem:[%s1395 + $0x38] sm:$0xff]
        %v1402 = vld [vmem:[%s1395 + $0x48] sm:$0xff]
        %v1403 = vld [vmem:[%s1395 + $0x50] sm:$0xff]
        %v1404 = vld [vmem:[%s1395 + $0x60] sm:$0xff]
        %v1405 = vld [vmem:[%s1395 + $0x68] sm:$0xff]
        %v1406 = vld [vmem:[%s1395 + $0x78] sm:$0xff]
        %v1407 = vld [vmem:[%s1395 + $0x80] sm:$0xff]
        %v1408 = vld [vmem:[%s1395 + $0x90] sm:$0xff]
        %v1409 = vld [vmem:[%s1395 + $0x98] sm:$0xff]
        %v1410 = vld [vmem:[%s1395 + $0xa8] sm:$0xff]
        %v1411 = vld [vmem:[%s1395 + $0xb0] sm:$0xff]
        %s1412 = scalar_lea.vmem [#allocation6], 96
        %v1413 = vld [vmem:[%s1412] sm:$0xff]
        %v1414 = vld [vmem:[%s1412 + $0x8] sm:$0xff]
        %v1415 = vld [vmem:[%s1412 + $0x10] sm:$0xff]
        %v1416 = vld [vmem:[%s1412 + $0x18] sm:$0xff]
        %v1418 = vsel %vm776, %v1396, 0
        %v1421 = vsel %vm776, %v1397, 0
        %v1424 = vsel %vm776, %v1398, 0
        %v1427 = vsel %vm776, %v1399, 0
        %v1430 = vsel %vm776, %v1400, 0
        %v1433 = vsel %vm776, %v1401, 0
        %v1436 = vsel %vm776, %v1402, 0
        %v1439 = vsel %vm776, %v1403, 0
        %v1442 = vsel %vm776, %v1404, 0
        %v1445 = vsel %vm776, %v1405, 0
        %v1448 = vsel %vm776, %v1406, 0
        %v1451 = vsel %vm776, %v1407, 0
        %v1454 = vsel %vm776, %v1408, 0
        %v1457 = vsel %vm776, %v1409, 0
        %v1460 = vsel %vm776, %v1410, 0
        %v1463 = vsel %vm776, %v1411, 0
        %1465 = vmatprep.subr.mxu0 0.0
        %1466 = vmatpush1.msra.mxu0 %v1413
        %1467 = vmatprep.subr.mxu0 0.0
        %1468 = vmatpush1.msra.mxu0 %v1414
        %1469 = vmatprep.subr.mxu0 0.0
        %1470 = vmatpush1.msra.mxu0 %v1415
        %1471 = vmatprep.subr.mxu0 0.0
        %1472 = vmatpush1.msra.mxu0 %v1416
        %1473 = vmatprep.subr.mxu0 0.0
        %1474 = vmatpush1.msra.mxu0 0.0
        %1475 = vmatprep.subr.mxu0 0.0
        %1476 = vmatpush1.msra.mxu0 0.0
        %1477 = vmatprep.subr.mxu0 0.0
        %1478 = vmatpush1.msra.mxu0 0.0
        %1479 = vmatprep.subr.mxu0 0.0
        %1480 = vmatpush1.msra.mxu0 0.0
        %1481 = vmatprep.subr.mxu0 0.0
        %1482 = vmatpush1.msra.mxu0 0.0
        %1483 = vmatprep.subr.mxu0 0.0
        %1484 = vmatpush1.msra.mxu0 0.0
        %1485 = vmatprep.subr.mxu0 0.0
        %1486 = vmatpush1.msra.mxu0 0.0
        %1487 = vmatprep.subr.mxu0 0.0
        %1488 = vmatpush1.msra.mxu0 0.0
        %1489 = vmatprep.subr.mxu0 0.0
        %1490 = vmatpush1.msra.mxu0 0.0
        %1491 = vmatprep.subr.mxu0 0.0
        %1492 = vmatpush1.msra.mxu0 0.0
        %1493 = vmatprep.subr.mxu0 0.0
        %1494 = vmatpush1.msra.mxu0 0.0
        %1495 = vmatprep.subr.mxu0 0.0
        %1496 = vmatpush1.msra.mxu0 0.0
        %1497 = vmatprep.subr.mxu0 0.0
        %1498 = vmatpush1.msra.mxu0 0.0
        %1499 = vmatprep.subr.mxu0 0.0
        %1500 = vmatpush1.msra.mxu0 0.0
        %1501 = vmatprep.subr.mxu0 0.0
        %1502 = vmatpush1.msra.mxu0 0.0
        %1503 = vmatprep.subr.mxu0 0.0
        %1504 = vmatpush1.msra.mxu0 0.0
        %1505 = vmatprep.subr.mxu0 0.0
        %1506 = vmatpush1.msra.mxu0 0.0
        %1507 = vmatprep.subr.mxu0 0.0
        %1508 = vmatpush1.msra.mxu0 0.0
        %1509 = vmatprep.subr.mxu0 0.0
        %1510 = vmatpush1.msra.mxu0 0.0
        %1511 = vmatprep.subr.mxu0 0.0
        %1512 = vmatpush1.msra.mxu0 0.0
        %1513 = vmatprep.subr.mxu0 0.0
        %1514 = vmatpush1.msra.mxu0 0.0
        %1515 = vmatprep.subr.mxu0 0.0
        %1516 = vmatpush1.msra.mxu0 0.0
        %1517 = vmatprep.subr.mxu0 0.0
        %1518 = vmatpush1.msra.mxu0 0.0
        %1519 = vmatprep.subr.mxu0 0.0
        %1520 = vmatpush1.msra.mxu0 0.0
        %1521 = vmatprep.subr.mxu0 0.0
        %1522 = vmatpush1.msra.mxu0 0.0
        %1523 = vmatprep.subr.mxu0 0.0
        %1524 = vmatpush1.msra.mxu0 0.0
        %1525 = vmatprep.subr.mxu0 0.0
        %1526 = vmatpush1.msra.mxu0 0.0
        %1527 = vmatprep.subr.mxu0 0.0
        %1528 = vmatpush1.msra.mxu0 0.0
        %1529 = vmatprep.mubr.f32.mxu0 0.0
        %1530 = vmatmul.mubr.f32.gmra.mrb[0].mxu0 %v1418
        %v1531 = vpop.f32.mrb[0].mxu0
        %v1532 = vadd.f32 0.0, %v1531
        %v1533 = vpop.f32.mrb[0].mxu0
        %1534 = vmatprep.mubr.f32.mxu0 0.0
        %1535 = vmatmul.mubr.f32.gmra.mrb[0].mxu0 %v1421
        %v1536 = vpop.f32.mrb[0].mxu0
        %v1537 = vadd.f32 0.0, %v1536
        %v1538 = vpop.f32.mrb[0].mxu0
        %1539 = vmatprep.mubr.f32.mxu0 0.0
        %1540 = vmatmul.mubr.f32.gmra.mrb[0].mxu0 %v1424
        %v1541 = vpop.f32.mrb[0].mxu0
        %v1542 = vadd.f32 0.0, %v1541
        %v1543 = vpop.f32.mrb[0].mxu0
        %1544 = vmatprep.mubr.f32.mxu0 0.0
        %1545 = vmatmul.mubr.f32.gmra.mrb[0].mxu0 %v1427
        %v1546 = vpop.f32.mrb[0].mxu0
        %v1547 = vadd.f32 0.0, %v1546
        %v1548 = vpop.f32.mrb[0].mxu0
        %1549 = vmatprep.mubr.f32.mxu0 0.0
        %1550 = vmatmul.mubr.f32.gmra.mrb[0].mxu0 %v1430
        %v1551 = vpop.f32.mrb[0].mxu0
        %v1552 = vadd.f32 0.0, %v1551
        %v1553 = vpop.f32.mrb[0].mxu0
        %1554 = vmatprep.mubr.f32.mxu0 0.0
        %1555 = vmatmul.mubr.f32.gmra.mrb[0].mxu0 %v1433
        %v1556 = vpop.f32.mrb[0].mxu0
        %v1557 = vadd.f32 0.0, %v1556
        %v1558 = vpop.f32.mrb[0].mxu0
        %1559 = vmatprep.mubr.f32.mxu0 0.0
        %1560 = vmatmul.mubr.f32.gmra.mrb[0].mxu0 %v1436
        %v1561 = vpop.f32.mrb[0].mxu0
        %v1562 = vadd.f32 0.0, %v1561
        %v1563 = vpop.f32.mrb[0].mxu0
        %1564 = vmatprep.mubr.f32.mxu0 0.0
        %1565 = vmatmul.mubr.f32.gmra.mrb[0].mxu0 %v1439
        %v1566 = vpop.f32.mrb[0].mxu0
        %v1567 = vadd.f32 0.0, %v1566
        %v1568 = vpop.f32.mrb[0].mxu0
        %1569 = vmatprep.mubr.f32.mxu0 0.0
        %1570 = vmatmul.mubr.f32.gmra.mrb[0].mxu0 %v1442
        %v1571 = vpop.f32.mrb[0].mxu0
        %v1572 = vadd.f32 0.0, %v1571
        %v1573 = vpop.f32.mrb[0].mxu0
        %1574 = vmatprep.mubr.f32.mxu0 0.0
        %1575 = vmatmul.mubr.f32.gmra.mrb[0].mxu0 %v1445
        %v1576 = vpop.f32.mrb[0].mxu0
        %v1577 = vadd.f32 0.0, %v1576
        %v1578 = vpop.f32.mrb[0].mxu0
        %1579 = vmatprep.mubr.f32.mxu0 0.0
        %1580 = vmatmul.mubr.f32.gmra.mrb[0].mxu0 %v1448
        %v1581 = vpop.f32.mrb[0].mxu0
        %v1582 = vadd.f32 0.0, %v1581
        %v1583 = vpop.f32.mrb[0].mxu0
        %1584 = vmatprep.mubr.f32.mxu0 0.0
        %1585 = vmatmul.mubr.f32.gmra.mrb[0].mxu0 %v1451
        %v1586 = vpop.f32.mrb[0].mxu0
        %v1587 = vadd.f32 0.0, %v1586
        %v1588 = vpop.f32.mrb[0].mxu0
        %1589 = vmatprep.mubr.f32.mxu0 0.0
        %1590 = vmatmul.mubr.f32.gmra.mrb[0].mxu0 %v1454
        %v1591 = vpop.f32.mrb[0].mxu0
        %v1592 = vadd.f32 0.0, %v1591
        %v1593 = vpop.f32.mrb[0].mxu0
        %1594 = vmatprep.mubr.f32.mxu0 0.0
        %1595 = vmatmul.mubr.f32.gmra.mrb[0].mxu0 %v1457
        %v1596 = vpop.f32.mrb[0].mxu0
        %v1597 = vadd.f32 0.0, %v1596
        %v1598 = vpop.f32.mrb[0].mxu0
        %1599 = vmatprep.mubr.f32.mxu0 0.0
        %1600 = vmatmul.mubr.f32.gmra.mrb[0].mxu0 %v1460
        %v1601 = vpop.f32.mrb[0].mxu0
        %v1602 = vadd.f32 0.0, %v1601
        %v1603 = vpop.f32.mrb[0].mxu0
        %1604 = vmatprep.mubr.f32.mxu0 0.0
        %1605 = vmatmul.mubr.f32.gmra.mrb[0].mxu0 %v1463
        %v1606 = vpop.f32.mrb[0].mxu0
        %v1607 = vadd.f32 0.0, %v1606
        %v1608 = vpop.f32.mrb[0].mxu0
        %1609 = vdwg.mxu0
        %v1610 = vadd.f32 %v1377, %v1532
        %v1611 = vadd.f32 %v1378, %v1537
        %v1612 = vadd.f32 %v1379, %v1542
        %v1613 = vadd.f32 %v1380, %v1547
        %v1614 = vadd.f32 %v1381, %v1552
        %v1615 = vadd.f32 %v1382, %v1557
        %v1616 = vadd.f32 %v1383, %v1562
        %v1617 = vadd.f32 %v1384, %v1567
        %v1618 = vadd.f32 %v1385, %v1572
        %v1619 = vadd.f32 %v1386, %v1577
        %v1620 = vadd.f32 %v1387, %v1582
        %v1621 = vadd.f32 %v1388, %v1587
        %v1622 = vadd.f32 %v1389, %v1592
        %v1623 = vadd.f32 %v1390, %v1597
        %v1624 = vadd.f32 %v1391, %v1602
        %v1625 = vadd.f32 %v1392, %v1607
        %v1626 = vld [vmem:[%s1395 + $0x1] sm:$0xff]
        %v1627 = vld [vmem:[%s1395 + $0x9] sm:$0xff]
        %v1628 = vld [vmem:[%s1395 + $0x19] sm:$0xff]
        %v1629 = vld [vmem:[%s1395 + $0x21] sm:$0xff]
        %v1630 = vld [vmem:[%s1395 + $0x31] sm:$0xff]
        %v1631 = vld [vmem:[%s1395 + $0x39] sm:$0xff]
        %v1632 = vld [vmem:[%s1395 + $0x49] sm:$0xff]
        %v1633 = vld [vmem:[%s1395 + $0x51] sm:$0xff]
        %v1634 = vld [vmem:[%s1395 + $0x61] sm:$0xff]
        %v1635 = vld [vmem:[%s1395 + $0x69] sm:$0xff]
        %v1636 = vld [vmem:[%s1395 + $0x79] sm:$0xff]
        %v1637 = vld [vmem:[%s1395 + $0x81] sm:$0xff]
        %v1638 = vld [vmem:[%s1395 + $0x91] sm:$0xff]
        %v1639 = vld [vmem:[%s1395 + $0x99] sm:$0xff]
        %v1640 = vld [vmem:[%s1395 + $0xa9] sm:$0xff]
        %v1641 = vld [vmem:[%s1395 + $0xb1] sm:$0xff]
        %s1642 = scalar_lea.vmem [#allocation6], 128
        %v1643 = vld [vmem:[%s1642] sm:$0xff]
        %v1644 = vld [vmem:[%s1642 + $0x8] sm:$0xff]
        %v1645 = vld [vmem:[%s1642 + $0x10] sm:$0xff]
        %v1646 = vld [vmem:[%s1642 + $0x18] sm:$0xff]
        %v1648 = vsel %vm776, %v1626, 0
        %v1651 = vsel %vm776, %v1627, 0
        %v1654 = vsel %vm776, %v1628, 0
        %v1657 = vsel %vm776, %v1629, 0
        %v1660 = vsel %vm776, %v1630, 0
        %v1663 = vsel %vm776, %v1631, 0
        %v1666 = vsel %vm776, %v1632, 0
        %v1669 = vsel %vm776, %v1633, 0
        %v1672 = vsel %vm776, %v1634, 0
        %v1675 = vsel %vm776, %v1635, 0
        %v1678 = vsel %vm776, %v1636, 0
        %v1681 = vsel %vm776, %v1637, 0
        %v1684 = vsel %vm776, %v1638, 0
        %v1687 = vsel %vm776, %v1639, 0
        %v1690 = vsel %vm776, %v1640, 0
        %v1693 = vsel %vm776, %v1641, 0
        %1695 = vmatprep.subr.mxu0 0.0
        %1696 = vmatpush1.msra.mxu0 %v1643
        %1697 = vmatprep.subr.mxu0 0.0
        %1698 = vmatpush1.msra.mxu0 %v1644
        %1699 = vmatprep.subr.mxu0 0.0
        %1700 = vmatpush1.msra.mxu0 %v1645
        %1701 = vmatprep.subr.mxu0 0.0
        %1702 = vmatpush1.msra.mxu0 %v1646
        %1703 = vmatprep.subr.mxu0 0.0
        %1704 = vmatpush1.msra.mxu0 0.0
        %1705 = vmatprep.subr.mxu0 0.0
        %1706 = vmatpush1.msra.mxu0 0.0
        %1707 = vmatprep.subr.mxu0 0.0
        %1708 = vmatpush1.msra.mxu0 0.0
        %1709 = vmatprep.subr.mxu0 0.0
        %1710 = vmatpush1.msra.mxu0 0.0
        %1711 = vmatprep.subr.mxu0 0.0
        %1712 = vmatpush1.msra.mxu0 0.0
        %1713 = vmatprep.subr.mxu0 0.0
        %1714 = vmatpush1.msra.mxu0 0.0
        %1715 = vmatprep.subr.mxu0 0.0
        %1716 = vmatpush1.msra.mxu0 0.0
        %1717 = vmatprep.subr.mxu0 0.0
        %1718 = vmatpush1.msra.mxu0 0.0
        %1719 = vmatprep.subr.mxu0 0.0
        %1720 = vmatpush1.msra.mxu0 0.0
        %1721 = vmatprep.subr.mxu0 0.0
        %1722 = vmatpush1.msra.mxu0 0.0
        %1723 = vmatprep.subr.mxu0 0.0
        %1724 = vmatpush1.msra.mxu0 0.0
        %1725 = vmatprep.subr.mxu0 0.0
        %1726 = vmatpush1.msra.mxu0 0.0
        %1727 = vmatprep.subr.mxu0 0.0
        %1728 = vmatpush1.msra.mxu0 0.0
        %1729 = vmatprep.subr.mxu0 0.0
        %1730 = vmatpush1.msra.mxu0 0.0
        %1731 = vmatprep.subr.mxu0 0.0
        %1732 = vmatpush1.msra.mxu0 0.0
        %1733 = vmatprep.subr.mxu0 0.0
        %1734 = vmatpush1.msra.mxu0 0.0
        %1735 = vmatprep.subr.mxu0 0.0
        %1736 = vmatpush1.msra.mxu0 0.0
        %1737 = vmatprep.subr.mxu0 0.0
        %1738 = vmatpush1.msra.mxu0 0.0
        %1739 = vmatprep.subr.mxu0 0.0
        %1740 = vmatpush1.msra.mxu0 0.0
        %1741 = vmatprep.subr.mxu0 0.0
        %1742 = vmatpush1.msra.mxu0 0.0
        %1743 = vmatprep.subr.mxu0 0.0
        %1744 = vmatpush1.msra.mxu0 0.0
        %1745 = vmatprep.subr.mxu0 0.0
        %1746 = vmatpush1.msra.mxu0 0.0
        %1747 = vmatprep.subr.mxu0 0.0
        %1748 = vmatpush1.msra.mxu0 0.0
        %1749 = vmatprep.subr.mxu0 0.0
        %1750 = vmatpush1.msra.mxu0 0.0
        %1751 = vmatprep.subr.mxu0 0.0
        %1752 = vmatpush1.msra.mxu0 0.0
        %1753 = vmatprep.subr.mxu0 0.0
        %1754 = vmatpush1.msra.mxu0 0.0
        %1755 = vmatprep.subr.mxu0 0.0
        %1756 = vmatpush1.msra.mxu0 0.0
        %1757 = vmatprep.subr.mxu0 0.0
        %1758 = vmatpush1.msra.mxu0 0.0
        %1759 = vmatprep.mubr.f32.mxu0 0.0
        %1760 = vmatmul.mubr.f32.gmra.mrb[0].mxu0 %v1648
        %v1761 = vpop.f32.mrb[0].mxu0
        %v1762 = vadd.f32 0.0, %v1761
        %v1763 = vpop.f32.mrb[0].mxu0
        %1764 = vmatprep.mubr.f32.mxu0 0.0
        %1765 = vmatmul.mubr.f32.gmra.mrb[0].mxu0 %v1651
        %v1766 = vpop.f32.mrb[0].mxu0
        %v1767 = vadd.f32 0.0, %v1766
        %v1768 = vpop.f32.mrb[0].mxu0
        %1769 = vmatprep.mubr.f32.mxu0 0.0
        %1770 = vmatmul.mubr.f32.gmra.mrb[0].mxu0 %v1654
        %v1771 = vpop.f32.mrb[0].mxu0
        %v1772 = vadd.f32 0.0, %v1771
        %v1773 = vpop.f32.mrb[0].mxu0
        %1774 = vmatprep.mubr.f32.mxu0 0.0
        %1775 = vmatmul.mubr.f32.gmra.mrb[0].mxu0 %v1657
        %v1776 = vpop.f32.mrb[0].mxu0
        %v1777 = vadd.f32 0.0, %v1776
        %v1778 = vpop.f32.mrb[0].mxu0
        %1779 = vmatprep.mubr.f32.mxu0 0.0
        %1780 = vmatmul.mubr.f32.gmra.mrb[0].mxu0 %v1660
        %v1781 = vpop.f32.mrb[0].mxu0
        %v1782 = vadd.f32 0.0, %v1781
        %v1783 = vpop.f32.mrb[0].mxu0
        %1784 = vmatprep.mubr.f32.mxu0 0.0
        %1785 = vmatmul.mubr.f32.gmra.mrb[0].mxu0 %v1663
        %v1786 = vpop.f32.mrb[0].mxu0
        %v1787 = vadd.f32 0.0, %v1786
        %v1788 = vpop.f32.mrb[0].mxu0
        %1789 = vmatprep.mubr.f32.mxu0 0.0
        %1790 = vmatmul.mubr.f32.gmra.mrb[0].mxu0 %v1666
        %v1791 = vpop.f32.mrb[0].mxu0
        %v1792 = vadd.f32 0.0, %v1791
        %v1793 = vpop.f32.mrb[0].mxu0
        %1794 = vmatprep.mubr.f32.mxu0 0.0
        %1795 = vmatmul.mubr.f32.gmra.mrb[0].mxu0 %v1669
        %v1796 = vpop.f32.mrb[0].mxu0
        %v1797 = vadd.f32 0.0, %v1796
        %v1798 = vpop.f32.mrb[0].mxu0
        %1799 = vmatprep.mubr.f32.mxu0 0.0
        %1800 = vmatmul.mubr.f32.gmra.mrb[0].mxu0 %v1672
        %v1801 = vpop.f32.mrb[0].mxu0
        %v1802 = vadd.f32 0.0, %v1801
        %v1803 = vpop.f32.mrb[0].mxu0
        %1804 = vmatprep.mubr.f32.mxu0 0.0
        %1805 = vmatmul.mubr.f32.gmra.mrb[0].mxu0 %v1675
        %v1806 = vpop.f32.mrb[0].mxu0
        %v1807 = vadd.f32 0.0, %v1806
        %v1808 = vpop.f32.mrb[0].mxu0
        %1809 = vmatprep.mubr.f32.mxu0 0.0
        %1810 = vmatmul.mubr.f32.gmra.mrb[0].mxu0 %v1678
        %v1811 = vpop.f32.mrb[0].mxu0
        %v1812 = vadd.f32 0.0, %v1811
        %v1813 = vpop.f32.mrb[0].mxu0
        %1814 = vmatprep.mubr.f32.mxu0 0.0
        %1815 = vmatmul.mubr.f32.gmra.mrb[0].mxu0 %v1681
        %v1816 = vpop.f32.mrb[0].mxu0
        %v1817 = vadd.f32 0.0, %v1816
        %v1818 = vpop.f32.mrb[0].mxu0
        %1819 = vmatprep.mubr.f32.mxu0 0.0
        %1820 = vmatmul.mubr.f32.gmra.mrb[0].mxu0 %v1684
        %v1821 = vpop.f32.mrb[0].mxu0
        %v1822 = vadd.f32 0.0, %v1821
        %v1823 = vpop.f32.mrb[0].mxu0
        %1824 = vmatprep.mubr.f32.mxu0 0.0
        %1825 = vmatmul.mubr.f32.gmra.mrb[0].mxu0 %v1687
        %v1826 = vpop.f32.mrb[0].mxu0
        %v1827 = vadd.f32 0.0, %v1826
        %v1828 = vpop.f32.mrb[0].mxu0
        %1829 = vmatprep.mubr.f32.mxu0 0.0
        %1830 = vmatmul.mubr.f32.gmra.mrb[0].mxu0 %v1690
        %v1831 = vpop.f32.mrb[0].mxu0
        %v1832 = vadd.f32 0.0, %v1831
        %v1833 = vpop.f32.mrb[0].mxu0
        %1834 = vmatprep.mubr.f32.mxu0 0.0
        %1835 = vmatmul.mubr.f32.gmra.mrb[0].mxu0 %v1693
        %v1836 = vpop.f32.mrb[0].mxu0
        %v1837 = vadd.f32 0.0, %v1836
        %v1838 = vpop.f32.mrb[0].mxu0
        %1839 = vdwg.mxu0
        %v1840 = vadd.f32 %v1610, %v1762
        %v1841 = vadd.f32 %v1611, %v1767
        %v1842 = vadd.f32 %v1612, %v1772
        %v1843 = vadd.f32 %v1613, %v1777
        %v1844 = vadd.f32 %v1614, %v1782
        %v1845 = vadd.f32 %v1615, %v1787
        %v1846 = vadd.f32 %v1616, %v1792
        %v1847 = vadd.f32 %v1617, %v1797
        %v1848 = vadd.f32 %v1618, %v1802
        %v1849 = vadd.f32 %v1619, %v1807
        %v1850 = vadd.f32 %v1620, %v1812
        %v1851 = vadd.f32 %v1621, %v1817
        %v1852 = vadd.f32 %v1622, %v1822
        %v1853 = vadd.f32 %v1623, %v1827
        %v1854 = vadd.f32 %v1624, %v1832
        %v1855 = vadd.f32 %v1625, %v1837
        %v1856 = vld [vmem:[%s1395 + $0x2] sm:$0xff]
        %v1857 = vld [vmem:[%s1395 + $0xa] sm:$0xff]
        %v1858 = vld [vmem:[%s1395 + $0x1a] sm:$0xff]
        %v1859 = vld [vmem:[%s1395 + $0x22] sm:$0xff]
        %v1860 = vld [vmem:[%s1395 + $0x32] sm:$0xff]
        %v1861 = vld [vmem:[%s1395 + $0x3a] sm:$0xff]
        %v1862 = vld [vmem:[%s1395 + $0x4a] sm:$0xff]
        %v1863 = vld [vmem:[%s1395 + $0x52] sm:$0xff]
        %v1864 = vld [vmem:[%s1395 + $0x62] sm:$0xff]
        %v1865 = vld [vmem:[%s1395 + $0x6a] sm:$0xff]
        %v1866 = vld [vmem:[%s1395 + $0x7a] sm:$0xff]
        %v1867 = vld [vmem:[%s1395 + $0x82] sm:$0xff]
        %v1868 = vld [vmem:[%s1395 + $0x92] sm:$0xff]
        %v1869 = vld [vmem:[%s1395 + $0x9a] sm:$0xff]
        %v1870 = vld [vmem:[%s1395 + $0xaa] sm:$0xff]
        %v1871 = vld [vmem:[%s1395 + $0xb2] sm:$0xff]
        %s1872 = scalar_lea.vmem [#allocation6], 160
        %v1873 = vld [vmem:[%s1872] sm:$0xff]
        %v1874 = vld [vmem:[%s1872 + $0x8] sm:$0xff]
        %v1875 = vld [vmem:[%s1872 + $0x10] sm:$0xff]
        %v1876 = vld [vmem:[%s1872 + $0x18] sm:$0xff]
        %v1878 = vsel %vm776, %v1856, 0
        %v1881 = vsel %vm776, %v1857, 0
        %v1884 = vsel %vm776, %v1858, 0
        %v1887 = vsel %vm776, %v1859, 0
        %v1890 = vsel %vm776, %v1860, 0
        %v1893 = vsel %vm776, %v1861, 0
        %v1896 = vsel %vm776, %v1862, 0
        %v1899 = vsel %vm776, %v1863, 0
        %v1902 = vsel %vm776, %v1864, 0
        %v1905 = vsel %vm776, %v1865, 0
        %v1908 = vsel %vm776, %v1866, 0
        %v1911 = vsel %vm776, %v1867, 0
        %v1914 = vsel %vm776, %v1868, 0
        %v1917 = vsel %vm776, %v1869, 0
        %v1920 = vsel %vm776, %v1870, 0
        %v1923 = vsel %vm776, %v1871, 0
        %1925 = vmatprep.subr.mxu0 0.0
        %1926 = vmatpush1.msra.mxu0 %v1873
        %1927 = vmatprep.subr.mxu0 0.0
        %1928 = vmatpush1.msra.mxu0 %v1874
        %1929 = vmatprep.subr.mxu0 0.0
        %1930 = vmatpush1.msra.mxu0 %v1875
        %1931 = vmatprep.subr.mxu0 0.0
        %1932 = vmatpush1.msra.mxu0 %v1876
        %1933 = vmatprep.subr.mxu0 0.0
        %1934 = vmatpush1.msra.mxu0 0.0
        %1935 = vmatprep.subr.mxu0 0.0
        %1936 = vmatpush1.msra.mxu0 0.0
        %1937 = vmatprep.subr.mxu0 0.0
        %1938 = vmatpush1.msra.mxu0 0.0
        %1939 = vmatprep.subr.mxu0 0.0
        %1940 = vmatpush1.msra.mxu0 0.0
        %1941 = vmatprep.subr.mxu0 0.0
        %1942 = vmatpush1.msra.mxu0 0.0
        %1943 = vmatprep.subr.mxu0 0.0
        %1944 = vmatpush1.msra.mxu0 0.0
        %1945 = vmatprep.subr.mxu0 0.0
        %1946 = vmatpush1.msra.mxu0 0.0
        %1947 = vmatprep.subr.mxu0 0.0
        %1948 = vmatpush1.msra.mxu0 0.0
        %1949 = vmatprep.subr.mxu0 0.0
        %1950 = vmatpush1.msra.mxu0 0.0
        %1951 = vmatprep.subr.mxu0 0.0
        %1952 = vmatpush1.msra.mxu0 0.0
        %1953 = vmatprep.subr.mxu0 0.0
        %1954 = vmatpush1.msra.mxu0 0.0
        %1955 = vmatprep.subr.mxu0 0.0
        %1956 = vmatpush1.msra.mxu0 0.0
        %1957 = vmatprep.subr.mxu0 0.0
        %1958 = vmatpush1.msra.mxu0 0.0
        %1959 = vmatprep.subr.mxu0 0.0
        %1960 = vmatpush1.msra.mxu0 0.0
        %1961 = vmatprep.subr.mxu0 0.0
        %1962 = vmatpush1.msra.mxu0 0.0
        %1963 = vmatprep.subr.mxu0 0.0
        %1964 = vmatpush1.msra.mxu0 0.0
        %1965 = vmatprep.subr.mxu0 0.0
        %1966 = vmatpush1.msra.mxu0 0.0
        %1967 = vmatprep.subr.mxu0 0.0
        %1968 = vmatpush1.msra.mxu0 0.0
        %1969 = vmatprep.subr.mxu0 0.0
        %1970 = vmatpush1.msra.mxu0 0.0
        %1971 = vmatprep.subr.mxu0 0.0
        %1972 = vmatpush1.msra.mxu0 0.0
        %1973 = vmatprep.subr.mxu0 0.0
        %1974 = vmatpush1.msra.mxu0 0.0
        %1975 = vmatprep.subr.mxu0 0.0
        %1976 = vmatpush1.msra.mxu0 0.0
        %1977 = vmatprep.subr.mxu0 0.0
        %1978 = vmatpush1.msra.mxu0 0.0
        %1979 = vmatprep.subr.mxu0 0.0
        %1980 = vmatpush1.msra.mxu0 0.0
        %1981 = vmatprep.subr.mxu0 0.0
        %1982 = vmatpush1.msra.mxu0 0.0
        %1983 = vmatprep.subr.mxu0 0.0
        %1984 = vmatpush1.msra.mxu0 0.0
        %1985 = vmatprep.subr.mxu0 0.0
        %1986 = vmatpush1.msra.mxu0 0.0
        %1987 = vmatprep.subr.mxu0 0.0
        %1988 = vmatpush1.msra.mxu0 0.0
        %1989 = vmatprep.mubr.f32.mxu0 0.0
        %1990 = vmatmul.mubr.f32.gmra.mrb[0].mxu0 %v1878
        %v1991 = vpop.f32.mrb[0].mxu0
        %v1992 = vadd.f32 0.0, %v1991
        %v1993 = vpop.f32.mrb[0].mxu0
        %1994 = vmatprep.mubr.f32.mxu0 0.0
        %1995 = vmatmul.mubr.f32.gmra.mrb[0].mxu0 %v1881
        %v1996 = vpop.f32.mrb[0].mxu0
        %v1997 = vadd.f32 0.0, %v1996
        %v1998 = vpop.f32.mrb[0].mxu0
        %1999 = vmatprep.mubr.f32.mxu0 0.0
        %2000 = vmatmul.mubr.f32.gmra.mrb[0].mxu0 %v1884
        %v2001 = vpop.f32.mrb[0].mxu0
        %v2002 = vadd.f32 0.0, %v2001
        %v2003 = vpop.f32.mrb[0].mxu0
        %2004 = vmatprep.mubr.f32.mxu0 0.0
        %2005 = vmatmul.mubr.f32.gmra.mrb[0].mxu0 %v1887
        %v2006 = vpop.f32.mrb[0].mxu0
        %v2007 = vadd.f32 0.0, %v2006
        %v2008 = vpop.f32.mrb[0].mxu0
        %2009 = vmatprep.mubr.f32.mxu0 0.0
        %2010 = vmatmul.mubr.f32.gmra.mrb[0].mxu0 %v1890
        %v2011 = vpop.f32.mrb[0].mxu0
        %v2012 = vadd.f32 0.0, %v2011
        %v2013 = vpop.f32.mrb[0].mxu0
        %2014 = vmatprep.mubr.f32.mxu0 0.0
        %2015 = vmatmul.mubr.f32.gmra.mrb[0].mxu0 %v1893
        %v2016 = vpop.f32.mrb[0].mxu0
        %v2017 = vadd.f32 0.0, %v2016
        %v2018 = vpop.f32.mrb[0].mxu0
        %2019 = vmatprep.mubr.f32.mxu0 0.0
        %2020 = vmatmul.mubr.f32.gmra.mrb[0].mxu0 %v1896
        %v2021 = vpop.f32.mrb[0].mxu0
        %v2022 = vadd.f32 0.0, %v2021
        %v2023 = vpop.f32.mrb[0].mxu0
        %2024 = vmatprep.mubr.f32.mxu0 0.0
        %2025 = vmatmul.mubr.f32.gmra.mrb[0].mxu0 %v1899
        %v2026 = vpop.f32.mrb[0].mxu0
        %v2027 = vadd.f32 0.0, %v2026
        %v2028 = vpop.f32.mrb[0].mxu0
        %2029 = vmatprep.mubr.f32.mxu0 0.0
        %2030 = vmatmul.mubr.f32.gmra.mrb[0].mxu0 %v1902
        %v2031 = vpop.f32.mrb[0].mxu0
        %v2032 = vadd.f32 0.0, %v2031
        %v2033 = vpop.f32.mrb[0].mxu0
        %2034 = vmatprep.mubr.f32.mxu0 0.0
        %2035 = vmatmul.mubr.f32.gmra.mrb[0].mxu0 %v1905
        %v2036 = vpop.f32.mrb[0].mxu0
        %v2037 = vadd.f32 0.0, %v2036
        %v2038 = vpop.f32.mrb[0].mxu0
        %2039 = vmatprep.mubr.f32.mxu0 0.0
        %2040 = vmatmul.mubr.f32.gmra.mrb[0].mxu0 %v1908
        %v2041 = vpop.f32.mrb[0].mxu0
        %v2042 = vadd.f32 0.0, %v2041
        %v2043 = vpop.f32.mrb[0].mxu0
        %2044 = vmatprep.mubr.f32.mxu0 0.0
        %2045 = vmatmul.mubr.f32.gmra.mrb[0].mxu0 %v1911
        %v2046 = vpop.f32.mrb[0].mxu0
        %v2047 = vadd.f32 0.0, %v2046
        %v2048 = vpop.f32.mrb[0].mxu0
        %2049 = vmatprep.mubr.f32.mxu0 0.0
        %2050 = vmatmul.mubr.f32.gmra.mrb[0].mxu0 %v1914
        %v2051 = vpop.f32.mrb[0].mxu0
        %v2052 = vadd.f32 0.0, %v2051
        %v2053 = vpop.f32.mrb[0].mxu0
        %2054 = vmatprep.mubr.f32.mxu0 0.0
        %2055 = vmatmul.mubr.f32.gmra.mrb[0].mxu0 %v1917
        %v2056 = vpop.f32.mrb[0].mxu0
        %v2057 = vadd.f32 0.0, %v2056
        %v2058 = vpop.f32.mrb[0].mxu0
        %2059 = vmatprep.mubr.f32.mxu0 0.0
        %2060 = vmatmul.mubr.f32.gmra.mrb[0].mxu0 %v1920
        %v2061 = vpop.f32.mrb[0].mxu0
        %v2062 = vadd.f32 0.0, %v2061
        %v2063 = vpop.f32.mrb[0].mxu0
        %2064 = vmatprep.mubr.f32.mxu0 0.0
        %2065 = vmatmul.mubr.f32.gmra.mrb[0].mxu0 %v1923
        %v2066 = vpop.f32.mrb[0].mxu0
        %v2067 = vadd.f32 0.0, %v2066
        %v2068 = vpop.f32.mrb[0].mxu0
        %2069 = vdwg.mxu0
        %v2070 = vadd.f32 %v1840, %v1992
        %v2071 = vadd.f32 %v1841, %v1997
        %v2072 = vadd.f32 %v1842, %v2002
        %v2073 = vadd.f32 %v1843, %v2007
        %v2074 = vadd.f32 %v1844, %v2012
        %v2075 = vadd.f32 %v1845, %v2017
        %v2076 = vadd.f32 %v1846, %v2022
        %v2077 = vadd.f32 %v1847, %v2027
        %v2078 = vadd.f32 %v1848, %v2032
        %v2079 = vadd.f32 %v1849, %v2037
        %v2080 = vadd.f32 %v1850, %v2042
        %v2081 = vadd.f32 %v1851, %v2047
        %v2082 = vadd.f32 %v1852, %v2052
        %v2083 = vadd.f32 %v1853, %v2057
        %v2084 = vadd.f32 %v1854, %v2062
        %v2085 = vadd.f32 %v1855, %v2067
        %s2086 = sadd.s32 %s732, 2
        %s2087 = smul.u32 %s2086, 24
        %s2088 = scalar_lea.vmem [#allocation2], %s2087
        %v2089 = vld [vmem:[%s2088] sm:$0xff]
        %v2090 = vld [vmem:[%s2088 + $0x8] sm:$0xff]
        %v2091 = vld [vmem:[%s2088 + $0x18] sm:$0xff]
        %v2092 = vld [vmem:[%s2088 + $0x20] sm:$0xff]
        %v2093 = vld [vmem:[%s2088 + $0x30] sm:$0xff]
        %v2094 = vld [vmem:[%s2088 + $0x38] sm:$0xff]
        %v2095 = vld [vmem:[%s2088 + $0x48] sm:$0xff]
        %v2096 = vld [vmem:[%s2088 + $0x50] sm:$0xff]
        %v2097 = vld [vmem:[%s2088 + $0x60] sm:$0xff]
        %v2098 = vld [vmem:[%s2088 + $0x68] sm:$0xff]
        %v2099 = vld [vmem:[%s2088 + $0x78] sm:$0xff]
        %v2100 = vld [vmem:[%s2088 + $0x80] sm:$0xff]
        %v2101 = vld [vmem:[%s2088 + $0x90] sm:$0xff]
        %v2102 = vld [vmem:[%s2088 + $0x98] sm:$0xff]
        %v2103 = vld [vmem:[%s2088 + $0xa8] sm:$0xff]
        %v2104 = vld [vmem:[%s2088 + $0xb0] sm:$0xff]
        %s2105 = scalar_lea.vmem [#allocation6], 192
        %v2106 = vld [vmem:[%s2105] sm:$0xff]
        %v2107 = vld [vmem:[%s2105 + $0x8] sm:$0xff]
        %v2108 = vld [vmem:[%s2105 + $0x10] sm:$0xff]
        %v2109 = vld [vmem:[%s2105 + $0x18] sm:$0xff]
        %v2111 = vsel %vm776, %v2089, 0
        %v2114 = vsel %vm776, %v2090, 0
        %v2117 = vsel %vm776, %v2091, 0
        %v2120 = vsel %vm776, %v2092, 0
        %v2123 = vsel %vm776, %v2093, 0
        %v2126 = vsel %vm776, %v2094, 0
        %v2129 = vsel %vm776, %v2095, 0
        %v2132 = vsel %vm776, %v2096, 0
        %v2135 = vsel %vm776, %v2097, 0
        %v2138 = vsel %vm776, %v2098, 0
        %v2141 = vsel %vm776, %v2099, 0
        %v2144 = vsel %vm776, %v2100, 0
        %v2147 = vsel %vm776, %v2101, 0
        %v2150 = vsel %vm776, %v2102, 0
        %v2153 = vsel %vm776, %v2103, 0
        %v2156 = vsel %vm776, %v2104, 0
        %2158 = vmatprep.subr.mxu0 0.0
        %2159 = vmatpush1.msra.mxu0 %v2106
        %2160 = vmatprep.subr.mxu0 0.0
        %2161 = vmatpush1.msra.mxu0 %v2107
        %2162 = vmatprep.subr.mxu0 0.0
        %2163 = vmatpush1.msra.mxu0 %v2108
        %2164 = vmatprep.subr.mxu0 0.0
        %2165 = vmatpush1.msra.mxu0 %v2109
        %2166 = vmatprep.subr.mxu0 0.0
        %2167 = vmatpush1.msra.mxu0 0.0
        %2168 = vmatprep.subr.mxu0 0.0
        %2169 = vmatpush1.msra.mxu0 0.0
        %2170 = vmatprep.subr.mxu0 0.0
        %2171 = vmatpush1.msra.mxu0 0.0
        %2172 = vmatprep.subr.mxu0 0.0
        %2173 = vmatpush1.msra.mxu0 0.0
        %2174 = vmatprep.subr.mxu0 0.0
        %2175 = vmatpush1.msra.mxu0 0.0
        %2176 = vmatprep.subr.mxu0 0.0
        %2177 = vmatpush1.msra.mxu0 0.0
        %2178 = vmatprep.subr.mxu0 0.0
        %2179 = vmatpush1.msra.mxu0 0.0
        %2180 = vmatprep.subr.mxu0 0.0
        %2181 = vmatpush1.msra.mxu0 0.0
        %2182 = vmatprep.subr.mxu0 0.0
        %2183 = vmatpush1.msra.mxu0 0.0
        %2184 = vmatprep.subr.mxu0 0.0
        %2185 = vmatpush1.msra.mxu0 0.0
        %2186 = vmatprep.subr.mxu0 0.0
        %2187 = vmatpush1.msra.mxu0 0.0
        %2188 = vmatprep.subr.mxu0 0.0
        %2189 = vmatpush1.msra.mxu0 0.0
        %2190 = vmatprep.subr.mxu0 0.0
        %2191 = vmatpush1.msra.mxu0 0.0
        %2192 = vmatprep.subr.mxu0 0.0
        %2193 = vmatpush1.msra.mxu0 0.0
        %2194 = vmatprep.subr.mxu0 0.0
        %2195 = vmatpush1.msra.mxu0 0.0
        %2196 = vmatprep.subr.mxu0 0.0
        %2197 = vmatpush1.msra.mxu0 0.0
        %2198 = vmatprep.subr.mxu0 0.0
        %2199 = vmatpush1.msra.mxu0 0.0
        %2200 = vmatprep.subr.mxu0 0.0
        %2201 = vmatpush1.msra.mxu0 0.0
        %2202 = vmatprep.subr.mxu0 0.0
        %2203 = vmatpush1.msra.mxu0 0.0
        %2204 = vmatprep.subr.mxu0 0.0
        %2205 = vmatpush1.msra.mxu0 0.0
        %2206 = vmatprep.subr.mxu0 0.0
        %2207 = vmatpush1.msra.mxu0 0.0
        %2208 = vmatprep.subr.mxu0 0.0
        %2209 = vmatpush1.msra.mxu0 0.0
        %2210 = vmatprep.subr.mxu0 0.0
        %2211 = vmatpush1.msra.mxu0 0.0
        %2212 = vmatprep.subr.mxu0 0.0
        %2213 = vmatpush1.msra.mxu0 0.0
        %2214 = vmatprep.subr.mxu0 0.0
        %2215 = vmatpush1.msra.mxu0 0.0
        %2216 = vmatprep.subr.mxu0 0.0
        %2217 = vmatpush1.msra.mxu0 0.0
        %2218 = vmatprep.subr.mxu0 0.0
        %2219 = vmatpush1.msra.mxu0 0.0
        %2220 = vmatprep.subr.mxu0 0.0
        %2221 = vmatpush1.msra.mxu0 0.0
        %2222 = vmatprep.mubr.f32.mxu0 0.0
        %2223 = vmatmul.mubr.f32.gmra.mrb[0].mxu0 %v2111
        %v2224 = vpop.f32.mrb[0].mxu0
        %v2225 = vadd.f32 0.0, %v2224
        %v2226 = vpop.f32.mrb[0].mxu0
        %2227 = vmatprep.mubr.f32.mxu0 0.0
        %2228 = vmatmul.mubr.f32.gmra.mrb[0].mxu0 %v2114
        %v2229 = vpop.f32.mrb[0].mxu0
        %v2230 = vadd.f32 0.0, %v2229
        %v2231 = vpop.f32.mrb[0].mxu0
        %2232 = vmatprep.mubr.f32.mxu0 0.0
        %2233 = vmatmul.mubr.f32.gmra.mrb[0].mxu0 %v2117
        %v2234 = vpop.f32.mrb[0].mxu0
        %v2235 = vadd.f32 0.0, %v2234
        %v2236 = vpop.f32.mrb[0].mxu0
        %2237 = vmatprep.mubr.f32.mxu0 0.0
        %2238 = vmatmul.mubr.f32.gmra.mrb[0].mxu0 %v2120
        %v2239 = vpop.f32.mrb[0].mxu0
        %v2240 = vadd.f32 0.0, %v2239
        %v2241 = vpop.f32.mrb[0].mxu0
        %2242 = vmatprep.mubr.f32.mxu0 0.0
        %2243 = vmatmul.mubr.f32.gmra.mrb[0].mxu0 %v2123
        %v2244 = vpop.f32.mrb[0].mxu0
        %v2245 = vadd.f32 0.0, %v2244
        %v2246 = vpop.f32.mrb[0].mxu0
        %2247 = vmatprep.mubr.f32.mxu0 0.0
        %2248 = vmatmul.mubr.f32.gmra.mrb[0].mxu0 %v2126
        %v2249 = vpop.f32.mrb[0].mxu0
        %v2250 = vadd.f32 0.0, %v2249
        %v2251 = vpop.f32.mrb[0].mxu0
        %2252 = vmatprep.mubr.f32.mxu0 0.0
        %2253 = vmatmul.mubr.f32.gmra.mrb[0].mxu0 %v2129
        %v2254 = vpop.f32.mrb[0].mxu0
        %v2255 = vadd.f32 0.0, %v2254
        %v2256 = vpop.f32.mrb[0].mxu0
        %2257 = vmatprep.mubr.f32.mxu0 0.0
        %2258 = vmatmul.mubr.f32.gmra.mrb[0].mxu0 %v2132
        %v2259 = vpop.f32.mrb[0].mxu0
        %v2260 = vadd.f32 0.0, %v2259
        %v2261 = vpop.f32.mrb[0].mxu0
        %2262 = vmatprep.mubr.f32.mxu0 0.0
        %2263 = vmatmul.mubr.f32.gmra.mrb[0].mxu0 %v2135
        %v2264 = vpop.f32.mrb[0].mxu0
        %v2265 = vadd.f32 0.0, %v2264
        %v2266 = vpop.f32.mrb[0].mxu0
        %2267 = vmatprep.mubr.f32.mxu0 0.0
        %2268 = vmatmul.mubr.f32.gmra.mrb[0].mxu0 %v2138
        %v2269 = vpop.f32.mrb[0].mxu0
        %v2270 = vadd.f32 0.0, %v2269
        %v2271 = vpop.f32.mrb[0].mxu0
        %2272 = vmatprep.mubr.f32.mxu0 0.0
        %2273 = vmatmul.mubr.f32.gmra.mrb[0].mxu0 %v2141
        %v2274 = vpop.f32.mrb[0].mxu0
        %v2275 = vadd.f32 0.0, %v2274
        %v2276 = vpop.f32.mrb[0].mxu0
        %2277 = vmatprep.mubr.f32.mxu0 0.0
        %2278 = vmatmul.mubr.f32.gmra.mrb[0].mxu0 %v2144
        %v2279 = vpop.f32.mrb[0].mxu0
        %v2280 = vadd.f32 0.0, %v2279
        %v2281 = vpop.f32.mrb[0].mxu0
        %2282 = vmatprep.mubr.f32.mxu0 0.0
        %2283 = vmatmul.mubr.f32.gmra.mrb[0].mxu0 %v2147
        %v2284 = vpop.f32.mrb[0].mxu0
        %v2285 = vadd.f32 0.0, %v2284
        %v2286 = vpop.f32.mrb[0].mxu0
        %2287 = vmatprep.mubr.f32.mxu0 0.0
        %2288 = vmatmul.mubr.f32.gmra.mrb[0].mxu0 %v2150
        %v2289 = vpop.f32.mrb[0].mxu0
        %v2290 = vadd.f32 0.0, %v2289
        %v2291 = vpop.f32.mrb[0].mxu0
        %2292 = vmatprep.mubr.f32.mxu0 0.0
        %2293 = vmatmul.mubr.f32.gmra.mrb[0].mxu0 %v2153
        %v2294 = vpop.f32.mrb[0].mxu0
        %v2295 = vadd.f32 0.0, %v2294
        %v2296 = vpop.f32.mrb[0].mxu0
        %2297 = vmatprep.mubr.f32.mxu0 0.0
        %2298 = vmatmul.mubr.f32.gmra.mrb[0].mxu0 %v2156
        %v2299 = vpop.f32.mrb[0].mxu0
        %v2300 = vadd.f32 0.0, %v2299
        %v2301 = vpop.f32.mrb[0].mxu0
        %2302 = vdwg.mxu0
        %v2303 = vadd.f32 %v2070, %v2225
        %v2304 = vadd.f32 %v2071, %v2230
        %v2305 = vadd.f32 %v2072, %v2235
        %v2306 = vadd.f32 %v2073, %v2240
        %v2307 = vadd.f32 %v2074, %v2245
        %v2308 = vadd.f32 %v2075, %v2250
        %v2309 = vadd.f32 %v2076, %v2255
        %v2310 = vadd.f32 %v2077, %v2260
        %v2311 = vadd.f32 %v2078, %v2265
        %v2312 = vadd.f32 %v2079, %v2270
        %v2313 = vadd.f32 %v2080, %v2275
        %v2314 = vadd.f32 %v2081, %v2280
        %v2315 = vadd.f32 %v2082, %v2285
        %v2316 = vadd.f32 %v2083, %v2290
        %v2317 = vadd.f32 %v2084, %v2295
        %v2318 = vadd.f32 %v2085, %v2300
        %v2319 = vld [vmem:[%s2088 + $0x1] sm:$0xff]
        %v2320 = vld [vmem:[%s2088 + $0x9] sm:$0xff]
        %v2321 = vld [vmem:[%s2088 + $0x19] sm:$0xff]
        %v2322 = vld [vmem:[%s2088 + $0x21] sm:$0xff]
        %v2323 = vld [vmem:[%s2088 + $0x31] sm:$0xff]
        %v2324 = vld [vmem:[%s2088 + $0x39] sm:$0xff]
        %v2325 = vld [vmem:[%s2088 + $0x49] sm:$0xff]
        %v2326 = vld [vmem:[%s2088 + $0x51] sm:$0xff]
        %v2327 = vld [vmem:[%s2088 + $0x61] sm:$0xff]
        %v2328 = vld [vmem:[%s2088 + $0x69] sm:$0xff]
        %v2329 = vld [vmem:[%s2088 + $0x79] sm:$0xff]
        %v2330 = vld [vmem:[%s2088 + $0x81] sm:$0xff]
        %v2331 = vld [vmem:[%s2088 + $0x91] sm:$0xff]
        %v2332 = vld [vmem:[%s2088 + $0x99] sm:$0xff]
        %v2333 = vld [vmem:[%s2088 + $0xa9] sm:$0xff]
        %v2334 = vld [vmem:[%s2088 + $0xb1] sm:$0xff]
        %s2335 = scalar_lea.vmem [#allocation6], 224
        %v2336 = vld [vmem:[%s2335] sm:$0xff]
        %v2337 = vld [vmem:[%s2335 + $0x8] sm:$0xff]
        %v2338 = vld [vmem:[%s2335 + $0x10] sm:$0xff]
        %v2339 = vld [vmem:[%s2335 + $0x18] sm:$0xff]
        %v2341 = vsel %vm776, %v2319, 0
        %v2344 = vsel %vm776, %v2320, 0
        %v2347 = vsel %vm776, %v2321, 0
        %v2350 = vsel %vm776, %v2322, 0
        %v2353 = vsel %vm776, %v2323, 0
        %v2356 = vsel %vm776, %v2324, 0
        %v2359 = vsel %vm776, %v2325, 0
        %v2362 = vsel %vm776, %v2326, 0
        %v2365 = vsel %vm776, %v2327, 0
        %v2368 = vsel %vm776, %v2328, 0
        %v2371 = vsel %vm776, %v2329, 0
        %v2374 = vsel %vm776, %v2330, 0
        %v2377 = vsel %vm776, %v2331, 0
        %v2380 = vsel %vm776, %v2332, 0
        %v2383 = vsel %vm776, %v2333, 0
        %v2386 = vsel %vm776, %v2334, 0
        %2388 = vmatprep.subr.mxu0 0.0
        %2389 = vmatpush1.msra.mxu0 %v2336
        %2390 = vmatprep.subr.mxu0 0.0
        %2391 = vmatpush1.msra.mxu0 %v2337
        %2392 = vmatprep.subr.mxu0 0.0
        %2393 = vmatpush1.msra.mxu0 %v2338
        %2394 = vmatprep.subr.mxu0 0.0
        %2395 = vmatpush1.msra.mxu0 %v2339
        %2396 = vmatprep.subr.mxu0 0.0
        %2397 = vmatpush1.msra.mxu0 0.0
        %2398 = vmatprep.subr.mxu0 0.0
        %2399 = vmatpush1.msra.mxu0 0.0
        %2400 = vmatprep.subr.mxu0 0.0
        %2401 = vmatpush1.msra.mxu0 0.0
        %2402 = vmatprep.subr.mxu0 0.0
        %2403 = vmatpush1.msra.mxu0 0.0
        %2404 = vmatprep.subr.mxu0 0.0
        %2405 = vmatpush1.msra.mxu0 0.0
        %2406 = vmatprep.subr.mxu0 0.0
        %2407 = vmatpush1.msra.mxu0 0.0
        %2408 = vmatprep.subr.mxu0 0.0
        %2409 = vmatpush1.msra.mxu0 0.0
        %2410 = vmatprep.subr.mxu0 0.0
        %2411 = vmatpush1.msra.mxu0 0.0
        %2412 = vmatprep.subr.mxu0 0.0
        %2413 = vmatpush1.msra.mxu0 0.0
        %2414 = vmatprep.subr.mxu0 0.0
        %2415 = vmatpush1.msra.mxu0 0.0
        %2416 = vmatprep.subr.mxu0 0.0
        %2417 = vmatpush1.msra.mxu0 0.0
        %2418 = vmatprep.subr.mxu0 0.0
        %2419 = vmatpush1.msra.mxu0 0.0
        %2420 = vmatprep.subr.mxu0 0.0
        %2421 = vmatpush1.msra.mxu0 0.0
        %2422 = vmatprep.subr.mxu0 0.0
        %2423 = vmatpush1.msra.mxu0 0.0
        %2424 = vmatprep.subr.mxu0 0.0
        %2425 = vmatpush1.msra.mxu0 0.0
        %2426 = vmatprep.subr.mxu0 0.0
        %2427 = vmatpush1.msra.mxu0 0.0
        %2428 = vmatprep.subr.mxu0 0.0
        %2429 = vmatpush1.msra.mxu0 0.0
        %2430 = vmatprep.subr.mxu0 0.0
        %2431 = vmatpush1.msra.mxu0 0.0
        %2432 = vmatprep.subr.mxu0 0.0
        %2433 = vmatpush1.msra.mxu0 0.0
        %2434 = vmatprep.subr.mxu0 0.0
        %2435 = vmatpush1.msra.mxu0 0.0
        %2436 = vmatprep.subr.mxu0 0.0
        %2437 = vmatpush1.msra.mxu0 0.0
        %2438 = vmatprep.subr.mxu0 0.0
        %2439 = vmatpush1.msra.mxu0 0.0
        %2440 = vmatprep.subr.mxu0 0.0
        %2441 = vmatpush1.msra.mxu0 0.0
        %2442 = vmatprep.subr.mxu0 0.0
        %2443 = vmatpush1.msra.mxu0 0.0
        %2444 = vmatprep.subr.mxu0 0.0
        %2445 = vmatpush1.msra.mxu0 0.0
        %2446 = vmatprep.subr.mxu0 0.0
        %2447 = vmatpush1.msra.mxu0 0.0
        %2448 = vmatprep.subr.mxu0 0.0
        %2449 = vmatpush1.msra.mxu0 0.0
        %2450 = vmatprep.subr.mxu0 0.0
        %2451 = vmatpush1.msra.mxu0 0.0
        %2452 = vmatprep.mubr.f32.mxu0 0.0
        %2453 = vmatmul.mubr.f32.gmra.mrb[0].mxu0 %v2341
        %v2454 = vpop.f32.mrb[0].mxu0
        %v2455 = vadd.f32 0.0, %v2454
        %v2456 = vpop.f32.mrb[0].mxu0
        %2457 = vmatprep.mubr.f32.mxu0 0.0
        %2458 = vmatmul.mubr.f32.gmra.mrb[0].mxu0 %v2344
        %v2459 = vpop.f32.mrb[0].mxu0
        %v2460 = vadd.f32 0.0, %v2459
        %v2461 = vpop.f32.mrb[0].mxu0
        %2462 = vmatprep.mubr.f32.mxu0 0.0
        %2463 = vmatmul.mubr.f32.gmra.mrb[0].mxu0 %v2347
        %v2464 = vpop.f32.mrb[0].mxu0
        %v2465 = vadd.f32 0.0, %v2464
        %v2466 = vpop.f32.mrb[0].mxu0
        %2467 = vmatprep.mubr.f32.mxu0 0.0
        %2468 = vmatmul.mubr.f32.gmra.mrb[0].mxu0 %v2350
        %v2469 = vpop.f32.mrb[0].mxu0
        %v2470 = vadd.f32 0.0, %v2469
        %v2471 = vpop.f32.mrb[0].mxu0
        %2472 = vmatprep.mubr.f32.mxu0 0.0
        %2473 = vmatmul.mubr.f32.gmra.mrb[0].mxu0 %v2353
        %v2474 = vpop.f32.mrb[0].mxu0
        %v2475 = vadd.f32 0.0, %v2474
        %v2476 = vpop.f32.mrb[0].mxu0
        %2477 = vmatprep.mubr.f32.mxu0 0.0
        %2478 = vmatmul.mubr.f32.gmra.mrb[0].mxu0 %v2356
        %v2479 = vpop.f32.mrb[0].mxu0
        %v2480 = vadd.f32 0.0, %v2479
        %v2481 = vpop.f32.mrb[0].mxu0
        %2482 = vmatprep.mubr.f32.mxu0 0.0
        %2483 = vmatmul.mubr.f32.gmra.mrb[0].mxu0 %v2359
        %v2484 = vpop.f32.mrb[0].mxu0
        %v2485 = vadd.f32 0.0, %v2484
        %v2486 = vpop.f32.mrb[0].mxu0
        %2487 = vmatprep.mubr.f32.mxu0 0.0
        %2488 = vmatmul.mubr.f32.gmra.mrb[0].mxu0 %v2362
        %v2489 = vpop.f32.mrb[0].mxu0
        %v2490 = vadd.f32 0.0, %v2489
        %v2491 = vpop.f32.mrb[0].mxu0
        %2492 = vmatprep.mubr.f32.mxu0 0.0
        %2493 = vmatmul.mubr.f32.gmra.mrb[0].mxu0 %v2365
        %v2494 = vpop.f32.mrb[0].mxu0
        %v2495 = vadd.f32 0.0, %v2494
        %v2496 = vpop.f32.mrb[0].mxu0
        %2497 = vmatprep.mubr.f32.mxu0 0.0
        %2498 = vmatmul.mubr.f32.gmra.mrb[0].mxu0 %v2368
        %v2499 = vpop.f32.mrb[0].mxu0
        %v2500 = vadd.f32 0.0, %v2499
        %v2501 = vpop.f32.mrb[0].mxu0
        %2502 = vmatprep.mubr.f32.mxu0 0.0
        %2503 = vmatmul.mubr.f32.gmra.mrb[0].mxu0 %v2371
        %v2504 = vpop.f32.mrb[0].mxu0
        %v2505 = vadd.f32 0.0, %v2504
        %v2506 = vpop.f32.mrb[0].mxu0
        %2507 = vmatprep.mubr.f32.mxu0 0.0
        %2508 = vmatmul.mubr.f32.gmra.mrb[0].mxu0 %v2374
        %v2509 = vpop.f32.mrb[0].mxu0
        %v2510 = vadd.f32 0.0, %v2509
        %v2511 = vpop.f32.mrb[0].mxu0
        %2512 = vmatprep.mubr.f32.mxu0 0.0
        %2513 = vmatmul.mubr.f32.gmra.mrb[0].mxu0 %v2377
        %v2514 = vpop.f32.mrb[0].mxu0
        %v2515 = vadd.f32 0.0, %v2514
        %v2516 = vpop.f32.mrb[0].mxu0
        %2517 = vmatprep.mubr.f32.mxu0 0.0
        %2518 = vmatmul.mubr.f32.gmra.mrb[0].mxu0 %v2380
        %v2519 = vpop.f32.mrb[0].mxu0
        %v2520 = vadd.f32 0.0, %v2519
        %v2521 = vpop.f32.mrb[0].mxu0
        %2522 = vmatprep.mubr.f32.mxu0 0.0
        %2523 = vmatmul.mubr.f32.gmra.mrb[0].mxu0 %v2383
        %v2524 = vpop.f32.mrb[0].mxu0
        %v2525 = vadd.f32 0.0, %v2524
        %v2526 = vpop.f32.mrb[0].mxu0
        %2527 = vmatprep.mubr.f32.mxu0 0.0
        %2528 = vmatmul.mubr.f32.gmra.mrb[0].mxu0 %v2386
        %v2529 = vpop.f32.mrb[0].mxu0
        %v2530 = vadd.f32 0.0, %v2529
        %v2531 = vpop.f32.mrb[0].mxu0
        %2532 = vdwg.mxu0
        %v2533 = vadd.f32 %v2303, %v2455
        %v2534 = vadd.f32 %v2304, %v2460
        %v2535 = vadd.f32 %v2305, %v2465
        %v2536 = vadd.f32 %v2306, %v2470
        %v2537 = vadd.f32 %v2307, %v2475
        %v2538 = vadd.f32 %v2308, %v2480
        %v2539 = vadd.f32 %v2309, %v2485
        %v2540 = vadd.f32 %v2310, %v2490
        %v2541 = vadd.f32 %v2311, %v2495
        %v2542 = vadd.f32 %v2312, %v2500
        %v2543 = vadd.f32 %v2313, %v2505
        %v2544 = vadd.f32 %v2314, %v2510
        %v2545 = vadd.f32 %v2315, %v2515
        %v2546 = vadd.f32 %v2316, %v2520
        %v2547 = vadd.f32 %v2317, %v2525
        %v2548 = vadd.f32 %v2318, %v2530
        %v2549 = vld [vmem:[%s2088 + $0x2] sm:$0xff]
        %v2550 = vld [vmem:[%s2088 + $0xa] sm:$0xff]
        %v2551 = vld [vmem:[%s2088 + $0x1a] sm:$0xff]
        %v2552 = vld [vmem:[%s2088 + $0x22] sm:$0xff]
        %v2553 = vld [vmem:[%s2088 + $0x32] sm:$0xff]
        %v2554 = vld [vmem:[%s2088 + $0x3a] sm:$0xff]
        %v2555 = vld [vmem:[%s2088 + $0x4a] sm:$0xff]
        %v2556 = vld [vmem:[%s2088 + $0x52] sm:$0xff]
        %v2557 = vld [vmem:[%s2088 + $0x62] sm:$0xff]
        %v2558 = vld [vmem:[%s2088 + $0x6a] sm:$0xff]
        %v2559 = vld [vmem:[%s2088 + $0x7a] sm:$0xff]
        %v2560 = vld [vmem:[%s2088 + $0x82] sm:$0xff]
        %v2561 = vld [vmem:[%s2088 + $0x92] sm:$0xff]
        %v2562 = vld [vmem:[%s2088 + $0x9a] sm:$0xff]
        %v2563 = vld [vmem:[%s2088 + $0xaa] sm:$0xff]
        %v2564 = vld [vmem:[%s2088 + $0xb2] sm:$0xff]
        %s2565 = scalar_lea.vmem [#allocation6], 256
        %v2566 = vld [vmem:[%s2565] sm:$0xff]
        %v2567 = vld [vmem:[%s2565 + $0x8] sm:$0xff]
        %v2568 = vld [vmem:[%s2565 + $0x10] sm:$0xff]
        %v2569 = vld [vmem:[%s2565 + $0x18] sm:$0xff]
        %v2571 = vsel %vm776, %v2549, 0
        %v2574 = vsel %vm776, %v2550, 0
        %v2577 = vsel %vm776, %v2551, 0
        %v2580 = vsel %vm776, %v2552, 0
        %v2583 = vsel %vm776, %v2553, 0
        %v2586 = vsel %vm776, %v2554, 0
        %v2589 = vsel %vm776, %v2555, 0
        %v2592 = vsel %vm776, %v2556, 0
        %v2595 = vsel %vm776, %v2557, 0
        %v2598 = vsel %vm776, %v2558, 0
        %v2601 = vsel %vm776, %v2559, 0
        %v2604 = vsel %vm776, %v2560, 0
        %v2607 = vsel %vm776, %v2561, 0
        %v2610 = vsel %vm776, %v2562, 0
        %v2613 = vsel %vm776, %v2563, 0
        %v2616 = vsel %vm776, %v2564, 0
        %2618 = vmatprep.subr.mxu0 0.0
        %2619 = vmatpush1.msra.mxu0 %v2566
        %2620 = vmatprep.subr.mxu0 0.0
        %2621 = vmatpush1.msra.mxu0 %v2567
        %2622 = vmatprep.subr.mxu0 0.0
        %2623 = vmatpush1.msra.mxu0 %v2568
        %2624 = vmatprep.subr.mxu0 0.0
        %2625 = vmatpush1.msra.mxu0 %v2569
        %2626 = vmatprep.subr.mxu0 0.0
        %2627 = vmatpush1.msra.mxu0 0.0
        %2628 = vmatprep.subr.mxu0 0.0
        %2629 = vmatpush1.msra.mxu0 0.0
        %2630 = vmatprep.subr.mxu0 0.0
        %2631 = vmatpush1.msra.mxu0 0.0
        %2632 = vmatprep.subr.mxu0 0.0
        %2633 = vmatpush1.msra.mxu0 0.0
        %2634 = vmatprep.subr.mxu0 0.0
        %2635 = vmatpush1.msra.mxu0 0.0
        %2636 = vmatprep.subr.mxu0 0.0
        %2637 = vmatpush1.msra.mxu0 0.0
        %2638 = vmatprep.subr.mxu0 0.0
        %2639 = vmatpush1.msra.mxu0 0.0
        %2640 = vmatprep.subr.mxu0 0.0
        %2641 = vmatpush1.msra.mxu0 0.0
        %2642 = vmatprep.subr.mxu0 0.0
        %2643 = vmatpush1.msra.mxu0 0.0
        %2644 = vmatprep.subr.mxu0 0.0
        %2645 = vmatpush1.msra.mxu0 0.0
        %2646 = vmatprep.subr.mxu0 0.0
        %2647 = vmatpush1.msra.mxu0 0.0
        %2648 = vmatprep.subr.mxu0 0.0
        %2649 = vmatpush1.msra.mxu0 0.0
        %2650 = vmatprep.subr.mxu0 0.0
        %2651 = vmatpush1.msra.mxu0 0.0
        %2652 = vmatprep.subr.mxu0 0.0
        %2653 = vmatpush1.msra.mxu0 0.0
        %2654 = vmatprep.subr.mxu0 0.0
        %2655 = vmatpush1.msra.mxu0 0.0
        %2656 = vmatprep.subr.mxu0 0.0
        %2657 = vmatpush1.msra.mxu0 0.0
        %2658 = vmatprep.subr.mxu0 0.0
        %2659 = vmatpush1.msra.mxu0 0.0
        %2660 = vmatprep.subr.mxu0 0.0
        %2661 = vmatpush1.msra.mxu0 0.0
        %2662 = vmatprep.subr.mxu0 0.0
        %2663 = vmatpush1.msra.mxu0 0.0
        %2664 = vmatprep.subr.mxu0 0.0
        %2665 = vmatpush1.msra.mxu0 0.0
        %2666 = vmatprep.subr.mxu0 0.0
        %2667 = vmatpush1.msra.mxu0 0.0
        %2668 = vmatprep.subr.mxu0 0.0
        %2669 = vmatpush1.msra.mxu0 0.0
        %2670 = vmatprep.subr.mxu0 0.0
        %2671 = vmatpush1.msra.mxu0 0.0
        %2672 = vmatprep.subr.mxu0 0.0
        %2673 = vmatpush1.msra.mxu0 0.0
        %2674 = vmatprep.subr.mxu0 0.0
        %2675 = vmatpush1.msra.mxu0 0.0
        %2676 = vmatprep.subr.mxu0 0.0
        %2677 = vmatpush1.msra.mxu0 0.0
        %2678 = vmatprep.subr.mxu0 0.0
        %2679 = vmatpush1.msra.mxu0 0.0
        %2680 = vmatprep.subr.mxu0 0.0
        %2681 = vmatpush1.msra.mxu0 0.0
        %2682 = vmatprep.mubr.f32.mxu0 0.0
        %2683 = vmatmul.mubr.f32.gmra.mrb[0].mxu0 %v2571
        %v2684 = vpop.f32.mrb[0].mxu0
        %v2685 = vadd.f32 0.0, %v2684
        %v2686 = vpop.f32.mrb[0].mxu0
        %2687 = vmatprep.mubr.f32.mxu0 0.0
        %2688 = vmatmul.mubr.f32.gmra.mrb[0].mxu0 %v2574
        %v2689 = vpop.f32.mrb[0].mxu0
        %v2690 = vadd.f32 0.0, %v2689
        %v2691 = vpop.f32.mrb[0].mxu0
        %2692 = vmatprep.mubr.f32.mxu0 0.0
        %2693 = vmatmul.mubr.f32.gmra.mrb[0].mxu0 %v2577
        %v2694 = vpop.f32.mrb[0].mxu0
        %v2695 = vadd.f32 0.0, %v2694
        %v2696 = vpop.f32.mrb[0].mxu0
        %2697 = vmatprep.mubr.f32.mxu0 0.0
        %2698 = vmatmul.mubr.f32.gmra.mrb[0].mxu0 %v2580
        %v2699 = vpop.f32.mrb[0].mxu0
        %v2700 = vadd.f32 0.0, %v2699
        %v2701 = vpop.f32.mrb[0].mxu0
        %2702 = vmatprep.mubr.f32.mxu0 0.0
        %2703 = vmatmul.mubr.f32.gmra.mrb[0].mxu0 %v2583
        %v2704 = vpop.f32.mrb[0].mxu0
        %v2705 = vadd.f32 0.0, %v2704
        %v2706 = vpop.f32.mrb[0].mxu0
        %2707 = vmatprep.mubr.f32.mxu0 0.0
        %2708 = vmatmul.mubr.f32.gmra.mrb[0].mxu0 %v2586
        %v2709 = vpop.f32.mrb[0].mxu0
        %v2710 = vadd.f32 0.0, %v2709
        %v2711 = vpop.f32.mrb[0].mxu0
        %2712 = vmatprep.mubr.f32.mxu0 0.0
        %2713 = vmatmul.mubr.f32.gmra.mrb[0].mxu0 %v2589
        %v2714 = vpop.f32.mrb[0].mxu0
        %v2715 = vadd.f32 0.0, %v2714
        %v2716 = vpop.f32.mrb[0].mxu0
        %2717 = vmatprep.mubr.f32.mxu0 0.0
        %2718 = vmatmul.mubr.f32.gmra.mrb[0].mxu0 %v2592
        %v2719 = vpop.f32.mrb[0].mxu0
        %v2720 = vadd.f32 0.0, %v2719
        %v2721 = vpop.f32.mrb[0].mxu0
        %2722 = vmatprep.mubr.f32.mxu0 0.0
        %2723 = vmatmul.mubr.f32.gmra.mrb[0].mxu0 %v2595
        %v2724 = vpop.f32.mrb[0].mxu0
        %v2725 = vadd.f32 0.0, %v2724
        %v2726 = vpop.f32.mrb[0].mxu0
        %2727 = vmatprep.mubr.f32.mxu0 0.0
        %2728 = vmatmul.mubr.f32.gmra.mrb[0].mxu0 %v2598
        %v2729 = vpop.f32.mrb[0].mxu0
        %v2730 = vadd.f32 0.0, %v2729
        %v2731 = vpop.f32.mrb[0].mxu0
        %2732 = vmatprep.mubr.f32.mxu0 0.0
        %2733 = vmatmul.mubr.f32.gmra.mrb[0].mxu0 %v2601
        %v2734 = vpop.f32.mrb[0].mxu0
        %v2735 = vadd.f32 0.0, %v2734
        %v2736 = vpop.f32.mrb[0].mxu0
        %2737 = vmatprep.mubr.f32.mxu0 0.0
        %2738 = vmatmul.mubr.f32.gmra.mrb[0].mxu0 %v2604
        %v2739 = vpop.f32.mrb[0].mxu0
        %v2740 = vadd.f32 0.0, %v2739
        %v2741 = vpop.f32.mrb[0].mxu0
        %2742 = vmatprep.mubr.f32.mxu0 0.0
        %2743 = vmatmul.mubr.f32.gmra.mrb[0].mxu0 %v2607
        %v2744 = vpop.f32.mrb[0].mxu0
        %v2745 = vadd.f32 0.0, %v2744
        %v2746 = vpop.f32.mrb[0].mxu0
        %2747 = vmatprep.mubr.f32.mxu0 0.0
        %2748 = vmatmul.mubr.f32.gmra.mrb[0].mxu0 %v2610
        %v2749 = vpop.f32.mrb[0].mxu0
        %v2750 = vadd.f32 0.0, %v2749
        %v2751 = vpop.f32.mrb[0].mxu0
        %2752 = vmatprep.mubr.f32.mxu0 0.0
        %2753 = vmatmul.mubr.f32.gmra.mrb[0].mxu0 %v2613
        %v2754 = vpop.f32.mrb[0].mxu0
        %v2755 = vadd.f32 0.0, %v2754
        %v2756 = vpop.f32.mrb[0].mxu0
        %2757 = vmatprep.mubr.f32.mxu0 0.0
        %2758 = vmatmul.mubr.f32.gmra.mrb[0].mxu0 %v2616
        %v2759 = vpop.f32.mrb[0].mxu0
        %v2760 = vadd.f32 0.0, %v2759
        %v2761 = vpop.f32.mrb[0].mxu0
        %2762 = vdwg.mxu0
        %v2763 = vadd.f32 %v2533, %v2685
        %v2764 = vadd.f32 %v2534, %v2690
        %v2765 = vadd.f32 %v2535, %v2695
        %v2766 = vadd.f32 %v2536, %v2700
        %v2767 = vadd.f32 %v2537, %v2705
        %v2768 = vadd.f32 %v2538, %v2710
        %v2769 = vadd.f32 %v2539, %v2715
        %v2770 = vadd.f32 %v2540, %v2720
        %v2771 = vadd.f32 %v2541, %v2725
        %v2772 = vadd.f32 %v2542, %v2730
        %v2773 = vadd.f32 %v2543, %v2735
        %v2774 = vadd.f32 %v2544, %v2740
        %v2775 = vadd.f32 %v2545, %v2745
        %v2776 = vadd.f32 %v2546, %v2750
        %v2777 = vadd.f32 %v2547, %v2755
        %v2778 = vadd.f32 %v2548, %v2760
        %v2779 = vld [vmem:[%s4] sm:$0x1]
        %v2781 = vlaneseq
        %v2782 = vshrl.u32 %v2781, 7
        %v2783 = vsub.s32 0, %v2782
        %v2784 = vrot.slane %v2779, %v2783
        %v2786 = vadd.f32 %v2763, %v2784
        %v2787 = vadd.f32 %v2764, %v2784
        %v2788 = vadd.f32 %v2765, %v2784
        %v2789 = vadd.f32 %v2766, %v2784
        %v2790 = vadd.f32 %v2767, %v2784
        %v2791 = vadd.f32 %v2768, %v2784
        %v2792 = vadd.f32 %v2769, %v2784
        %v2793 = vadd.f32 %v2770, %v2784
        %v2794 = vadd.f32 %v2771, %v2784
        %v2795 = vadd.f32 %v2772, %v2784
        %v2796 = vadd.f32 %v2773, %v2784
        %v2797 = vadd.f32 %v2774, %v2784
        %v2798 = vadd.f32 %v2775, %v2784
        %v2799 = vadd.f32 %v2776, %v2784
        %v2800 = vadd.f32 %v2777, %v2784
        %v2801 = vadd.f32 %v2778, %v2784
        %v2802 = vmax.f32 %v2786, 0.0
        %v2803 = vmax.f32 %v2787, 0.0
        %v2804 = vmax.f32 %v2788, 0.0
        %v2805 = vmax.f32 %v2789, 0.0
        %v2806 = vmax.f32 %v2790, 0.0
        %v2807 = vmax.f32 %v2791, 0.0
        %v2808 = vmax.f32 %v2792, 0.0
        %v2809 = vmax.f32 %v2793, 0.0
        %v2810 = vmax.f32 %v2794, 0.0
        %v2811 = vmax.f32 %v2795, 0.0
        %v2812 = vmax.f32 %v2796, 0.0
        %v2813 = vmax.f32 %v2797, 0.0
        %v2814 = vmax.f32 %v2798, 0.0
        %v2815 = vmax.f32 %v2799, 0.0
        %v2816 = vmax.f32 %v2800, 0.0
        %v2817 = vmax.f32 %v2801, 0.0
        %v2818 = vld [vmem:[%s5] sm:$0xff]
        %v2819 = vld [vmem:[%s5 + $0x8] sm:$0xff]
        %v2820 = vld [vmem:[%s5 + $0x10] sm:$0xff]
        %v2821 = vld [vmem:[%s5 + $0x18] sm:$0xff]
        %v2822 = vld [vmem:[%s6] sm:$0x1]
        %v2824 = vlaneseq
        %v2825 = vshrl.u32 %v2824, 7
        %v2826 = vsub.s32 0, %v2825
        %v2827 = vrot.slane %v2822, %v2826
        %v2830 = vsel %vm776, %v2802, 0
        %v2833 = vsel %vm776, %v2803, 0
        %v2836 = vsel %vm776, %v2804, 0
        %v2839 = vsel %vm776, %v2805, 0
        %v2842 = vsel %vm776, %v2806, 0
        %v2845 = vsel %vm776, %v2807, 0
        %v2848 = vsel %vm776, %v2808, 0
        %v2851 = vsel %vm776, %v2809, 0
        %v2854 = vsel %vm776, %v2810, 0
        %v2857 = vsel %vm776, %v2811, 0
        %v2860 = vsel %vm776, %v2812, 0
        %v2863 = vsel %vm776, %v2813, 0
        %v2866 = vsel %vm776, %v2814, 0
        %v2869 = vsel %vm776, %v2815, 0
        %v2872 = vsel %vm776, %v2816, 0
        %v2875 = vsel %vm776, %v2817, 0
        %2877 = vmatprep.subr.mxu0 0.0
        %2878 = vmatpush1.msra.mxu0 %v2818
        %2879 = vmatprep.subr.mxu0 0.0
        %2880 = vmatpush1.msra.mxu0 %v2819
        %2881 = vmatprep.subr.mxu0 0.0
        %2882 = vmatpush1.msra.mxu0 %v2820
        %2883 = vmatprep.subr.mxu0 0.0
        %2884 = vmatpush1.msra.mxu0 %v2821
        %2885 = vmatprep.subr.mxu0 0.0
        %2886 = vmatpush1.msra.mxu0 0.0
        %2887 = vmatprep.subr.mxu0 0.0
        %2888 = vmatpush1.msra.mxu0 0.0
        %2889 = vmatprep.subr.mxu0 0.0
        %2890 = vmatpush1.msra.mxu0 0.0
        %2891 = vmatprep.subr.mxu0 0.0
        %2892 = vmatpush1.msra.mxu0 0.0
        %2893 = vmatprep.subr.mxu0 0.0
        %2894 = vmatpush1.msra.mxu0 0.0
        %2895 = vmatprep.subr.mxu0 0.0
        %2896 = vmatpush1.msra.mxu0 0.0
        %2897 = vmatprep.subr.mxu0 0.0
        %2898 = vmatpush1.msra.mxu0 0.0
        %2899 = vmatprep.subr.mxu0 0.0
        %2900 = vmatpush1.msra.mxu0 0.0
        %2901 = vmatprep.subr.mxu0 0.0
        %2902 = vmatpush1.msra.mxu0 0.0
        %2903 = vmatprep.subr.mxu0 0.0
        %2904 = vmatpush1.msra.mxu0 0.0
        %2905 = vmatprep.subr.mxu0 0.0
        %2906 = vmatpush1.msra.mxu0 0.0
        %2907 = vmatprep.subr.mxu0 0.0
        %2908 = vmatpush1.msra.mxu0 0.0
        %2909 = vmatprep.subr.mxu0 0.0
        %2910 = vmatpush1.msra.mxu0 0.0
        %2911 = vmatprep.subr.mxu0 0.0
        %2912 = vmatpush1.msra.mxu0 0.0
        %2913 = vmatprep.subr.mxu0 0.0
        %2914 = vmatpush1.msra.mxu0 0.0
        %2915 = vmatprep.subr.mxu0 0.0
        %2916 = vmatpush1.msra.mxu0 0.0
        %2917 = vmatprep.subr.mxu0 0.0
        %2918 = vmatpush1.msra.mxu0 0.0
        %2919 = vmatprep.subr.mxu0 0.0
        %2920 = vmatpush1.msra.mxu0 0.0
        %2921 = vmatprep.subr.mxu0 0.0
        %2922 = vmatpush1.msra.mxu0 0.0
        %2923 = vmatprep.subr.mxu0 0.0
        %2924 = vmatpush1.msra.mxu0 0.0
        %2925 = vmatprep.subr.mxu0 0.0
        %2926 = vmatpush1.msra.mxu0 0.0
        %2927 = vmatprep.subr.mxu0 0.0
        %2928 = vmatpush1.msra.mxu0 0.0
        %2929 = vmatprep.subr.mxu0 0.0
        %2930 = vmatpush1.msra.mxu0 0.0
        %2931 = vmatprep.subr.mxu0 0.0
        %2932 = vmatpush1.msra.mxu0 0.0
        %2933 = vmatprep.subr.mxu0 0.0
        %2934 = vmatpush1.msra.mxu0 0.0
        %2935 = vmatprep.subr.mxu0 0.0
        %2936 = vmatpush1.msra.mxu0 0.0
        %2937 = vmatprep.subr.mxu0 0.0
        %2938 = vmatpush1.msra.mxu0 0.0
        %2939 = vmatprep.subr.mxu0 0.0
        %2940 = vmatpush1.msra.mxu0 0.0
        %2941 = vmatprep.mubr.f32.mxu0 0.0
        %2942 = vmatmul.mubr.f32.gmra.mrb[0].mxu0 %v2830
        %v2943 = vpop.f32.mrb[0].mxu0
        %v2944 = vadd.f32 %v2827, %v2943
        %v2945 = vpop.f32.mrb[0].mxu0
        %2946 = vmatprep.mubr.f32.mxu0 0.0
        %2947 = vmatmul.mubr.f32.gmra.mrb[0].mxu0 %v2833
        %v2948 = vpop.f32.mrb[0].mxu0
        %v2949 = vadd.f32 %v2827, %v2948
        %v2950 = vpop.f32.mrb[0].mxu0
        %2951 = vmatprep.mubr.f32.mxu0 0.0
        %2952 = vmatmul.mubr.f32.gmra.mrb[0].mxu0 %v2836
        %v2953 = vpop.f32.mrb[0].mxu0
        %v2954 = vadd.f32 %v2827, %v2953
        %v2955 = vpop.f32.mrb[0].mxu0
        %2956 = vmatprep.mubr.f32.mxu0 0.0
        %2957 = vmatmul.mubr.f32.gmra.mrb[0].mxu0 %v2839
        %v2958 = vpop.f32.mrb[0].mxu0
        %v2959 = vadd.f32 %v2827, %v2958
        %v2960 = vpop.f32.mrb[0].mxu0
        %2961 = vmatprep.mubr.f32.mxu0 0.0
        %2962 = vmatmul.mubr.f32.gmra.mrb[0].mxu0 %v2842
        %v2963 = vpop.f32.mrb[0].mxu0
        %v2964 = vadd.f32 %v2827, %v2963
        %v2965 = vpop.f32.mrb[0].mxu0
        %2966 = vmatprep.mubr.f32.mxu0 0.0
        %2967 = vmatmul.mubr.f32.gmra.mrb[0].mxu0 %v2845
        %v2968 = vpop.f32.mrb[0].mxu0
        %v2969 = vadd.f32 %v2827, %v2968
        %v2970 = vpop.f32.mrb[0].mxu0
        %2971 = vmatprep.mubr.f32.mxu0 0.0
        %2972 = vmatmul.mubr.f32.gmra.mrb[0].mxu0 %v2848
        %v2973 = vpop.f32.mrb[0].mxu0
        %v2974 = vadd.f32 %v2827, %v2973
        %v2975 = vpop.f32.mrb[0].mxu0
        %2976 = vmatprep.mubr.f32.mxu0 0.0
        %2977 = vmatmul.mubr.f32.gmra.mrb[0].mxu0 %v2851
        %v2978 = vpop.f32.mrb[0].mxu0
        %v2979 = vadd.f32 %v2827, %v2978
        %v2980 = vpop.f32.mrb[0].mxu0
        %2981 = vmatprep.mubr.f32.mxu0 0.0
        %2982 = vmatmul.mubr.f32.gmra.mrb[0].mxu0 %v2854
        %v2983 = vpop.f32.mrb[0].mxu0
        %v2984 = vadd.f32 %v2827, %v2983
        %v2985 = vpop.f32.mrb[0].mxu0
        %2986 = vmatprep.mubr.f32.mxu0 0.0
        %2987 = vmatmul.mubr.f32.gmra.mrb[0].mxu0 %v2857
        %v2988 = vpop.f32.mrb[0].mxu0
        %v2989 = vadd.f32 %v2827, %v2988
        %v2990 = vpop.f32.mrb[0].mxu0
        %2991 = vmatprep.mubr.f32.mxu0 0.0
        %2992 = vmatmul.mubr.f32.gmra.mrb[0].mxu0 %v2860
        %v2993 = vpop.f32.mrb[0].mxu0
        %v2994 = vadd.f32 %v2827, %v2993
        %v2995 = vpop.f32.mrb[0].mxu0
        %2996 = vmatprep.mubr.f32.mxu0 0.0
        %2997 = vmatmul.mubr.f32.gmra.mrb[0].mxu0 %v2863
        %v2998 = vpop.f32.mrb[0].mxu0
        %v2999 = vadd.f32 %v2827, %v2998
        %v3000 = vpop.f32.mrb[0].mxu0
        %3001 = vmatprep.mubr.f32.mxu0 0.0
        %3002 = vmatmul.mubr.f32.gmra.mrb[0].mxu0 %v2866
        %v3003 = vpop.f32.mrb[0].mxu0
        %v3004 = vadd.f32 %v2827, %v3003
        %v3005 = vpop.f32.mrb[0].mxu0
        %3006 = vmatprep.mubr.f32.mxu0 0.0
        %3007 = vmatmul.mubr.f32.gmra.mrb[0].mxu0 %v2869
        %v3008 = vpop.f32.mrb[0].mxu0
        %v3009 = vadd.f32 %v2827, %v3008
        %v3010 = vpop.f32.mrb[0].mxu0
        %3011 = vmatprep.mubr.f32.mxu0 0.0
        %3012 = vmatmul.mubr.f32.gmra.mrb[0].mxu0 %v2872
        %v3013 = vpop.f32.mrb[0].mxu0
        %v3014 = vadd.f32 %v2827, %v3013
        %v3015 = vpop.f32.mrb[0].mxu0
        %3016 = vmatprep.mubr.f32.mxu0 0.0
        %3017 = vmatmul.mubr.f32.gmra.mrb[0].mxu0 %v2875
        %v3018 = vpop.f32.mrb[0].mxu0
        %v3019 = vadd.f32 %v2827, %v3018
        %v3020 = vpop.f32.mrb[0].mxu0
        %3021 = vdwg.mxu0
        %s3022 = smul.u32 %s732, 16
        %s3023 = scalar_lea.vmem %s291, %s3022 [#allocation3]
        %v3024 = vld [vmem:[%s3023] sm:$0xff]
        %v3025 = vld [vmem:[%s3023 + $0x8] sm:$0xff]
        %v3026 = vld [vmem:[%s3023 + $0x10] sm:$0xff]
        %v3027 = vld [vmem:[%s3023 + $0x18] sm:$0xff]
        %v3028 = vld [vmem:[%s3023 + $0x20] sm:$0xff]
        %v3029 = vld [vmem:[%s3023 + $0x28] sm:$0xff]
        %v3030 = vld [vmem:[%s3023 + $0x30] sm:$0xff]
        %v3031 = vld [vmem:[%s3023 + $0x38] sm:$0xff]
        %v3032 = vld [vmem:[%s3023 + $0x40] sm:$0xff]
        %v3033 = vld [vmem:[%s3023 + $0x48] sm:$0xff]
        %v3034 = vld [vmem:[%s3023 + $0x50] sm:$0xff]
        %v3035 = vld [vmem:[%s3023 + $0x58] sm:$0xff]
        %v3036 = vld [vmem:[%s3023 + $0x60] sm:$0xff]
        %v3037 = vld [vmem:[%s3023 + $0x68] sm:$0xff]
        %v3038 = vld [vmem:[%s3023 + $0x70] sm:$0xff]
        %v3039 = vld [vmem:[%s3023 + $0x78] sm:$0xff]
        %v3040 = vadd.f32 %v2944, %v3024
        %v3041 = vadd.f32 %v2949, %v3025
        %v3042 = vadd.f32 %v2954, %v3026
        %v3043 = vadd.f32 %v2959, %v3027
        %v3044 = vadd.f32 %v2964, %v3028
        %v3045 = vadd.f32 %v2969, %v3029
        %v3046 = vadd.f32 %v2974, %v3030
        %v3047 = vadd.f32 %v2979, %v3031
        %v3048 = vadd.f32 %v2984, %v3032
        %v3049 = vadd.f32 %v2989, %v3033
        %v3050 = vadd.f32 %v2994, %v3034
        %v3051 = vadd.f32 %v2999, %v3035
        %v3052 = vadd.f32 %v3004, %v3036
        %v3053 = vadd.f32 %v3009, %v3037
        %v3054 = vadd.f32 %v3014, %v3038
        %v3055 = vadd.f32 %v3019, %v3039
        %v3056 = vmax.f32 %v3040, 0.0
        %v3057 = vmax.f32 %v3041, 0.0
        %v3058 = vmax.f32 %v3042, 0.0
        %v3059 = vmax.f32 %v3043, 0.0
        %v3060 = vmax.f32 %v3044, 0.0
        %v3061 = vmax.f32 %v3045, 0.0
        %v3062 = vmax.f32 %v3046, 0.0
        %v3063 = vmax.f32 %v3047, 0.0
        %v3064 = vmax.f32 %v3048, 0.0
        %v3065 = vmax.f32 %v3049, 0.0
        %v3066 = vmax.f32 %v3050, 0.0
        %v3067 = vmax.f32 %v3051, 0.0
        %v3068 = vmax.f32 %v3052, 0.0
        %v3069 = vmax.f32 %v3053, 0.0
        %v3070 = vmax.f32 %v3054, 0.0
        %v3071 = vmax.f32 %v3055, 0.0
        %3072 = vst [vmem:[%s325] sm:$0xff] %v3056
        %3073 = vst [vmem:[%s325 + $0x8] sm:$0xff] %v3057
        %3074 = vst [vmem:[%s325 + $0x10] sm:$0xff] %v3058
        %3075 = vst [vmem:[%s325 + $0x18] sm:$0xff] %v3059
        %3076 = vst [vmem:[%s325 + $0x20] sm:$0xff] %v3060
        %3077 = vst [vmem:[%s325 + $0x28] sm:$0xff] %v3061
        %3078 = vst [vmem:[%s325 + $0x30] sm:$0xff] %v3062
        %3079 = vst [vmem:[%s325 + $0x38] sm:$0xff] %v3063
        %3080 = vst [vmem:[%s325 + $0x40] sm:$0xff] %v3064
        %3081 = vst [vmem:[%s325 + $0x48] sm:$0xff] %v3065
        %3082 = vst [vmem:[%s325 + $0x50] sm:$0xff] %v3066
        %3083 = vst [vmem:[%s325 + $0x58] sm:$0xff] %v3067
        %3084 = vst [vmem:[%s325 + $0x60] sm:$0xff] %v3068
        %3085 = vst [vmem:[%s325 + $0x68] sm:$0xff] %v3069
        %3086 = vst [vmem:[%s325 + $0x70] sm:$0xff] %v3070
        %3087 = vst [vmem:[%s325 + $0x78] sm:$0xff] %v3071
        %s3088 = sand.u32 %s199, 1
        %s3089 = scalar_lea.sflag [#allocation5], %s3088
        %s3090 = sand.u32 %s199, 1
        %s3091 = smul.addr %s3090, 128
        %s3092 = scalar_lea.vmem [#allocation8], %s3091
        // Predicated region
        $region61: #{tpu_custom_call.1} parent=47 // pred_check
          %p3093 = pneg %p209
        $region62: #{tpu_custom_call.1} parent=47 // pred_check_branch
          %3095 = sbr.rel (%p3093) target = $region64
        $region63: #{tpu_custom_call.1} parent=47 // pred_region
          %s3096 = smul.u32 8, %s30
          %s3098 = ssub.s32 2048, 2048
          %3099 = vsyncadd %s3089, %s3098
          %s3100 = smul.addr %s3096, 2
          %s3101 = smul.addr %s29, 32
          %s3102 = sadd.s32 %s3100, %s3101
          %s3103 = smul.addr %s3102, 128
          %s3104 = scalar_lea.hbm %s7, %s3103
          %s3105 = sshll.u32 %s3092, 4
          %s3106 = int_to_ptr.vmem [resolvable:$true] %s3105
          %3111 = dma.vmem_to_hbm [thread:$0]  %s3106, 2048, %s3104, %s3089, 128, 128, 8
        $region64: #{tpu_custom_call.1} parent=47 // pred_fallthru
          _
      $region48: #{tpu_custom_call.1} parent=5 // pred_fallthru
        _
      %p3112 = scmp.le.s32.totalorder 2, %s20
      // Predicated region
      $region65: #{tpu_custom_call.1} parent=5 // pred_check
        %p3113 = pneg %p3112
      $region66: #{tpu_custom_call.1} parent=5 // pred_check_branch
        %3115 = sbr.rel (%p3113) target = $region68
      $region67: #{tpu_custom_call.1} parent=5 // pred_region
        %s3116 = ssub.s32 %s20, 2
        // Predicated region
        $region69: #{tpu_custom_call.1} parent=67 // pred_check
          %p3117 = pneg %p215
        $region70: #{tpu_custom_call.1} parent=67 // pred_check_branch
          %3119 = sbr.rel (%p3117) target = $region72
        $region71: #{tpu_custom_call.1} parent=67 // pred_region
          %s3120 = sand.u32 %s200, 1
          %s3121 = scalar_lea.sflag [#allocation5], %s3120
          %s3122 = sand.u32 %s200, 1
          %s3123 = smul.addr %s3122, 128
          %s3124 = scalar_lea.vmem [#allocation8], %s3123
          %3125 = dma.done %s3121, 2048
        $region72: #{tpu_custom_call.1} parent=67 // pred_fallthru
          _
      $region68: #{tpu_custom_call.1} parent=5 // pred_fallthru
        _
    $region6: #{tpu_custom_call.1} parent=1 // loop_footer
      %s24 = sadd.s32 1, %s20
    $region7: #{tpu_custom_call.1} parent=1 // loop_footer_branch
      %19 = sbr.rel target = $region3
    $region8: #{tpu_custom_call.1} parent=1 // loop_exit
      _
    %3126 = vsyncpa [#allocation4], 1
    %s3127 = scalar_lea.sflag [#allocation4], 1
    %3128 = vsyncpa %s3127, 1
    %3129 = vsyncpa [#allocation7], 1
    %3130 = vsyncpa [#allocation5], 1
    %s3131 = scalar_lea.sflag [#allocation5], 1
    %3132 = vsyncpa %s3131, 1

</llo_original>
